<compile_context>
chip_gen: v7x
topology: tpu7x:2x2x1
jax: 0.10.0
libtpu: 0.0.40
codegen_flags: <defaults>
</compile_context>

<pallas_src>
import math
import functools

import jax
import jax.numpy as jnp
from jax.experimental import pallas as pl
from jax.experimental.pallas import tpu as pltpu


def denoiser_kernel(ns_ref, sv_ref, rowid_ref, colid_ref,
                    wi_ref, bi_ref, pos_ref,
                    ln1g_ref, ln1b_ref,
                    wqkv_ref, bqkv_ref,
                    wo_ref, bo_ref,
                    ln2g_ref, ln2b_ref,
                    wff1_ref, bff1_ref, wff2_ref, bff2_ref,
                    woutT_ref, bout_ref,
                    mu_ref,
                    *, B, N, D, H, L):
    Dh = D // H
    BN = B * N
    eps = 1e-5
    inv_D = 1.0 / D

    ns = ns_ref[...]                    # [BN, 1]
    sv = sv_ref[...]                    # [BN, 1]
    wi = wi_ref[...]                    # [3, D]

    # Block-diagonal additive attention bias built in-kernel from tiny batch-id
    # vectors (keeps each batch attending only to its own N tokens; no (BN)^2 DMA).
    attn_bias = jnp.where(rowid_ref[...] == colid_ref[...], 0.0, -1e30)  # [BN, BN]

    def layernorm(x, g, b):
        # single-pass stats: both reductions issue back-to-back (no data dep)
        s1 = jnp.sum(x, axis=-1, keepdims=True)
        s2 = jnp.sum(x * x, axis=-1, keepdims=True)
        m = s1 * inv_D
        var = s2 * inv_D - m * m
        return (x - m) * jax.lax.rsqrt(var + eps) * g + b

    # positional encoding tiled in-kernel ([N,D] -> [BN,D], sublane concat)
    pos_t = jnp.concatenate([pos_ref[...]] * B, axis=0)                  # [BN, D]

    # input_proj(stack([noisy, sqrt(sv), sqrt(1-sv)], -1)) as rank-1 updates,
    # fused over the whole batch slab, + positional encoding.
    x = (ns * wi[0:1, :]
         + jnp.sqrt(sv) * wi[1:2, :]
         + jnp.sqrt(1.0 - sv) * wi[2:3, :]
         + bi_ref[...] + pos_t)                                          # [BN, D]

    # TODO(synk): dropout (p=0.1) is a no-op at inference; training-mode dropout not implemented.
    # TODO(synk): if L grows, move the layer loop to a grid axis (per-layer weight
    # streaming) instead of full unrolling; at L=2 the unroll is cheapest.
    for l in range(L):                  # static, small layer loop
        # --- self-attention block (pre-norm) ---
        hn = layernorm(x, ln1g_ref[l:l + 1, :], ln1b_ref[l:l + 1, :])    # [BN, D]

        # one fused QKV matmul (attention scale pre-folded into Wq/bq on the host)
        qkv = jnp.dot(hn, wqkv_ref[l],
                      preferred_element_type=jnp.float32) + bqkv_ref[l:l + 1, :]  # [BN, 3D]

        # recover heads with static Dh-lane slices (cheap XLU work, no extra matmuls)
        q = jnp.stack([qkv[:, 0 * D + h * Dh:0 * D + (h + 1) * Dh] for h in range(H)], axis=0)
        k = jnp.stack([qkv[:, 1 * D + h * Dh:1 * D + (h + 1) * Dh] for h in range(H)], axis=0)
        v = jnp.stack([qkv[:, 2 * D + h * Dh:2 * D + (h + 1) * Dh] for h in range(H)], axis=0)
        # q, k, v: [H, BN, Dh]

        # head-batched scores over the full slab; block-diagonal bias keeps batches
        # independent.  One fused max/sum reduce for all heads and batches.
        s = jnp.einsum('hqe,hke->hqk', q, k,
                       preferred_element_type=jnp.float32) + attn_bias   # [H, BN, BN]
        s = s - jnp.max(s, axis=-1, keepdims=True)
        p = jnp.exp(s)
        p = p * pl.reciprocal(jnp.sum(p, axis=-1, keepdims=True), approx=True)
        o = jnp.einsum('hqk,hke->hqe', p, v,
                       preferred_element_type=jnp.float32)               # [H, BN, Dh]

        # head-combine: lane concat + ONE matmul against the un-split Wo
        o_cat = jnp.concatenate([o[h] for h in range(H)], axis=-1)       # [BN, D]
        attn = jnp.dot(o_cat, wo_ref[l], preferred_element_type=jnp.float32)
        x = x + attn + bo_ref[l:l + 1, :]

        # --- feed-forward block (pre-norm) ---
        h2 = layernorm(x, ln2g_ref[l:l + 1, :], ln2b_ref[l:l + 1, :])
        ff = jnp.dot(h2, wff1_ref[l], preferred_element_type=jnp.float32) \
           + bff1_ref[l:l + 1, :]
        ff = jnp.maximum(ff, 0.0)
        ff = jnp.dot(ff, wff2_ref[l], preferred_element_type=jnp.float32) \
           + bff2_ref[l:l + 1, :]
        x = x + ff

    # --- output head as two lane reductions (avoids a 2-lane-wide MXU result) ---
    wt = woutT_ref[...]                                                  # [2, D]
    mu_like = jnp.sum(x * wt[0:1, :], axis=-1, keepdims=True) + bout_ref[0:1, :]  # [BN,1]
    z = jnp.sum(x * wt[1:2, :], axis=-1, keepdims=True) + bout_ref[1:2, :]
    sigma_like = jnp.maximum(z, 0.0) + jnp.log1p(jnp.exp(-jnp.abs(z)))   # stable softplus

    # combine_gaussians reduced algebraically to a single reciprocal:
    # mu = (sigma_post*mu_prior + sigma_prior*mu_post) / (sigma_post + sigma_prior)
    sp = 1.0 - sv
    mu_ref[...] = (sigma_like * ns + sp * mu_like) * \
                  pl.reciprocal(sigma_like + sp, approx=True)            # [BN, 1]


def denoiser_forward(noisy, sv, params, *, n_heads):
    B, N = noisy.shape
    D = params["wi"].shape[1]
    L = params["wqkv"].shape[0]
    H = n_heads
    Dh = D // H
    BN = B * N

    # Host-side weight prep: fold the 1/sqrt(Dh) attention scale into the Q slice
    # of the fused QKV weight/bias (free; removes a [H,BN,BN] multiply per layer).
    scale = 1.0 / math.sqrt(Dh)
    wqkv = params["wqkv"].at[:, :, :D].multiply(scale)       # [L, D, 3D]
    bqkv = params["bqkv"].at[:, :D].multiply(scale)          # [L, 3D]

    woutT = params["wout"].T                                 # [2, D]
    boutC = params["bout"].T                                 # [2, 1]

    # Tiny batch-id vectors for the in-kernel block-diagonal attention bias
    # (rows/cols are (batch, token)-major).  use_causal_mask defaults to False;
    # a causal mask would simply be added to the in-kernel bias.
    row_b = (jnp.arange(BN, dtype=jnp.int32) // N).reshape(BN, 1)
    col_b = row_b.reshape(1, BN)

    inputs = [noisy.reshape(BN, 1), sv.reshape(BN, 1), row_b, col_b,
              params["wi"], params["bi"], params["pos"],
              params["ln1g"], params["ln1b"],
              wqkv, bqkv,
              params["wo"], params["bo"],
              params["ln2g"], params["ln2b"],
              params["wff1"], params["bff1"], params["wff2"], params["bff2"],
              woutT, boutC]

    kernel = functools.partial(denoiser_kernel, B=B, N=N, D=D, H=H, L=L)
    mu_flat = pl.pallas_call(
        kernel,
        out_shape=jax.ShapeDtypeStruct((BN, 1), jnp.float32),
        in_specs=[pl.BlockSpec(memory_space=pltpu.MemorySpace.VMEM)] * len(inputs),
        out_specs=pl.BlockSpec(memory_space=pltpu.MemorySpace.VMEM),
    )(*inputs)
    # TODO(synk): for large B (or B*N), move batch to a Pallas grid axis with
    # dimension_semantics=("parallel",) so v7x's two TensorCores split it and the
    # scores shrink to [H,N,N]; at B=2,N=8 the fused slab avoids per-step overhead.
    return mu_flat.reshape(B, N)


# ---------------- deterministic parameter construction ----------------
def make_params(N, D, L, key):
    def nw(k, shape, scale=0.05):
        return (scale * jax.random.normal(k, shape)).astype(jnp.float32)

    ks = jax.random.split(key, 8)
    # sinusoidal positional encoding (matches _init_pos_encoding)
    position = jnp.arange(N, dtype=jnp.float32)[:, None]
    div_term = jnp.pi * jnp.exp(
        jnp.arange(0, D, 2, dtype=jnp.float32) * (-math.log(1000.0) / D))
    pe = jnp.zeros((N, D), jnp.float32)
    pe = pe.at[:, 0::2].set(jnp.sin(position * div_term))
    pe = pe.at[:, 1::2].set(jnp.cos(position * div_term))

    params = {
        "wi": nw(ks[0], (3, D)),
        "bi": jnp.zeros((1, D), jnp.float32),
        "pos": pe,
        "ln1g": jnp.ones((L, D), jnp.float32),
        "ln1b": jnp.zeros((L, D), jnp.float32),
        "wqkv": nw(ks[1], (L, D, 3 * D)),
        "bqkv": jnp.zeros((L, 3 * D), jnp.float32),
        "wo": nw(ks[2], (L, D, D)),
        "bo": jnp.zeros((L, D), jnp.float32),
        "ln2g": jnp.ones((L, D), jnp.float32),
        "ln2b": jnp.zeros((L, D), jnp.float32),
        "wff1": nw(ks[3], (L, D, 4 * D)),
        "bff1": jnp.zeros((L, 4 * D), jnp.float32),
        "wff2": nw(ks[4], (L, 4 * D, D)),
        "bff2": jnp.zeros((L, D), jnp.float32),
        "wout": nw(ks[5], (D, 2)),
        "bout": jnp.zeros((1, 2), jnp.float32),
    }
    return params


# ---------------- pure-JAX reference for validation ----------------
def denoiser_ref(noisy, sv, p, *, n_heads):
    D = p["wi"].shape[1]
    L = p["wqkv"].shape[0]
    H = n_heads
    Dh = D // H

    def ln(x, g, b):
        m = x.mean(-1, keepdims=True)
        v = ((x - m) ** 2).mean(-1, keepdims=True)
        return (x - m) / jnp.sqrt(v + 1e-5) * g + b

    x3 = jnp.stack([noisy, jnp.sqrt(sv), jnp.sqrt(1.0 - sv)], axis=-1)
    x = x3 @ p["wi"] + p["bi"] + p["pos"][None]
    B, N, _ = x.shape
    for l in range(L):
        h = ln(x, p["ln1g"][l], p["ln1b"][l])
        qkv = h @ p["wqkv"][l] + p["bqkv"][l]
        q, k, v = qkv[..., :D], qkv[..., D:2 * D], qkv[..., 2 * D:]
        q = q.reshape(B, N, H, Dh)
        k = k.reshape(B, N, H, Dh)
        v = v.reshape(B, N, H, Dh)
        s = jnp.einsum("bqhd,bkhd->bhqk", q, k) / math.sqrt(Dh)
        pr = jax.nn.softmax(s, axis=-1)
        a = jnp.einsum("bhqk,bkhd->bqhd", pr, v).reshape(B, N, D)
        x = x + a @ p["wo"][l] + p["bo"][l]
        h2 = ln(x, p["ln2g"][l], p["ln2b"][l])
        ff = jax.nn.relu(h2 @ p["wff1"][l] + p["bff1"][l]) @ p["wff2"][l] + p["bff2"][l]
        x = x + ff
    out = x @ p["wout"] + p["bout"]
    mu_like = out[..., 0]
    sigma_like = jax.nn.softplus(out[..., 1])
    prec_prior = 1.0 / (1.0 - sv)
    prec_post = 1.0 / sigma_like
    sigma_c = 1.0 / (prec_prior + prec_post)
    return sigma_c * (prec_prior * noisy + prec_post * mu_like)


if __name__ == "__main__":
    # Small shapes consistent with the module: batch=2, seq N=8, d_model=32,
    # n_heads=4, n_layers=2.
    B, N, D, H, L = 2, 8, 32, 4, 2

    key = jax.random.PRNGKey(0)
    kp, kx, kv = jax.random.split(key, 3)
    params = make_params(N, D, L, kp)

    noisy_seq = jax.random.normal(kx, (B, N), jnp.float32)
    signal_var = jax.random.uniform(kv, (B, N), jnp.float32, minval=0.1, maxval=0.9)

    mu = denoiser_forward(noisy_seq, signal_var, params, n_heads=H)
    mu = jax.block_until_ready(mu)

    mu_ref = denoiser_ref(noisy_seq, signal_var, params, n_heads=H)
    assert mu.shape == (B, N)
    assert jnp.allclose(mu, mu_ref, atol=2e-3, rtol=2e-3), (
        f"mismatch: max abs err {jnp.max(jnp.abs(mu - mu_ref))}")

    print("KERNEL_OK")
</pallas_src>

<mosaic_0001>
module attributes {stable_mosaic.version = 11 : i64} {
  func.func @denoiser_kernel(%arg0: memref<16x1xf32, #tpu.memory_space<vmem>>, %arg1: memref<16x1xf32, #tpu.memory_space<vmem>>, %arg2: memref<16x1xi32, #tpu.memory_space<vmem>>, %arg3: memref<1x16xi32, #tpu.memory_space<vmem>>, %arg4: memref<3x32xf32, #tpu.memory_space<vmem>>, %arg5: memref<1x32xf32, #tpu.memory_space<vmem>>, %arg6: memref<8x32xf32, #tpu.memory_space<vmem>>, %arg7: memref<2x32xf32, #tpu.memory_space<vmem>>, %arg8: memref<2x32xf32, #tpu.memory_space<vmem>>, %arg9: memref<2x32x96xf32, #tpu.memory_space<vmem>>, %arg10: memref<2x96xf32, #tpu.memory_space<vmem>>, %arg11: memref<2x32x32xf32, #tpu.memory_space<vmem>>, %arg12: memref<2x32xf32, #tpu.memory_space<vmem>>, %arg13: memref<2x32xf32, #tpu.memory_space<vmem>>, %arg14: memref<2x32xf32, #tpu.memory_space<vmem>>, %arg15: memref<2x32x128xf32, #tpu.memory_space<vmem>>, %arg16: memref<2x128xf32, #tpu.memory_space<vmem>>, %arg17: memref<2x128x32xf32, #tpu.memory_space<vmem>>, %arg18: memref<2x32xf32, #tpu.memory_space<vmem>>, %arg19: memref<2x32xf32, #tpu.memory_space<vmem>>, %arg20: memref<2x1xf32, #tpu.memory_space<vmem>>, %arg21: memref<16x1xf32, #tpu.memory_space<vmem>>) attributes {dimension_semantics = [], scalar_prefetch = 0 : i64, scratch_operands = 0 : i64, tpu.core_type = #tpu.core_type<tc>} {
    %c0 = arith.constant 0 : index
    %c0_0 = arith.constant 0 : index
    %0 = vector.load %arg0[%c0, %c0_0] : memref<16x1xf32, #tpu.memory_space<vmem>>, vector<16x1xf32>
    %c0_1 = arith.constant 0 : index
    %c0_2 = arith.constant 0 : index
    %1 = vector.load %arg1[%c0_1, %c0_2] : memref<16x1xf32, #tpu.memory_space<vmem>>, vector<16x1xf32>
    %c0_3 = arith.constant 0 : index
    %c0_4 = arith.constant 0 : index
    %2 = vector.load %arg4[%c0_3, %c0_4] : memref<3x32xf32, #tpu.memory_space<vmem>>, vector<3x32xf32>
    %c0_5 = arith.constant 0 : index
    %c0_6 = arith.constant 0 : index
    %3 = vector.load %arg2[%c0_5, %c0_6] : memref<16x1xi32, #tpu.memory_space<vmem>>, vector<16x1xi32>
    %c0_7 = arith.constant 0 : index
    %c0_8 = arith.constant 0 : index
    %4 = vector.load %arg3[%c0_7, %c0_8] : memref<1x16xi32, #tpu.memory_space<vmem>>, vector<1x16xi32>
    %5 = vector.broadcast %3 : vector<16x1xi32> to vector<16x16xi32>
    %6 = vector.broadcast %4 : vector<1x16xi32> to vector<16x16xi32>
    %7 = arith.cmpi eq, %5, %6 : vector<16x16xi32>
    %cst = arith.constant 0.000000e+00 : f32
    %cst_9 = arith.constant -1.000000e+30 : f32
    %8 = vector.broadcast %cst : f32 to vector<16x16xf32>
    %9 = vector.broadcast %cst_9 : f32 to vector<16x16xf32>
    %10 = arith.select %7, %8, %9 : vector<16x16xi1>, vector<16x16xf32>
    %c0_10 = arith.constant 0 : index
    %c0_11 = arith.constant 0 : index
    %11 = vector.load %arg6[%c0_10, %c0_11] : memref<8x32xf32, #tpu.memory_space<vmem>>, vector<8x32xf32>
    %12 = tpu.concatenate %11, %11 in 0 : vector<8x32xf32>, vector<8x32xf32> -> vector<16x32xf32>
    %13 = vector.extract_strided_slice %2 {offsets = [0, 0], sizes = [1, 32], strides = [1, 1]} : vector<3x32xf32> to vector<1x32xf32>
    %14 = vector.broadcast %0 : vector<16x1xf32> to vector<16x32xf32>
    %15 = vector.broadcast %13 : vector<1x32xf32> to vector<16x32xf32>
    %16 = arith.mulf %14, %15 : vector<16x32xf32>
    %17 = math.sqrt %1 : vector<16x1xf32>
    %18 = vector.extract_strided_slice %2 {offsets = [1, 0], sizes = [1, 32], strides = [1, 1]} : vector<3x32xf32> to vector<1x32xf32>
    %19 = vector.broadcast %17 : vector<16x1xf32> to vector<16x32xf32>
    %20 = vector.broadcast %18 : vector<1x32xf32> to vector<16x32xf32>
    %21 = arith.mulf %19, %20 : vector<16x32xf32>
    %22 = arith.addf %16, %21 : vector<16x32xf32>
    %cst_12 = arith.constant 1.000000e+00 : f32
    %23 = vector.broadcast %cst_12 : f32 to vector<16x1xf32>
    %24 = arith.subf %23, %1 : vector<16x1xf32>
    %25 = math.sqrt %24 : vector<16x1xf32>
    %26 = vector.extract_strided_slice %2 {offsets = [2, 0], sizes = [1, 32], strides = [1, 1]} : vector<3x32xf32> to vector<1x32xf32>
    %27 = vector.broadcast %25 : vector<16x1xf32> to vector<16x32xf32>
    %28 = vector.broadcast %26 : vector<1x32xf32> to vector<16x32xf32>
    %29 = arith.mulf %27, %28 : vector<16x32xf32>
    %30 = arith.addf %22, %29 : vector<16x32xf32>
    %c0_13 = arith.constant 0 : index
    %c0_14 = arith.constant 0 : index
    %31 = vector.load %arg5[%c0_13, %c0_14] : memref<1x32xf32, #tpu.memory_space<vmem>>, vector<1x32xf32>
    %32 = vector.broadcast %31 : vector<1x32xf32> to vector<16x32xf32>
    %33 = arith.addf %30, %32 : vector<16x32xf32>
    %34 = arith.addf %33, %12 : vector<16x32xf32>
    %c0_15 = arith.constant 0 : index
    %c0_16 = arith.constant 0 : index
    %35 = vector.load %arg7[%c0_15, %c0_16] : memref<2x32xf32, #tpu.memory_space<vmem>>, vector<1x32xf32>
    %c0_17 = arith.constant 0 : index
    %c0_18 = arith.constant 0 : index
    %36 = vector.load %arg8[%c0_17, %c0_18] : memref<2x32xf32, #tpu.memory_space<vmem>>, vector<1x32xf32>
    %cst_19 = arith.constant dense<0.000000e+00> : vector<16xf32>
    %37 = vector.multi_reduction <add>, %34, %cst_19 [1] : vector<16x32xf32> to vector<16xf32>
    %38 = vector.shape_cast %37 : vector<16xf32> to vector<16x1xf32>
    %39 = arith.mulf %34, %34 : vector<16x32xf32>
    %cst_20 = arith.constant dense<0.000000e+00> : vector<16xf32>
    %40 = vector.multi_reduction <add>, %39, %cst_20 [1] : vector<16x32xf32> to vector<16xf32>
    %41 = vector.shape_cast %40 : vector<16xf32> to vector<16x1xf32>
    %cst_21 = arith.constant 3.125000e-02 : f32
    %42 = vector.broadcast %cst_21 : f32 to vector<16x1xf32>
    %43 = arith.mulf %38, %42 : vector<16x1xf32>
    %cst_22 = arith.constant 3.125000e-02 : f32
    %44 = vector.broadcast %cst_22 : f32 to vector<16x1xf32>
    %45 = arith.mulf %41, %44 : vector<16x1xf32>
    %46 = arith.mulf %43, %43 : vector<16x1xf32>
    %47 = arith.subf %45, %46 : vector<16x1xf32>
    %48 = vector.broadcast %43 : vector<16x1xf32> to vector<16x32xf32>
    %49 = arith.subf %34, %48 : vector<16x32xf32>
    %cst_23 = arith.constant 9.99999974E-6 : f32
    %50 = vector.broadcast %cst_23 : f32 to vector<16x1xf32>
    %51 = arith.addf %47, %50 : vector<16x1xf32>
    %52 = math.rsqrt %51 : vector<16x1xf32>
    %53 = vector.broadcast %52 : vector<16x1xf32> to vector<16x32xf32>
    %54 = arith.mulf %49, %53 : vector<16x32xf32>
    %55 = vector.broadcast %35 : vector<1x32xf32> to vector<16x32xf32>
    %56 = arith.mulf %54, %55 : vector<16x32xf32>
    %57 = vector.broadcast %36 : vector<1x32xf32> to vector<16x32xf32>
    %58 = arith.addf %56, %57 : vector<16x32xf32>
    %c0_24 = arith.constant 0 : index
    %c0_25 = arith.constant 0 : index
    %c0_26 = arith.constant 0 : index
    %59 = vector.load %arg9[%c0_24, %c0_25, %c0_26] : memref<2x32x96xf32, #tpu.memory_space<vmem>>, vector<1x32x96xf32>
    %60 = vector.shape_cast %59 : vector<1x32x96xf32> to vector<32x96xf32>
    %cst_27 = arith.constant dense<0.000000e+00> : vector<16x96xf32>
    %61 = tpu.matmul %58, %60, %cst_27 {dimension_numbers = #tpu.dot_dimension_numbers<[1], [0], [0], [1], [0, 0, 1, 1], [], []>} : vector<16x32xf32>, vector<32x96xf32>, vector<16x96xf32> -> vector<16x96xf32>
    %c0_28 = arith.constant 0 : index
    %c0_29 = arith.constant 0 : index
    %62 = vector.load %arg10[%c0_28, %c0_29] : memref<2x96xf32, #tpu.memory_space<vmem>>, vector<1x96xf32>
    %63 = vector.broadcast %62 : vector<1x96xf32> to vector<16x96xf32>
    %64 = arith.addf %61, %63 : vector<16x96xf32>
    %65 = vector.extract_strided_slice %64 {offsets = [0, 0], sizes = [16, 8], strides = [1, 1]} : vector<16x96xf32> to vector<16x8xf32>
    %66 = vector.extract_strided_slice %64 {offsets = [0, 8], sizes = [16, 8], strides = [1, 1]} : vector<16x96xf32> to vector<16x8xf32>
    %67 = vector.extract_strided_slice %64 {offsets = [0, 16], sizes = [16, 8], strides = [1, 1]} : vector<16x96xf32> to vector<16x8xf32>
    %68 = vector.extract_strided_slice %64 {offsets = [0, 24], sizes = [16, 8], strides = [1, 1]} : vector<16x96xf32> to vector<16x8xf32>
    %69 = vector.shape_cast %65 : vector<16x8xf32> to vector<1x16x8xf32>
    %70 = vector.shape_cast %66 : vector<16x8xf32> to vector<1x16x8xf32>
    %71 = vector.shape_cast %67 : vector<16x8xf32> to vector<1x16x8xf32>
    %72 = vector.shape_cast %68 : vector<16x8xf32> to vector<1x16x8xf32>
    %73 = tpu.concatenate %69, %70, %71, %72 in 0 : vector<1x16x8xf32>, vector<1x16x8xf32>, vector<1x16x8xf32>, vector<1x16x8xf32> -> vector<4x16x8xf32>
    %74 = vector.extract_strided_slice %64 {offsets = [0, 32], sizes = [16, 8], strides = [1, 1]} : vector<16x96xf32> to vector<16x8xf32>
    %75 = vector.extract_strided_slice %64 {offsets = [0, 40], sizes = [16, 8], strides = [1, 1]} : vector<16x96xf32> to vector<16x8xf32>
    %76 = vector.extract_strided_slice %64 {offsets = [0, 48], sizes = [16, 8], strides = [1, 1]} : vector<16x96xf32> to vector<16x8xf32>
    %77 = vector.extract_strided_slice %64 {offsets = [0, 56], sizes = [16, 8], strides = [1, 1]} : vector<16x96xf32> to vector<16x8xf32>
    %78 = vector.shape_cast %74 : vector<16x8xf32> to vector<1x16x8xf32>
    %79 = vector.shape_cast %75 : vector<16x8xf32> to vector<1x16x8xf32>
    %80 = vector.shape_cast %76 : vector<16x8xf32> to vector<1x16x8xf32>
    %81 = vector.shape_cast %77 : vector<16x8xf32> to vector<1x16x8xf32>
    %82 = tpu.concatenate %78, %79, %80, %81 in 0 : vector<1x16x8xf32>, vector<1x16x8xf32>, vector<1x16x8xf32>, vector<1x16x8xf32> -> vector<4x16x8xf32>
    %83 = vector.extract_strided_slice %64 {offsets = [0, 64], sizes = [16, 8], strides = [1, 1]} : vector<16x96xf32> to vector<16x8xf32>
    %84 = vector.extract_strided_slice %64 {offsets = [0, 72], sizes = [16, 8], strides = [1, 1]} : vector<16x96xf32> to vector<16x8xf32>
    %85 = vector.extract_strided_slice %64 {offsets = [0, 80], sizes = [16, 8], strides = [1, 1]} : vector<16x96xf32> to vector<16x8xf32>
    %86 = vector.extract_strided_slice %64 {offsets = [0, 88], sizes = [16, 8], strides = [1, 1]} : vector<16x96xf32> to vector<16x8xf32>
    %87 = vector.shape_cast %83 : vector<16x8xf32> to vector<1x16x8xf32>
    %88 = vector.shape_cast %84 : vector<16x8xf32> to vector<1x16x8xf32>
    %89 = vector.shape_cast %85 : vector<16x8xf32> to vector<1x16x8xf32>
    %90 = vector.shape_cast %86 : vector<16x8xf32> to vector<1x16x8xf32>
    %91 = tpu.concatenate %87, %88, %89, %90 in 0 : vector<1x16x8xf32>, vector<1x16x8xf32>, vector<1x16x8xf32>, vector<1x16x8xf32> -> vector<4x16x8xf32>
    "tpu.trace_start"() <{level = 10 : i32, message = "hqe,hke->hqk"}> : () -> ()
    %cst_30 = arith.constant dense<0.000000e+00> : vector<4x16x16xf32>
    %92 = tpu.matmul %73, %82, %cst_30 {dimension_numbers = #tpu.dot_dimension_numbers<[2], [2], [1], [1], [0, 0, 0, 1, 1, 1], [0], [0]>} : vector<4x16x8xf32>, vector<4x16x8xf32>, vector<4x16x16xf32> -> vector<4x16x16xf32>
    "tpu.trace_stop"() : () -> ()
    %93 = vector.shape_cast %10 : vector<16x16xf32> to vector<1x16x16xf32>
    %94 = vector.broadcast %93 : vector<1x16x16xf32> to vector<4x16x16xf32>
    %95 = arith.addf %92, %94 : vector<4x16x16xf32>
    %cst_31 = arith.constant dense<0xFF800000> : vector<4x16xf32>
    %96 = vector.multi_reduction <maximumf>, %95, %cst_31 [2] : vector<4x16x16xf32> to vector<4x16xf32>
    %97 = vector.shape_cast %96 : vector<4x16xf32> to vector<4x16x1xf32>
    %98 = vector.broadcast %97 : vector<4x16x1xf32> to vector<4x16x16xf32>
    %99 = arith.subf %95, %98 : vector<4x16x16xf32>
    %100 = math.exp %99 : vector<4x16x16xf32>
    %cst_32 = arith.constant dense<0.000000e+00> : vector<4x16xf32>
    %101 = vector.multi_reduction <add>, %100, %cst_32 [2] : vector<4x16x16xf32> to vector<4x16xf32>
    %102 = vector.shape_cast %101 : vector<4x16xf32> to vector<4x16x1xf32>
    %103 = tpu.reciprocal %102 {approx = true} : vector<4x16x1xf32> -> vector<4x16x1xf32>
    %104 = vector.broadcast %103 : vector<4x16x1xf32> to vector<4x16x16xf32>
    %105 = arith.mulf %100, %104 : vector<4x16x16xf32>
    "tpu.trace_start"() <{level = 10 : i32, message = "hqk,hke->hqe"}> : () -> ()
    %cst_33 = arith.constant dense<0.000000e+00> : vector<4x16x8xf32>
    %106 = tpu.matmul %105, %91, %cst_33 {dimension_numbers = #tpu.dot_dimension_numbers<[2], [1], [1], [2], [0, 0, 0, 1, 1, 2], [0], [0]>} : vector<4x16x16xf32>, vector<4x16x8xf32>, vector<4x16x8xf32> -> vector<4x16x8xf32>
    "tpu.trace_stop"() : () -> ()
    %107 = vector.extract_strided_slice %106 {offsets = [0, 0, 0], sizes = [1, 16, 8], strides = [1, 1, 1]} : vector<4x16x8xf32> to vector<1x16x8xf32>
    %108 = vector.shape_cast %107 : vector<1x16x8xf32> to vector<16x8xf32>
    %109 = vector.extract_strided_slice %106 {offsets = [1, 0, 0], sizes = [1, 16, 8], strides = [1, 1, 1]} : vector<4x16x8xf32> to vector<1x16x8xf32>
    %110 = vector.shape_cast %109 : vector<1x16x8xf32> to vector<16x8xf32>
    %111 = vector.extract_strided_slice %106 {offsets = [2, 0, 0], sizes = [1, 16, 8], strides = [1, 1, 1]} : vector<4x16x8xf32> to vector<1x16x8xf32>
    %112 = vector.shape_cast %111 : vector<1x16x8xf32> to vector<16x8xf32>
    %113 = vector.extract_strided_slice %106 {offsets = [3, 0, 0], sizes = [1, 16, 8], strides = [1, 1, 1]} : vector<4x16x8xf32> to vector<1x16x8xf32>
    %114 = vector.shape_cast %113 : vector<1x16x8xf32> to vector<16x8xf32>
    %115 = tpu.concatenate %108, %110, %112, %114 in 1 : vector<16x8xf32>, vector<16x8xf32>, vector<16x8xf32>, vector<16x8xf32> -> vector<16x32xf32>
    %c0_34 = arith.constant 0 : index
    %c0_35 = arith.constant 0 : index
    %c0_36 = arith.constant 0 : index
    %116 = vector.load %arg11[%c0_34, %c0_35, %c0_36] : memref<2x32x32xf32, #tpu.memory_space<vmem>>, vector<1x32x32xf32>
    %117 = vector.shape_cast %116 : vector<1x32x32xf32> to vector<32x32xf32>
    %cst_37 = arith.constant dense<0.000000e+00> : vector<16x32xf32>
    %118 = tpu.matmul %115, %117, %cst_37 {dimension_numbers = #tpu.dot_dimension_numbers<[1], [0], [0], [1], [0, 0, 1, 1], [], []>} : vector<16x32xf32>, vector<32x32xf32>, vector<16x32xf32> -> vector<16x32xf32>
    %119 = arith.addf %34, %118 : vector<16x32xf32>
    %c0_38 = arith.constant 0 : index
    %c0_39 = arith.constant 0 : index
    %120 = vector.load %arg12[%c0_38, %c0_39] : memref<2x32xf32, #tpu.memory_space<vmem>>, vector<1x32xf32>
    %121 = vector.broadcast %120 : vector<1x32xf32> to vector<16x32xf32>
    %122 = arith.addf %119, %121 : vector<16x32xf32>
    %c0_40 = arith.constant 0 : index
    %c0_41 = arith.constant 0 : index
    %123 = vector.load %arg13[%c0_40, %c0_41] : memref<2x32xf32, #tpu.memory_space<vmem>>, vector<1x32xf32>
    %c0_42 = arith.constant 0 : index
    %c0_43 = arith.constant 0 : index
    %124 = vector.load %arg14[%c0_42, %c0_43] : memref<2x32xf32, #tpu.memory_space<vmem>>, vector<1x32xf32>
    %cst_44 = arith.constant dense<0.000000e+00> : vector<16xf32>
    %125 = vector.multi_reduction <add>, %122, %cst_44 [1] : vector<16x32xf32> to vector<16xf32>
    %126 = vector.shape_cast %125 : vector<16xf32> to vector<16x1xf32>
    %127 = arith.mulf %122, %122 : vector<16x32xf32>
    %cst_45 = arith.constant dense<0.000000e+00> : vector<16xf32>
    %128 = vector.multi_reduction <add>, %127, %cst_45 [1] : vector<16x32xf32> to vector<16xf32>
    %129 = vector.shape_cast %128 : vector<16xf32> to vector<16x1xf32>
    %cst_46 = arith.constant 3.125000e-02 : f32
    %130 = vector.broadcast %cst_46 : f32 to vector<16x1xf32>
    %131 = arith.mulf %126, %130 : vector<16x1xf32>
    %cst_47 = arith.constant 3.125000e-02 : f32
    %132 = vector.broadcast %cst_47 : f32 to vector<16x1xf32>
    %133 = arith.mulf %129, %132 : vector<16x1xf32>
    %134 = arith.mulf %131, %131 : vector<16x1xf32>
    %135 = arith.subf %133, %134 : vector<16x1xf32>
    %136 = vector.broadcast %131 : vector<16x1xf32> to vector<16x32xf32>
    %137 = arith.subf %122, %136 : vector<16x32xf32>
    %cst_48 = arith.constant 9.99999974E-6 : f32
    %138 = vector.broadcast %cst_48 : f32 to vector<16x1xf32>
    %139 = arith.addf %135, %138 : vector<16x1xf32>
    %140 = math.rsqrt %139 : vector<16x1xf32>
    %141 = vector.broadcast %140 : vector<16x1xf32> to vector<16x32xf32>
    %142 = arith.mulf %137, %141 : vector<16x32xf32>
    %143 = vector.broadcast %123 : vector<1x32xf32> to vector<16x32xf32>
    %144 = arith.mulf %142, %143 : vector<16x32xf32>
    %145 = vector.broadcast %124 : vector<1x32xf32> to vector<16x32xf32>
    %146 = arith.addf %144, %145 : vector<16x32xf32>
    %c0_49 = arith.constant 0 : index
    %c0_50 = arith.constant 0 : index
    %c0_51 = arith.constant 0 : index
    %147 = vector.load %arg15[%c0_49, %c0_50, %c0_51] : memref<2x32x128xf32, #tpu.memory_space<vmem>>, vector<1x32x128xf32>
    %148 = vector.shape_cast %147 : vector<1x32x128xf32> to vector<32x128xf32>
    %cst_52 = arith.constant dense<0.000000e+00> : vector<16x128xf32>
    %149 = tpu.matmul %146, %148, %cst_52 {dimension_numbers = #tpu.dot_dimension_numbers<[1], [0], [0], [1], [0, 0, 1, 1], [], []>} : vector<16x32xf32>, vector<32x128xf32>, vector<16x128xf32> -> vector<16x128xf32>
    %c0_53 = arith.constant 0 : index
    %c0_54 = arith.constant 0 : index
    %150 = vector.load %arg16[%c0_53, %c0_54] : memref<2x128xf32, #tpu.memory_space<vmem>>, vector<1x128xf32>
    %151 = vector.broadcast %150 : vector<1x128xf32> to vector<16x128xf32>
    %152 = arith.addf %149, %151 : vector<16x128xf32>
    %cst_55 = arith.constant 0.000000e+00 : f32
    %153 = vector.broadcast %cst_55 : f32 to vector<16x128xf32>
    %154 = arith.maximumf %152, %153 : vector<16x128xf32>
    %c0_56 = arith.constant 0 : index
    %c0_57 = arith.constant 0 : index
    %c0_58 = arith.constant 0 : index
    %155 = vector.load %arg17[%c0_56, %c0_57, %c0_58] : memref<2x128x32xf32, #tpu.memory_space<vmem>>, vector<1x128x32xf32>
    %156 = vector.shape_cast %155 : vector<1x128x32xf32> to vector<128x32xf32>
    %cst_59 = arith.constant dense<0.000000e+00> : vector<16x32xf32>
    %157 = tpu.matmul %154, %156, %cst_59 {dimension_numbers = #tpu.dot_dimension_numbers<[1], [0], [0], [1], [0, 0, 1, 1], [], []>} : vector<16x128xf32>, vector<128x32xf32>, vector<16x32xf32> -> vector<16x32xf32>
    %c0_60 = arith.constant 0 : index
    %c0_61 = arith.constant 0 : index
    %158 = vector.load %arg18[%c0_60, %c0_61] : memref<2x32xf32, #tpu.memory_space<vmem>>, vector<1x32xf32>
    %159 = vector.broadcast %158 : vector<1x32xf32> to vector<16x32xf32>
    %160 = arith.addf %157, %159 : vector<16x32xf32>
    %161 = arith.addf %122, %160 : vector<16x32xf32>
    %c1 = arith.constant 1 : index
    %c0_62 = arith.constant 0 : index
    %162 = vector.load %arg7[%c1, %c0_62] : memref<2x32xf32, #tpu.memory_space<vmem>>, vector<1x32xf32>
    %c1_63 = arith.constant 1 : index
    %c0_64 = arith.constant 0 : index
    %163 = vector.load %arg8[%c1_63, %c0_64] : memref<2x32xf32, #tpu.memory_space<vmem>>, vector<1x32xf32>
    %cst_65 = arith.constant dense<0.000000e+00> : vector<16xf32>
    %164 = vector.multi_reduction <add>, %161, %cst_65 [1] : vector<16x32xf32> to vector<16xf32>
    %165 = vector.shape_cast %164 : vector<16xf32> to vector<16x1xf32>
    %166 = arith.mulf %161, %161 : vector<16x32xf32>
    %cst_66 = arith.constant dense<0.000000e+00> : vector<16xf32>
    %167 = vector.multi_reduction <add>, %166, %cst_66 [1] : vector<16x32xf32> to vector<16xf32>
    %168 = vector.shape_cast %167 : vector<16xf32> to vector<16x1xf32>
    %cst_67 = arith.constant 3.125000e-02 : f32
    %169 = vector.broadcast %cst_67 : f32 to vector<16x1xf32>
    %170 = arith.mulf %165, %169 : vector<16x1xf32>
    %cst_68 = arith.constant 3.125000e-02 : f32
    %171 = vector.broadcast %cst_68 : f32 to vector<16x1xf32>
    %172 = arith.mulf %168, %171 : vector<16x1xf32>
    %173 = arith.mulf %170, %170 : vector<16x1xf32>
    %174 = arith.subf %172, %173 : vector<16x1xf32>
    %175 = vector.broadcast %170 : vector<16x1xf32> to vector<16x32xf32>
    %176 = arith.subf %161, %175 : vector<16x32xf32>
    %cst_69 = arith.constant 9.99999974E-6 : f32
    %177 = vector.broadcast %cst_69 : f32 to vector<16x1xf32>
    %178 = arith.addf %174, %177 : vector<16x1xf32>
    %179 = math.rsqrt %178 : vector<16x1xf32>
    %180 = vector.broadcast %179 : vector<16x1xf32> to vector<16x32xf32>
    %181 = arith.mulf %176, %180 : vector<16x32xf32>
    %182 = vector.broadcast %162 : vector<1x32xf32> to vector<16x32xf32>
    %183 = arith.mulf %181, %182 : vector<16x32xf32>
    %184 = vector.broadcast %163 : vector<1x32xf32> to vector<16x32xf32>
    %185 = arith.addf %183, %184 : vector<16x32xf32>
    %c1_70 = arith.constant 1 : index
    %c0_71 = arith.constant 0 : index
    %c0_72 = arith.constant 0 : index
    %186 = vector.load %arg9[%c1_70, %c0_71, %c0_72] : memref<2x32x96xf32, #tpu.memory_space<vmem>>, vector<1x32x96xf32>
    %187 = vector.shape_cast %186 : vector<1x32x96xf32> to vector<32x96xf32>
    %cst_73 = arith.constant dense<0.000000e+00> : vector<16x96xf32>
    %188 = tpu.matmul %185, %187, %cst_73 {dimension_numbers = #tpu.dot_dimension_numbers<[1], [0], [0], [1], [0, 0, 1, 1], [], []>} : vector<16x32xf32>, vector<32x96xf32>, vector<16x96xf32> -> vector<16x96xf32>
    %c1_74 = arith.constant 1 : index
    %c0_75 = arith.constant 0 : index
    %189 = vector.load %arg10[%c1_74, %c0_75] : memref<2x96xf32, #tpu.memory_space<vmem>>, vector<1x96xf32>
    %190 = vector.broadcast %189 : vector<1x96xf32> to vector<16x96xf32>
    %191 = arith.addf %188, %190 : vector<16x96xf32>
    %192 = vector.extract_strided_slice %191 {offsets = [0, 0], sizes = [16, 8], strides = [1, 1]} : vector<16x96xf32> to vector<16x8xf32>
    %193 = vector.extract_strided_slice %191 {offsets = [0, 8], sizes = [16, 8], strides = [1, 1]} : vector<16x96xf32> to vector<16x8xf32>
    %194 = vector.extract_strided_slice %191 {offsets = [0, 16], sizes = [16, 8], strides = [1, 1]} : vector<16x96xf32> to vector<16x8xf32>
    %195 = vector.extract_strided_slice %191 {offsets = [0, 24], sizes = [16, 8], strides = [1, 1]} : vector<16x96xf32> to vector<16x8xf32>
    %196 = vector.shape_cast %192 : vector<16x8xf32> to vector<1x16x8xf32>
    %197 = vector.shape_cast %193 : vector<16x8xf32> to vector<1x16x8xf32>
    %198 = vector.shape_cast %194 : vector<16x8xf32> to vector<1x16x8xf32>
    %199 = vector.shape_cast %195 : vector<16x8xf32> to vector<1x16x8xf32>
    %200 = tpu.concatenate %196, %197, %198, %199 in 0 : vector<1x16x8xf32>, vector<1x16x8xf32>, vector<1x16x8xf32>, vector<1x16x8xf32> -> vector<4x16x8xf32>
    %201 = vector.extract_strided_slice %191 {offsets = [0, 32], sizes = [16, 8], strides = [1, 1]} : vector<16x96xf32> to vector<16x8xf32>
    %202 = vector.extract_strided_slice %191 {offsets = [0, 40], sizes = [16, 8], strides = [1, 1]} : vector<16x96xf32> to vector<16x8xf32>
    %203 = vector.extract_strided_slice %191 {offsets = [0, 48], sizes = [16, 8], strides = [1, 1]} : vector<16x96xf32> to vector<16x8xf32>
    %204 = vector.extract_strided_slice %191 {offsets = [0, 56], sizes = [16, 8], strides = [1, 1]} : vector<16x96xf32> to vector<16x8xf32>
    %205 = vector.shape_cast %201 : vector<16x8xf32> to vector<1x16x8xf32>
    %206 = vector.shape_cast %202 : vector<16x8xf32> to vector<1x16x8xf32>
    %207 = vector.shape_cast %203 : vector<16x8xf32> to vector<1x16x8xf32>
    %208 = vector.shape_cast %204 : vector<16x8xf32> to vector<1x16x8xf32>
    %209 = tpu.concatenate %205, %206, %207, %208 in 0 : vector<1x16x8xf32>, vector<1x16x8xf32>, vector<1x16x8xf32>, vector<1x16x8xf32> -> vector<4x16x8xf32>
    %210 = vector.extract_strided_slice %191 {offsets = [0, 64], sizes = [16, 8], strides = [1, 1]} : vector<16x96xf32> to vector<16x8xf32>
    %211 = vector.extract_strided_slice %191 {offsets = [0, 72], sizes = [16, 8], strides = [1, 1]} : vector<16x96xf32> to vector<16x8xf32>
    %212 = vector.extract_strided_slice %191 {offsets = [0, 80], sizes = [16, 8], strides = [1, 1]} : vector<16x96xf32> to vector<16x8xf32>
    %213 = vector.extract_strided_slice %191 {offsets = [0, 88], sizes = [16, 8], strides = [1, 1]} : vector<16x96xf32> to vector<16x8xf32>
    %214 = vector.shape_cast %210 : vector<16x8xf32> to vector<1x16x8xf32>
    %215 = vector.shape_cast %211 : vector<16x8xf32> to vector<1x16x8xf32>
    %216 = vector.shape_cast %212 : vector<16x8xf32> to vector<1x16x8xf32>
    %217 = vector.shape_cast %213 : vector<16x8xf32> to vector<1x16x8xf32>
    %218 = tpu.concatenate %214, %215, %216, %217 in 0 : vector<1x16x8xf32>, vector<1x16x8xf32>, vector<1x16x8xf32>, vector<1x16x8xf32> -> vector<4x16x8xf32>
    "tpu.trace_start"() <{level = 10 : i32, message = "hqe,hke->hqk"}> : () -> ()
    %cst_76 = arith.constant dense<0.000000e+00> : vector<4x16x16xf32>
    %219 = tpu.matmul %200, %209, %cst_76 {dimension_numbers = #tpu.dot_dimension_numbers<[2], [2], [1], [1], [0, 0, 0, 1, 1, 1], [0], [0]>} : vector<4x16x8xf32>, vector<4x16x8xf32>, vector<4x16x16xf32> -> vector<4x16x16xf32>
    "tpu.trace_stop"() : () -> ()
    %220 = vector.shape_cast %10 : vector<16x16xf32> to vector<1x16x16xf32>
    %221 = vector.broadcast %220 : vector<1x16x16xf32> to vector<4x16x16xf32>
    %222 = arith.addf %219, %221 : vector<4x16x16xf32>
    %cst_77 = arith.constant dense<0xFF800000> : vector<4x16xf32>
    %223 = vector.multi_reduction <maximumf>, %222, %cst_77 [2] : vector<4x16x16xf32> to vector<4x16xf32>
    %224 = vector.shape_cast %223 : vector<4x16xf32> to vector<4x16x1xf32>
    %225 = vector.broadcast %224 : vector<4x16x1xf32> to vector<4x16x16xf32>
    %226 = arith.subf %222, %225 : vector<4x16x16xf32>
    %227 = math.exp %226 : vector<4x16x16xf32>
    %cst_78 = arith.constant dense<0.000000e+00> : vector<4x16xf32>
    %228 = vector.multi_reduction <add>, %227, %cst_78 [2] : vector<4x16x16xf32> to vector<4x16xf32>
    %229 = vector.shape_cast %228 : vector<4x16xf32> to vector<4x16x1xf32>
    %230 = tpu.reciprocal %229 {approx = true} : vector<4x16x1xf32> -> vector<4x16x1xf32>
    %231 = vector.broadcast %230 : vector<4x16x1xf32> to vector<4x16x16xf32>
    %232 = arith.mulf %227, %231 : vector<4x16x16xf32>
    "tpu.trace_start"() <{level = 10 : i32, message = "hqk,hke->hqe"}> : () -> ()
    %cst_79 = arith.constant dense<0.000000e+00> : vector<4x16x8xf32>
    %233 = tpu.matmul %232, %218, %cst_79 {dimension_numbers = #tpu.dot_dimension_numbers<[2], [1], [1], [2], [0, 0, 0, 1, 1, 2], [0], [0]>} : vector<4x16x16xf32>, vector<4x16x8xf32>, vector<4x16x8xf32> -> vector<4x16x8xf32>
    "tpu.trace_stop"() : () -> ()
    %234 = vector.extract_strided_slice %233 {offsets = [0, 0, 0], sizes = [1, 16, 8], strides = [1, 1, 1]} : vector<4x16x8xf32> to vector<1x16x8xf32>
    %235 = vector.shape_cast %234 : vector<1x16x8xf32> to vector<16x8xf32>
    %236 = vector.extract_strided_slice %233 {offsets = [1, 0, 0], sizes = [1, 16, 8], strides = [1, 1, 1]} : vector<4x16x8xf32> to vector<1x16x8xf32>
    %237 = vector.shape_cast %236 : vector<1x16x8xf32> to vector<16x8xf32>
    %238 = vector.extract_strided_slice %233 {offsets = [2, 0, 0], sizes = [1, 16, 8], strides = [1, 1, 1]} : vector<4x16x8xf32> to vector<1x16x8xf32>
    %239 = vector.shape_cast %238 : vector<1x16x8xf32> to vector<16x8xf32>
    %240 = vector.extract_strided_slice %233 {offsets = [3, 0, 0], sizes = [1, 16, 8], strides = [1, 1, 1]} : vector<4x16x8xf32> to vector<1x16x8xf32>
    %241 = vector.shape_cast %240 : vector<1x16x8xf32> to vector<16x8xf32>
    %242 = tpu.concatenate %235, %237, %239, %241 in 1 : vector<16x8xf32>, vector<16x8xf32>, vector<16x8xf32>, vector<16x8xf32> -> vector<16x32xf32>
    %c1_80 = arith.constant 1 : index
    %c0_81 = arith.constant 0 : index
    %c0_82 = arith.constant 0 : index
    %243 = vector.load %arg11[%c1_80, %c0_81, %c0_82] : memref<2x32x32xf32, #tpu.memory_space<vmem>>, vector<1x32x32xf32>
    %244 = vector.shape_cast %243 : vector<1x32x32xf32> to vector<32x32xf32>
    %cst_83 = arith.constant dense<0.000000e+00> : vector<16x32xf32>
    %245 = tpu.matmul %242, %244, %cst_83 {dimension_numbers = #tpu.dot_dimension_numbers<[1], [0], [0], [1], [0, 0, 1, 1], [], []>} : vector<16x32xf32>, vector<32x32xf32>, vector<16x32xf32> -> vector<16x32xf32>
    %246 = arith.addf %161, %245 : vector<16x32xf32>
    %c1_84 = arith.constant 1 : index
    %c0_85 = arith.constant 0 : index
    %247 = vector.load %arg12[%c1_84, %c0_85] : memref<2x32xf32, #tpu.memory_space<vmem>>, vector<1x32xf32>
    %248 = vector.broadcast %247 : vector<1x32xf32> to vector<16x32xf32>
    %249 = arith.addf %246, %248 : vector<16x32xf32>
    %c1_86 = arith.constant 1 : index
    %c0_87 = arith.constant 0 : index
    %250 = vector.load %arg13[%c1_86, %c0_87] : memref<2x32xf32, #tpu.memory_space<vmem>>, vector<1x32xf32>
    %c1_88 = arith.constant 1 : index
    %c0_89 = arith.constant 0 : index
    %251 = vector.load %arg14[%c1_88, %c0_89] : memref<2x32xf32, #tpu.memory_space<vmem>>, vector<1x32xf32>
    %cst_90 = arith.constant dense<0.000000e+00> : vector<16xf32>
    %252 = vector.multi_reduction <add>, %249, %cst_90 [1] : vector<16x32xf32> to vector<16xf32>
    %253 = vector.shape_cast %252 : vector<16xf32> to vector<16x1xf32>
    %254 = arith.mulf %249, %249 : vector<16x32xf32>
    %cst_91 = arith.constant dense<0.000000e+00> : vector<16xf32>
    %255 = vector.multi_reduction <add>, %254, %cst_91 [1] : vector<16x32xf32> to vector<16xf32>
    %256 = vector.shape_cast %255 : vector<16xf32> to vector<16x1xf32>
    %cst_92 = arith.constant 3.125000e-02 : f32
    %257 = vector.broadcast %cst_92 : f32 to vector<16x1xf32>
    %258 = arith.mulf %253, %257 : vector<16x1xf32>
    %cst_93 = arith.constant 3.125000e-02 : f32
    %259 = vector.broadcast %cst_93 : f32 to vector<16x1xf32>
    %260 = arith.mulf %256, %259 : vector<16x1xf32>
    %261 = arith.mulf %258, %258 : vector<16x1xf32>
    %262 = arith.subf %260, %261 : vector<16x1xf32>
    %263 = vector.broadcast %258 : vector<16x1xf32> to vector<16x32xf32>
    %264 = arith.subf %249, %263 : vector<16x32xf32>
    %cst_94 = arith.constant 9.99999974E-6 : f32
    %265 = vector.broadcast %cst_94 : f32 to vector<16x1xf32>
    %266 = arith.addf %262, %265 : vector<16x1xf32>
    %267 = math.rsqrt %266 : vector<16x1xf32>
    %268 = vector.broadcast %267 : vector<16x1xf32> to vector<16x32xf32>
    %269 = arith.mulf %264, %268 : vector<16x32xf32>
    %270 = vector.broadcast %250 : vector<1x32xf32> to vector<16x32xf32>
    %271 = arith.mulf %269, %270 : vector<16x32xf32>
    %272 = vector.broadcast %251 : vector<1x32xf32> to vector<16x32xf32>
    %273 = arith.addf %271, %272 : vector<16x32xf32>
    %c1_95 = arith.constant 1 : index
    %c0_96 = arith.constant 0 : index
    %c0_97 = arith.constant 0 : index
    %274 = vector.load %arg15[%c1_95, %c0_96, %c0_97] : memref<2x32x128xf32, #tpu.memory_space<vmem>>, vector<1x32x128xf32>
    %275 = vector.shape_cast %274 : vector<1x32x128xf32> to vector<32x128xf32>
    %cst_98 = arith.constant dense<0.000000e+00> : vector<16x128xf32>
    %276 = tpu.matmul %273, %275, %cst_98 {dimension_numbers = #tpu.dot_dimension_numbers<[1], [0], [0], [1], [0, 0, 1, 1], [], []>} : vector<16x32xf32>, vector<32x128xf32>, vector<16x128xf32> -> vector<16x128xf32>
    %c1_99 = arith.constant 1 : index
    %c0_100 = arith.constant 0 : index
    %277 = vector.load %arg16[%c1_99, %c0_100] : memref<2x128xf32, #tpu.memory_space<vmem>>, vector<1x128xf32>
    %278 = vector.broadcast %277 : vector<1x128xf32> to vector<16x128xf32>
    %279 = arith.addf %276, %278 : vector<16x128xf32>
    %cst_101 = arith.constant 0.000000e+00 : f32
    %280 = vector.broadcast %cst_101 : f32 to vector<16x128xf32>
    %281 = arith.maximumf %279, %280 : vector<16x128xf32>
    %c1_102 = arith.constant 1 : index
    %c0_103 = arith.constant 0 : index
    %c0_104 = arith.constant 0 : index
    %282 = vector.load %arg17[%c1_102, %c0_103, %c0_104] : memref<2x128x32xf32, #tpu.memory_space<vmem>>, vector<1x128x32xf32>
    %283 = vector.shape_cast %282 : vector<1x128x32xf32> to vector<128x32xf32>
    %cst_105 = arith.constant dense<0.000000e+00> : vector<16x32xf32>
    %284 = tpu.matmul %281, %283, %cst_105 {dimension_numbers = #tpu.dot_dimension_numbers<[1], [0], [0], [1], [0, 0, 1, 1], [], []>} : vector<16x128xf32>, vector<128x32xf32>, vector<16x32xf32> -> vector<16x32xf32>
    %c1_106 = arith.constant 1 : index
    %c0_107 = arith.constant 0 : index
    %285 = vector.load %arg18[%c1_106, %c0_107] : memref<2x32xf32, #tpu.memory_space<vmem>>, vector<1x32xf32>
    %286 = vector.broadcast %285 : vector<1x32xf32> to vector<16x32xf32>
    %287 = arith.addf %284, %286 : vector<16x32xf32>
    %288 = arith.addf %249, %287 : vector<16x32xf32>
    %c0_108 = arith.constant 0 : index
    %c0_109 = arith.constant 0 : index
    %289 = vector.load %arg19[%c0_108, %c0_109] : memref<2x32xf32, #tpu.memory_space<vmem>>, vector<2x32xf32>
    %290 = vector.extract_strided_slice %289 {offsets = [0, 0], sizes = [1, 32], strides = [1, 1]} : vector<2x32xf32> to vector<1x32xf32>
    %291 = vector.broadcast %290 : vector<1x32xf32> to vector<16x32xf32>
    %292 = arith.mulf %288, %291 : vector<16x32xf32>
    %cst_110 = arith.constant dense<0.000000e+00> : vector<16xf32>
    %293 = vector.multi_reduction <add>, %292, %cst_110 [1] : vector<16x32xf32> to vector<16xf32>
    %294 = vector.shape_cast %293 : vector<16xf32> to vector<16x1xf32>
    %c0_111 = arith.constant 0 : index
    %c0_112 = arith.constant 0 : index
    %295 = vector.load %arg20[%c0_111, %c0_112] : memref<2x1xf32, #tpu.memory_space<vmem>>, vector<1x1xf32>
    %296 = vector.broadcast %295 : vector<1x1xf32> to vector<16x1xf32>
    %297 = arith.addf %294, %296 : vector<16x1xf32>
    %298 = vector.extract_strided_slice %289 {offsets = [1, 0], sizes = [1, 32], strides = [1, 1]} : vector<2x32xf32> to vector<1x32xf32>
    %299 = vector.broadcast %298 : vector<1x32xf32> to vector<16x32xf32>
    %300 = arith.mulf %288, %299 : vector<16x32xf32>
    %cst_113 = arith.constant dense<0.000000e+00> : vector<16xf32>
    %301 = vector.multi_reduction <add>, %300, %cst_113 [1] : vector<16x32xf32> to vector<16xf32>
    %302 = vector.shape_cast %301 : vector<16xf32> to vector<16x1xf32>
    %c1_114 = arith.constant 1 : index
    %c0_115 = arith.constant 0 : index
    %303 = vector.load %arg20[%c1_114, %c0_115] : memref<2x1xf32, #tpu.memory_space<vmem>>, vector<1x1xf32>
    %304 = vector.broadcast %303 : vector<1x1xf32> to vector<16x1xf32>
    %305 = arith.addf %302, %304 : vector<16x1xf32>
    %cst_116 = arith.constant 0.000000e+00 : f32
    %306 = vector.broadcast %cst_116 : f32 to vector<16x1xf32>
    %307 = arith.maximumf %305, %306 : vector<16x1xf32>
    %308 = math.absf %305 : vector<16x1xf32>
    %cst_117 = arith.constant 0.000000e+00 : f32
    %309 = vector.broadcast %cst_117 : f32 to vector<16x1xf32>
    %310 = arith.subf %309, %308 : vector<16x1xf32>
    %311 = math.exp %310 : vector<16x1xf32>
    %312 = math.log1p %311 : vector<16x1xf32>
    %313 = arith.addf %307, %312 : vector<16x1xf32>
    %cst_118 = arith.constant 1.000000e+00 : f32
    %314 = vector.broadcast %cst_118 : f32 to vector<16x1xf32>
    %315 = arith.subf %314, %1 : vector<16x1xf32>
    %316 = arith.mulf %313, %0 : vector<16x1xf32>
    %317 = arith.mulf %315, %297 : vector<16x1xf32>
    %318 = arith.addf %316, %317 : vector<16x1xf32>
    %319 = arith.addf %313, %315 : vector<16x1xf32>
    %320 = tpu.reciprocal %319 {approx = true} : vector<16x1xf32> -> vector<16x1xf32>
    %321 = arith.mulf %318, %320 : vector<16x1xf32>
    %c0_119 = arith.constant 0 : index
    %c0_120 = arith.constant 0 : index
    %322 = vector.load %arg21[%c0_119, %c0_120] : memref<16x1xf32, #tpu.memory_space<vmem>>, vector<16x1xf32>
    tpu.vector_store %arg21[%c0_119, %c0_120], %321 {strides = array<i32>} : memref<16x1xf32, #tpu.memory_space<vmem>>, vector<16x1xf32>,
    return
  }
}

</mosaic_0001>

<llo_original>
// kernel: tpu_custom_call.1
$region0: #{tpu_custom_call.1}
  #allocation0 [shape = 'u32[]', space=smem, size = 0x4, offset = 0x4, fixed_abs, tag = 'smem constant byte address 0x4 - core index']
  #allocation1 [shape = 'u32[144,128]{1,0:T(1,128)}', space=vmem, size = 0x12000, scoped, tag = 'internal scratch']
  %s0 = inlined_call_operand.vmem [shape: f32[16,1], index: 0, kind: input, shape index: {}]
  %s1 = inlined_call_operand.vmem [shape: f32[16,1], index: 1, kind: input, shape index: {}]
  %s2 = inlined_call_operand.vmem [shape: s32[16,1], index: 2, kind: input, shape index: {}]
  %s3 = inlined_call_operand.vmem [shape: s32[1,16], index: 3, kind: input, shape index: {}]
  %s4 = inlined_call_operand.vmem [shape: f32[3,32], index: 4, kind: input, shape index: {}]
  %s5 = inlined_call_operand.vmem [shape: f32[1,32], index: 5, kind: input, shape index: {}]
  %s6 = inlined_call_operand.vmem [shape: f32[8,32], index: 6, kind: input, shape index: {}]
  %s7 = inlined_call_operand.vmem [shape: f32[2,32], index: 7, kind: input, shape index: {}]
  %s8 = inlined_call_operand.vmem [shape: f32[2,32], index: 8, kind: input, shape index: {}]
  %s9 = inlined_call_operand.vmem [shape: f32[2,32,96], index: 9, kind: input, shape index: {}]
  %s10 = inlined_call_operand.vmem [shape: f32[2,96], index: 10, kind: input, shape index: {}]
  %s11 = inlined_call_operand.vmem [shape: f32[2,32,32], index: 11, kind: input, shape index: {}]
  %s12 = inlined_call_operand.vmem [shape: f32[2,32], index: 12, kind: input, shape index: {}]
  %s13 = inlined_call_operand.vmem [shape: f32[2,32], index: 13, kind: input, shape index: {}]
  %s14 = inlined_call_operand.vmem [shape: f32[2,32], index: 14, kind: input, shape index: {}]
  %s15 = inlined_call_operand.vmem [shape: f32[2,32,128], index: 15, kind: input, shape index: {}]
  %s16 = inlined_call_operand.vmem [shape: f32[2,128], index: 16, kind: input, shape index: {}]
  %s17 = inlined_call_operand.vmem [shape: f32[2,128,32], index: 17, kind: input, shape index: {}]
  %s18 = inlined_call_operand.vmem [shape: f32[2,32], index: 18, kind: input, shape index: {}]
  %s19 = inlined_call_operand.vmem [shape: f32[2,32], index: 19, kind: input, shape index: {}]
  %s20 = inlined_call_operand.vmem [shape: f32[2,1], index: 20, kind: input, shape index: {}]
  %s21 = inlined_call_operand.vmem [shape: f32[16,1], index: 21, kind: output, shape index: {}]
  %s22 = sld [smem:[#allocation0]]
  $region94: #{tpu_custom_call.1} parent=0
    _
  %s24 = ssub.s32 1, %s22
  %s25 = scalar_select 0, %s24, %s22
  // Predicated region
  $region2: #{tpu_custom_call.1} parent=0 // pred_check
    _
  $region3: #{tpu_custom_call.1} parent=0 // pred_check_branch
    %27 = sbr.rel (0) target = $region5
  $region4: #{tpu_custom_call.1} parent=0 // pred_region
    _
  $region5: #{tpu_custom_call.1} parent=0 // pred_fallthru
    _
  // Predicated region
  $region6: #{tpu_custom_call.1} parent=0 // pred_check
    _
  $region7: #{tpu_custom_call.1} parent=0 // pred_check_branch
    %29 = sbr.rel (0) target = $region9
  $region8: #{tpu_custom_call.1} parent=0 // pred_region
    _
  $region9: #{tpu_custom_call.1} parent=0 // pred_fallthru
    _
  // Predicated region
  $region10: #{tpu_custom_call.1} parent=0 // pred_check
    _
  $region11: #{tpu_custom_call.1} parent=0 // pred_check_branch
    %31 = sbr.rel (0) target = $region13
  $region12: #{tpu_custom_call.1} parent=0 // pred_region
    _
  $region13: #{tpu_custom_call.1} parent=0 // pred_fallthru
    _
  // Predicated region
  $region14: #{tpu_custom_call.1} parent=0 // pred_check
    _
  $region15: #{tpu_custom_call.1} parent=0 // pred_check_branch
    %33 = sbr.rel (0) target = $region17
  $region16: #{tpu_custom_call.1} parent=0 // pred_region
    _
  $region17: #{tpu_custom_call.1} parent=0 // pred_fallthru
    _
  // Predicated region
  $region18: #{tpu_custom_call.1} parent=0 // pred_check
    _
  $region19: #{tpu_custom_call.1} parent=0 // pred_check_branch
    %35 = sbr.rel (0) target = $region21
  $region20: #{tpu_custom_call.1} parent=0 // pred_region
    _
  $region21: #{tpu_custom_call.1} parent=0 // pred_fallthru
    _
  // Predicated region
  $region22: #{tpu_custom_call.1} parent=0 // pred_check
    _
  $region23: #{tpu_custom_call.1} parent=0 // pred_check_branch
    %37 = sbr.rel (0) target = $region25
  $region24: #{tpu_custom_call.1} parent=0 // pred_region
    _
  $region25: #{tpu_custom_call.1} parent=0 // pred_fallthru
    _
  // Predicated region
  $region26: #{tpu_custom_call.1} parent=0 // pred_check
    _
  $region27: #{tpu_custom_call.1} parent=0 // pred_check_branch
    %39 = sbr.rel (0) target = $region29
  $region28: #{tpu_custom_call.1} parent=0 // pred_region
    _
  $region29: #{tpu_custom_call.1} parent=0 // pred_fallthru
    _
  // Predicated region
  $region30: #{tpu_custom_call.1} parent=0 // pred_check
    _
  $region31: #{tpu_custom_call.1} parent=0 // pred_check_branch
    %41 = sbr.rel (0) target = $region33
  $region32: #{tpu_custom_call.1} parent=0 // pred_region
    _
  $region33: #{tpu_custom_call.1} parent=0 // pred_fallthru
    _
  // Predicated region
  $region34: #{tpu_custom_call.1} parent=0 // pred_check
    _
  $region35: #{tpu_custom_call.1} parent=0 // pred_check_branch
    %43 = sbr.rel (0) target = $region37
  $region36: #{tpu_custom_call.1} parent=0 // pred_region
    _
  $region37: #{tpu_custom_call.1} parent=0 // pred_fallthru
    _
  // Predicated region
  $region38: #{tpu_custom_call.1} parent=0 // pred_check
    _
  $region39: #{tpu_custom_call.1} parent=0 // pred_check_branch
    %45 = sbr.rel (0) target = $region41
  $region40: #{tpu_custom_call.1} parent=0 // pred_region
    _
  $region41: #{tpu_custom_call.1} parent=0 // pred_fallthru
    _
  // Predicated region
  $region42: #{tpu_custom_call.1} parent=0 // pred_check
    _
  $region43: #{tpu_custom_call.1} parent=0 // pred_check_branch
    %47 = sbr.rel (0) target = $region45
  $region44: #{tpu_custom_call.1} parent=0 // pred_region
    _
  $region45: #{tpu_custom_call.1} parent=0 // pred_fallthru
    _
  // Predicated region
  $region46: #{tpu_custom_call.1} parent=0 // pred_check
    _
  $region47: #{tpu_custom_call.1} parent=0 // pred_check_branch
    %49 = sbr.rel (0) target = $region49
  $region48: #{tpu_custom_call.1} parent=0 // pred_region
    _
  $region49: #{tpu_custom_call.1} parent=0 // pred_fallthru
    _
  // Predicated region
  $region50: #{tpu_custom_call.1} parent=0 // pred_check
    _
  $region51: #{tpu_custom_call.1} parent=0 // pred_check_branch
    %51 = sbr.rel (0) target = $region53
  $region52: #{tpu_custom_call.1} parent=0 // pred_region
    _
  $region53: #{tpu_custom_call.1} parent=0 // pred_fallthru
    _
  // Predicated region
  $region54: #{tpu_custom_call.1} parent=0 // pred_check
    _
  $region55: #{tpu_custom_call.1} parent=0 // pred_check_branch
    %53 = sbr.rel (0) target = $region57
  $region56: #{tpu_custom_call.1} parent=0 // pred_region
    _
  $region57: #{tpu_custom_call.1} parent=0 // pred_fallthru
    _
  // Predicated region
  $region58: #{tpu_custom_call.1} parent=0 // pred_check
    _
  $region59: #{tpu_custom_call.1} parent=0 // pred_check_branch
    %55 = sbr.rel (0) target = $region61
  $region60: #{tpu_custom_call.1} parent=0 // pred_region
    _
  $region61: #{tpu_custom_call.1} parent=0 // pred_fallthru
    _
  // Predicated region
  $region62: #{tpu_custom_call.1} parent=0 // pred_check
    _
  $region63: #{tpu_custom_call.1} parent=0 // pred_check_branch
    %57 = sbr.rel (0) target = $region65
  $region64: #{tpu_custom_call.1} parent=0 // pred_region
    _
  $region65: #{tpu_custom_call.1} parent=0 // pred_fallthru
    _
  // Predicated region
  $region66: #{tpu_custom_call.1} parent=0 // pred_check
    _
  $region67: #{tpu_custom_call.1} parent=0 // pred_check_branch
    %59 = sbr.rel (0) target = $region69
  $region68: #{tpu_custom_call.1} parent=0 // pred_region
    _
  $region69: #{tpu_custom_call.1} parent=0 // pred_fallthru
    _
  // Predicated region
  $region70: #{tpu_custom_call.1} parent=0 // pred_check
    _
  $region71: #{tpu_custom_call.1} parent=0 // pred_check_branch
    %61 = sbr.rel (0) target = $region73
  $region72: #{tpu_custom_call.1} parent=0 // pred_region
    _
  $region73: #{tpu_custom_call.1} parent=0 // pred_fallthru
    _
  // Predicated region
  $region74: #{tpu_custom_call.1} parent=0 // pred_check
    _
  $region75: #{tpu_custom_call.1} parent=0 // pred_check_branch
    %63 = sbr.rel (0) target = $region77
  $region76: #{tpu_custom_call.1} parent=0 // pred_region
    _
  $region77: #{tpu_custom_call.1} parent=0 // pred_fallthru
    _
  // Predicated region
  $region78: #{tpu_custom_call.1} parent=0 // pred_check
    _
  $region79: #{tpu_custom_call.1} parent=0 // pred_check_branch
    %65 = sbr.rel (0) target = $region81
  $region80: #{tpu_custom_call.1} parent=0 // pred_region
    _
  $region81: #{tpu_custom_call.1} parent=0 // pred_fallthru
    _
  // Predicated region
  $region82: #{tpu_custom_call.1} parent=0 // pred_check
    _
  $region83: #{tpu_custom_call.1} parent=0 // pred_check_branch
    %67 = sbr.rel (0) target = $region85
  $region84: #{tpu_custom_call.1} parent=0 // pred_region
    _
  $region85: #{tpu_custom_call.1} parent=0 // pred_fallthru
    _
  %v68 = vld [vmem:[%s0] sm:$0xff]
  %v69 = vld [vmem:[%s0 + $0x8] sm:$0xff]
  %v70 = vld [vmem:[%s1] sm:$0xff]
  %v71 = vld [vmem:[%s1 + $0x8] sm:$0xff]
  %v72 = vld [vmem:[%s4] sm:$0x7]
  %v73 = vld [vmem:[%s2] sm:$0xff]
  %v74 = vld [vmem:[%s2 + $0x8] sm:$0xff]
  %v75 = vld [vmem:[%s3] sm:$0x1]
  %76 = vset.pattern.permute.xlu0 0
  %77 = vperm.xlu0 %76, %v73
  %v78 = vpop.permute.xlu0 %77
  %79 = vset.pattern.permute.xlu0 0
  %80 = vperm.xlu0 %79, %v74
  %v81 = vpop.permute.xlu0 %80
  %v82 = vlaneseq
  %v83 = vshrl.u32 %v82, 7
  %v84 = vsub.s32 0, %v83
  %v85 = vrot.slane %v75, %v84
  %vm86 = vcmp.eq.s32.totalorder %v78, %v85
  %vm87 = vcmp.eq.s32.totalorder %v81, %v85
  %v88 = vsel %vm86, 0.0, -1e+30
  %v89 = vsel %vm87, 0.0, -1e+30
  %v90 = vld [vmem:[%s6] sm:$0xff]
  %92 = vset.pattern.permute.xlu0 0
  %93 = vperm.xlu0 %92, %v68
  %v94 = vpop.permute.xlu0 %93
  %97 = vset.pattern.permute.xlu0 0
  %98 = vperm.xlu0 %97, %v69
  %v99 = vpop.permute.xlu0 %98
  %v101 = vlaneseq
  %v102 = vshrl.u32 %v101, 7
  %v103 = vsub.s32 0, %v102
  %v104 = vrot.slane %v72, %v103
  %v105 = vmul.f32 %v94, %v104
  %v106 = vmul.f32 %v99, %v104
  %v107 = vrsqrt.pop %v70
  %v108 = vmul.f32 %v70, %v107
  %vm109 = vcmp.eq.f32.partialorder %v70, inf
  %v110 = vsel %vm109, %v70, %v108
  %vm111 = vcmp.eq.f32.partialorder %v70, 0.0
  %v112 = vand.u32 %v70, 2147483648
  %v113 = vsel %vm111, %v112, %v110
  %v114 = vrsqrt.pop %v71
  %v115 = vmul.f32 %v71, %v114
  %vm116 = vcmp.eq.f32.partialorder %v71, inf
  %v117 = vsel %vm116, %v71, %v115
  %vm118 = vcmp.eq.f32.partialorder %v71, 0.0
  %v119 = vand.u32 %v71, 2147483648
  %v120 = vsel %vm118, %v119, %v117
  %122 = vset.pattern.permute.xlu0 0
  %123 = vperm.xlu0 %122, %v113
  %v124 = vpop.permute.xlu0 %123
  %127 = vset.pattern.permute.xlu0 0
  %128 = vperm.xlu0 %127, %v120
  %v129 = vpop.permute.xlu0 %128
  %v131 = vlaneseq
  %v132 = vshrl.u32 %v131, 7
  %v133 = vsub.s32 1, %v132
  %v134 = vrot.slane %v72, %v133
  %v135 = vmul.f32 %v124, %v134
  %v136 = vmul.f32 %v129, %v134
  %v137 = vadd.f32 %v105, %v135
  %v138 = vadd.f32 %v106, %v136
  %v139 = vsub.f32 1.0, %v70
  %v140 = vsub.f32 1.0, %v71
  %v141 = vrsqrt.pop %v139
  %v142 = vmul.f32 %v139, %v141
  %vm143 = vcmp.eq.f32.partialorder %v139, inf
  %v144 = vsel %vm143, %v139, %v142
  %vm145 = vcmp.eq.f32.partialorder %v139, 0.0
  %v146 = vand.u32 %v139, 2147483648
  %v147 = vsel %vm145, %v146, %v144
  %v148 = vrsqrt.pop %v140
  %v149 = vmul.f32 %v140, %v148
  %vm150 = vcmp.eq.f32.partialorder %v140, inf
  %v151 = vsel %vm150, %v140, %v149
  %vm152 = vcmp.eq.f32.partialorder %v140, 0.0
  %v153 = vand.u32 %v140, 2147483648
  %v154 = vsel %vm152, %v153, %v151
  %156 = vset.pattern.permute.xlu0 0
  %157 = vperm.xlu0 %156, %v147
  %v158 = vpop.permute.xlu0 %157
  %161 = vset.pattern.permute.xlu0 0
  %162 = vperm.xlu0 %161, %v154
  %v163 = vpop.permute.xlu0 %162
  %v165 = vlaneseq
  %v166 = vshrl.u32 %v165, 7
  %v167 = vsub.s32 2, %v166
  %v168 = vrot.slane %v72, %v167
  %v169 = vmul.f32 %v158, %v168
  %v170 = vmul.f32 %v163, %v168
  %v171 = vadd.f32 %v137, %v169
  %v172 = vadd.f32 %v138, %v170
  %v173 = vld [vmem:[%s5] sm:$0x1]
  %v175 = vlaneseq
  %v176 = vshrl.u32 %v175, 7
  %v177 = vsub.s32 0, %v176
  %v178 = vrot.slane %v173, %v177
  %v180 = vadd.f32 %v171, %v178
  %v181 = vadd.f32 %v172, %v178
  %v182 = vadd.f32 %v180, %v90
  %v183 = vadd.f32 %v181, %v90
  %v184 = vld [vmem:[%s7] sm:$0x1]
  %v185 = vld [vmem:[%s8] sm:$0x1]
  %vm186 = vcmask 261120
  %v187 = vsel %vm186, %v182, 0.0
  %188 = vadd.xlane.f32.xlu0 %v187
  %v189 = vpop.xlane.xlu0 %188
  %v190 = vsel %vm186, %v183, 0.0
  %191 = vadd.xlane.f32.xlu0 %v190
  %v192 = vpop.xlane.xlu0 %191
  %v193 = vmul.f32 %v182, %v182
  %v194 = vmul.f32 %v183, %v183
  %v195 = vsel %vm186, %v193, 0.0
  %196 = vadd.xlane.f32.xlu0 %v195
  %v197 = vpop.xlane.xlu0 %196
  %v198 = vsel %vm186, %v194, 0.0
  %199 = vadd.xlane.f32.xlu0 %v198
  %v200 = vpop.xlane.xlu0 %199
  %v201 = vmul.f32 %v189, 0.03125
  %v202 = vmul.f32 %v192, 0.03125
  %v203 = vmul.f32 %v197, 0.03125
  %v204 = vmul.f32 %v200, 0.03125
  %v205 = vmul.f32 %v201, %v201
  %v206 = vmul.f32 %v202, %v202
  %v207 = vsub.f32 %v203, %v205
  %v208 = vsub.f32 %v204, %v206
  %v209 = vsub.f32 %v182, %v201
  %v210 = vsub.f32 %v183, %v202
  %v211 = vadd.f32 %v207, 1e-05
  %v212 = vadd.f32 %v208, 1e-05
  %v213 = vrsqrt.pop %v211
  %v214 = vrsqrt.pop %v212
  %v215 = vmul.f32 %v209, %v213
  %v216 = vmul.f32 %v210, %v214
  %v217 = vlaneseq
  %v218 = vshrl.u32 %v217, 7
  %v219 = vsub.s32 0, %v218
  %v220 = vrot.slane %v184, %v219
  %v221 = vmul.f32 %v215, %v220
  %v222 = vmul.f32 %v216, %v220
  %v223 = vlaneseq
  %v224 = vshrl.u32 %v223, 7
  %v225 = vsub.s32 0, %v224
  %v226 = vrot.slane %v185, %v225
  %v227 = vadd.f32 %v221, %v226
  %v228 = vadd.f32 %v222, %v226
  %v229 = vld [vmem:[%s9] sm:$0xff]
  %v230 = vld [vmem:[%s9 + $0x8] sm:$0xff]
  %v231 = vld [vmem:[%s9 + $0x10] sm:$0xff]
  %v232 = vld [vmem:[%s9 + $0x18] sm:$0xff]
  %v233 = vld [vmem:[%s10] sm:$0x1]
  %v234 = vlaneseq
  %v235 = vshrl.u32 %v234, 7
  %v236 = vsub.s32 0, %v235
  %v237 = vrot.slane %v233, %v236
  %v239 = vsel %vm186, %v227, 0
  %v242 = vsel %vm186, %v228, 0
  %244 = vmatprep.subr.mxu0 0.0
  %245 = vmatpush1.msra.mxu0 %v229
  %246 = vmatprep.subr.mxu0 0.0
  %247 = vmatpush1.msra.mxu0 %v230
  %248 = vmatprep.subr.mxu0 0.0
  %249 = vmatpush1.msra.mxu0 %v231
  %250 = vmatprep.subr.mxu0 0.0
  %251 = vmatpush1.msra.mxu0 %v232
  %252 = vmatprep.subr.mxu0 0.0
  %253 = vmatpush1.msra.mxu0 0.0
  %254 = vmatprep.subr.mxu0 0.0
  %255 = vmatpush1.msra.mxu0 0.0
  %256 = vmatprep.subr.mxu0 0.0
  %257 = vmatpush1.msra.mxu0 0.0
  %258 = vmatprep.subr.mxu0 0.0
  %259 = vmatpush1.msra.mxu0 0.0
  %260 = vmatprep.subr.mxu0 0.0
  %261 = vmatpush1.msra.mxu0 0.0
  %262 = vmatprep.subr.mxu0 0.0
  %263 = vmatpush1.msra.mxu0 0.0
  %264 = vmatprep.subr.mxu0 0.0
  %265 = vmatpush1.msra.mxu0 0.0
  %266 = vmatprep.subr.mxu0 0.0
  %267 = vmatpush1.msra.mxu0 0.0
  %268 = vmatprep.subr.mxu0 0.0
  %269 = vmatpush1.msra.mxu0 0.0
  %270 = vmatprep.subr.mxu0 0.0
  %271 = vmatpush1.msra.mxu0 0.0
  %272 = vmatprep.subr.mxu0 0.0
  %273 = vmatpush1.msra.mxu0 0.0
  %274 = vmatprep.subr.mxu0 0.0
  %275 = vmatpush1.msra.mxu0 0.0
  %276 = vmatprep.subr.mxu0 0.0
  %277 = vmatpush1.msra.mxu0 0.0
  %278 = vmatprep.subr.mxu0 0.0
  %279 = vmatpush1.msra.mxu0 0.0
  %280 = vmatprep.subr.mxu0 0.0
  %281 = vmatpush1.msra.mxu0 0.0
  %282 = vmatprep.subr.mxu0 0.0
  %283 = vmatpush1.msra.mxu0 0.0
  %284 = vmatprep.subr.mxu0 0.0
  %285 = vmatpush1.msra.mxu0 0.0
  %286 = vmatprep.subr.mxu0 0.0
  %287 = vmatpush1.msra.mxu0 0.0
  %288 = vmatprep.subr.mxu0 0.0
  %289 = vmatpush1.msra.mxu0 0.0
  %290 = vmatprep.subr.mxu0 0.0
  %291 = vmatpush1.msra.mxu0 0.0
  %292 = vmatprep.subr.mxu0 0.0
  %293 = vmatpush1.msra.mxu0 0.0
  %294 = vmatprep.subr.mxu0 0.0
  %295 = vmatpush1.msra.mxu0 0.0
  %296 = vmatprep.subr.mxu0 0.0
  %297 = vmatpush1.msra.mxu0 0.0
  %298 = vmatprep.subr.mxu0 0.0
  %299 = vmatpush1.msra.mxu0 0.0
  %300 = vmatprep.subr.mxu0 0.0
  %301 = vmatpush1.msra.mxu0 0.0
  %302 = vmatprep.subr.mxu0 0.0
  %303 = vmatpush1.msra.mxu0 0.0
  %304 = vmatprep.subr.mxu0 0.0
  %305 = vmatpush1.msra.mxu0 0.0
  %306 = vmatprep.subr.mxu0 0.0
  %307 = vmatpush1.msra.mxu0 0.0
  %308 = vmatprep.mubr.f32.mxu0 0.0
  %309 = vmatmul.mubr.f32.gmra.mrb[0].mxu0 %v239
  %v310 = vpop.f32.mrb[0].mxu0
  %v311 = vadd.f32 %v237, %v310
  %v312 = vpop.f32.mrb[0].mxu0
  %313 = vmatprep.mubr.f32.mxu0 0.0
  %314 = vmatmul.mubr.f32.gmra.mrb[0].mxu0 %v242
  %v315 = vpop.f32.mrb[0].mxu0
  %v316 = vadd.f32 %v237, %v315
  %v317 = vpop.f32.mrb[0].mxu0
  %318 = vdwg.mxu0
  %321 = vrot.lane.b32.xlu0 %v311, 120
  %v322 = vpop.permute.xlu0 %321
  %323 = vrot.lane.b32.xlu0 %v316, 120
  %v324 = vpop.permute.xlu0 %323
  %325 = vrot.lane.b32.xlu0 %v311, 112
  %v326 = vpop.permute.xlu0 %325
  %327 = vrot.lane.b32.xlu0 %v316, 112
  %v328 = vpop.permute.xlu0 %327
  %329 = vrot.lane.b32.xlu0 %v311, 104
  %v330 = vpop.permute.xlu0 %329
  %331 = vrot.lane.b32.xlu0 %v316, 104
  %v332 = vpop.permute.xlu0 %331
  %333 = vrot.lane.b32.xlu0 %v311, 96
  %v334 = vpop.permute.xlu0 %333
  %335 = vrot.lane.b32.xlu0 %v316, 96
  %v336 = vpop.permute.xlu0 %335
  %vm337 = vcmask 64512
  %v338 = vsel %vm337, %v311, 0
  %v340 = vsel %vm337, %v316, 0
  %v342 = vsel %vm337, %v334, 0
  %v344 = vsel %vm337, %v336, 0
  %346 = vmatprep.subr.mxu0 0.0
  %347 = vmatpush1.xpose.msra.mxu0 %v342
  %348 = vmatprep.subr.mxu0 0.0
  %349 = vmatpush1.xpose.msra.mxu0 %v344
  %350 = vmatprep.subr.mxu0 0.0
  %351 = vmatpush1.xpose.msra.mxu0 0.0
  %352 = vmatprep.subr.mxu0 0.0
  %353 = vmatpush1.xpose.msra.mxu0 0.0
  %354 = vmatprep.subr.mxu0 0.0
  %355 = vmatpush1.xpose.msra.mxu0 0.0
  %356 = vmatprep.subr.mxu0 0.0
  %357 = vmatpush1.xpose.msra.mxu0 0.0
  %358 = vmatprep.subr.mxu0 0.0
  %359 = vmatpush1.xpose.msra.mxu0 0.0
  %360 = vmatprep.subr.mxu0 0.0
  %361 = vmatpush1.xpose.msra.mxu0 0.0
  %362 = vmatprep.subr.mxu0 0.0
  %363 = vmatpush1.xpose.msra.mxu0 0.0
  %364 = vmatprep.subr.mxu0 0.0
  %365 = vmatpush1.xpose.msra.mxu0 0.0
  %366 = vmatprep.subr.mxu0 0.0
  %367 = vmatpush1.xpose.msra.mxu0 0.0
  %368 = vmatprep.subr.mxu0 0.0
  %369 = vmatpush1.xpose.msra.mxu0 0.0
  %370 = vmatprep.subr.mxu0 0.0
  %371 = vmatpush1.xpose.msra.mxu0 0.0
  %372 = vmatprep.subr.mxu0 0.0
  %373 = vmatpush1.xpose.msra.mxu0 0.0
  %374 = vmatprep.subr.mxu0 0.0
  %375 = vmatpush1.xpose.msra.mxu0 0.0
  %376 = vmatprep.subr.mxu0 0.0
  %377 = vmatpush1.xpose.msra.mxu0 0.0
  %378 = vmatprep.subr.mxu0 0.0
  %379 = vmatpush1.xpose.msra.mxu0 0.0
  %380 = vmatprep.subr.mxu0 0.0
  %381 = vmatpush1.xpose.msra.mxu0 0.0
  %382 = vmatprep.subr.mxu0 0.0
  %383 = vmatpush1.xpose.msra.mxu0 0.0
  %384 = vmatprep.subr.mxu0 0.0
  %385 = vmatpush1.xpose.msra.mxu0 0.0
  %386 = vmatprep.subr.mxu0 0.0
  %387 = vmatpush1.xpose.msra.mxu0 0.0
  %388 = vmatprep.subr.mxu0 0.0
  %389 = vmatpush1.xpose.msra.mxu0 0.0
  %390 = vmatprep.subr.mxu0 0.0
  %391 = vmatpush1.xpose.msra.mxu0 0.0
  %392 = vmatprep.subr.mxu0 0.0
  %393 = vmatpush1.xpose.msra.mxu0 0.0
  %394 = vmatprep.subr.mxu0 0.0
  %395 = vmatpush1.xpose.msra.mxu0 0.0
  %396 = vmatprep.subr.mxu0 0.0
  %397 = vmatpush1.xpose.msra.mxu0 0.0
  %398 = vmatprep.subr.mxu0 0.0
  %399 = vmatpush1.xpose.msra.mxu0 0.0
  %400 = vmatprep.subr.mxu0 0.0
  %401 = vmatpush1.xpose.msra.mxu0 0.0
  %402 = vmatprep.subr.mxu0 0.0
  %403 = vmatpush1.xpose.msra.mxu0 0.0
  %404 = vmatprep.subr.mxu0 0.0
  %405 = vmatpush1.xpose.msra.mxu0 0.0
  %406 = vmatprep.subr.mxu0 0.0
  %407 = vmatpush1.xpose.msra.mxu0 0.0
  %408 = vmatprep.subr.mxu0 0.0
  %409 = vmatpush1.xpose.msra.mxu0 0.0
  %410 = vmatprep.mubr.f32.mxu0 0.0
  %411 = vmatmul.mubr.f32.gmra.mrb[0].mxu0 %v338
  %v412 = vpop.f32.mrb[0].mxu0
  %v413 = vadd.f32 %v88, %v412
  %v414 = vpop.f32.mrb[0].mxu0
  %415 = vmatprep.mubr.f32.mxu0 0.0
  %416 = vmatmul.mubr.f32.gmra.mrb[0].mxu0 %v340
  %v417 = vpop.f32.mrb[0].mxu0
  %v418 = vadd.f32 %v89, %v417
  %v419 = vpop.f32.mrb[0].mxu0
  %420 = vdwg.mxu0
  %421 = vrot.lane.b32.xlu0 %v322, 96
  %v422 = vpop.permute.xlu0 %421
  %423 = vrot.lane.b32.xlu0 %v324, 96
  %v424 = vpop.permute.xlu0 %423
  %v425 = vsel %vm337, %v322, 0
  %v427 = vsel %vm337, %v324, 0
  %v429 = vsel %vm337, %v422, 0
  %v431 = vsel %vm337, %v424, 0
  %433 = vmatprep.subr.mxu0 0.0
  %434 = vmatpush1.xpose.msra.mxu0 %v429
  %435 = vmatprep.subr.mxu0 0.0
  %436 = vmatpush1.xpose.msra.mxu0 %v431
  %437 = vmatprep.subr.mxu0 0.0
  %438 = vmatpush1.xpose.msra.mxu0 0.0
  %439 = vmatprep.subr.mxu0 0.0
  %440 = vmatpush1.xpose.msra.mxu0 0.0
  %441 = vmatprep.subr.mxu0 0.0
  %442 = vmatpush1.xpose.msra.mxu0 0.0
  %443 = vmatprep.subr.mxu0 0.0
  %444 = vmatpush1.xpose.msra.mxu0 0.0
  %445 = vmatprep.subr.mxu0 0.0
  %446 = vmatpush1.xpose.msra.mxu0 0.0
  %447 = vmatprep.subr.mxu0 0.0
  %448 = vmatpush1.xpose.msra.mxu0 0.0
  %449 = vmatprep.subr.mxu0 0.0
  %450 = vmatpush1.xpose.msra.mxu0 0.0
  %451 = vmatprep.subr.mxu0 0.0
  %452 = vmatpush1.xpose.msra.mxu0 0.0
  %453 = vmatprep.subr.mxu0 0.0
  %454 = vmatpush1.xpose.msra.mxu0 0.0
  %455 = vmatprep.subr.mxu0 0.0
  %456 = vmatpush1.xpose.msra.mxu0 0.0
  %457 = vmatprep.subr.mxu0 0.0
  %458 = vmatpush1.xpose.msra.mxu0 0.0
  %459 = vmatprep.subr.mxu0 0.0
  %460 = vmatpush1.xpose.msra.mxu0 0.0
  %461 = vmatprep.subr.mxu0 0.0
  %462 = vmatpush1.xpose.msra.mxu0 0.0
  %463 = vmatprep.subr.mxu0 0.0
  %464 = vmatpush1.xpose.msra.mxu0 0.0
  %465 = vmatprep.subr.mxu0 0.0
  %466 = vmatpush1.xpose.msra.mxu0 0.0
  %467 = vmatprep.subr.mxu0 0.0
  %468 = vmatpush1.xpose.msra.mxu0 0.0
  %469 = vmatprep.subr.mxu0 0.0
  %470 = vmatpush1.xpose.msra.mxu0 0.0
  %471 = vmatprep.subr.mxu0 0.0
  %472 = vmatpush1.xpose.msra.mxu0 0.0
  %473 = vmatprep.subr.mxu0 0.0
  %474 = vmatpush1.xpose.msra.mxu0 0.0
  %475 = vmatprep.subr.mxu0 0.0
  %476 = vmatpush1.xpose.msra.mxu0 0.0
  %477 = vmatprep.subr.mxu0 0.0
  %478 = vmatpush1.xpose.msra.mxu0 0.0
  %479 = vmatprep.subr.mxu0 0.0
  %480 = vmatpush1.xpose.msra.mxu0 0.0
  %481 = vmatprep.subr.mxu0 0.0
  %482 = vmatpush1.xpose.msra.mxu0 0.0
  %483 = vmatprep.subr.mxu0 0.0
  %484 = vmatpush1.xpose.msra.mxu0 0.0
  %485 = vmatprep.subr.mxu0 0.0
  %486 = vmatpush1.xpose.msra.mxu0 0.0
  %487 = vmatprep.subr.mxu0 0.0
  %488 = vmatpush1.xpose.msra.mxu0 0.0
  %489 = vmatprep.subr.mxu0 0.0
  %490 = vmatpush1.xpose.msra.mxu0 0.0
  %491 = vmatprep.subr.mxu0 0.0
  %492 = vmatpush1.xpose.msra.mxu0 0.0
  %493 = vmatprep.subr.mxu0 0.0
  %494 = vmatpush1.xpose.msra.mxu0 0.0
  %495 = vmatprep.subr.mxu0 0.0
  %496 = vmatpush1.xpose.msra.mxu0 0.0
  %497 = vmatprep.mubr.f32.mxu0 0.0
  %498 = vmatmul.mubr.f32.gmra.mrb[0].mxu0 %v425
  %v499 = vpop.f32.mrb[0].mxu0
  %v500 = vadd.f32 %v88, %v499
  %v501 = vpop.f32.mrb[0].mxu0
  %502 = vmatprep.mubr.f32.mxu0 0.0
  %503 = vmatmul.mubr.f32.gmra.mrb[0].mxu0 %v427
  %v504 = vpop.f32.mrb[0].mxu0
  %v505 = vadd.f32 %v89, %v504
  %v506 = vpop.f32.mrb[0].mxu0
  %507 = vdwg.mxu0
  %508 = vrot.lane.b32.xlu0 %v326, 96
  %v509 = vpop.permute.xlu0 %508
  %510 = vrot.lane.b32.xlu0 %v328, 96
  %v511 = vpop.permute.xlu0 %510
  %v512 = vsel %vm337, %v326, 0
  %v514 = vsel %vm337, %v328, 0
  %v516 = vsel %vm337, %v509, 0
  %v518 = vsel %vm337, %v511, 0
  %520 = vmatprep.subr.mxu0 0.0
  %521 = vmatpush1.xpose.msra.mxu0 %v516
  %522 = vmatprep.subr.mxu0 0.0
  %523 = vmatpush1.xpose.msra.mxu0 %v518
  %524 = vmatprep.subr.mxu0 0.0
  %525 = vmatpush1.xpose.msra.mxu0 0.0
  %526 = vmatprep.subr.mxu0 0.0
  %527 = vmatpush1.xpose.msra.mxu0 0.0
  %528 = vmatprep.subr.mxu0 0.0
  %529 = vmatpush1.xpose.msra.mxu0 0.0
  %530 = vmatprep.subr.mxu0 0.0
  %531 = vmatpush1.xpose.msra.mxu0 0.0
  %532 = vmatprep.subr.mxu0 0.0
  %533 = vmatpush1.xpose.msra.mxu0 0.0
  %534 = vmatprep.subr.mxu0 0.0
  %535 = vmatpush1.xpose.msra.mxu0 0.0
  %536 = vmatprep.subr.mxu0 0.0
  %537 = vmatpush1.xpose.msra.mxu0 0.0
  %538 = vmatprep.subr.mxu0 0.0
  %539 = vmatpush1.xpose.msra.mxu0 0.0
  %540 = vmatprep.subr.mxu0 0.0
  %541 = vmatpush1.xpose.msra.mxu0 0.0
  %542 = vmatprep.subr.mxu0 0.0
  %543 = vmatpush1.xpose.msra.mxu0 0.0
  %544 = vmatprep.subr.mxu0 0.0
  %545 = vmatpush1.xpose.msra.mxu0 0.0
  %546 = vmatprep.subr.mxu0 0.0
  %547 = vmatpush1.xpose.msra.mxu0 0.0
  %548 = vmatprep.subr.mxu0 0.0
  %549 = vmatpush1.xpose.msra.mxu0 0.0
  %550 = vmatprep.subr.mxu0 0.0
  %551 = vmatpush1.xpose.msra.mxu0 0.0
  %552 = vmatprep.subr.mxu0 0.0
  %553 = vmatpush1.xpose.msra.mxu0 0.0
  %554 = vmatprep.subr.mxu0 0.0
  %555 = vmatpush1.xpose.msra.mxu0 0.0
  %556 = vmatprep.subr.mxu0 0.0
  %557 = vmatpush1.xpose.msra.mxu0 0.0
  %558 = vmatprep.subr.mxu0 0.0
  %559 = vmatpush1.xpose.msra.mxu0 0.0
  %560 = vmatprep.subr.mxu0 0.0
  %561 = vmatpush1.xpose.msra.mxu0 0.0
  %562 = vmatprep.subr.mxu0 0.0
  %563 = vmatpush1.xpose.msra.mxu0 0.0
  %564 = vmatprep.subr.mxu0 0.0
  %565 = vmatpush1.xpose.msra.mxu0 0.0
  %566 = vmatprep.subr.mxu0 0.0
  %567 = vmatpush1.xpose.msra.mxu0 0.0
  %568 = vmatprep.subr.mxu0 0.0
  %569 = vmatpush1.xpose.msra.mxu0 0.0
  %570 = vmatprep.subr.mxu0 0.0
  %571 = vmatpush1.xpose.msra.mxu0 0.0
  %572 = vmatprep.subr.mxu0 0.0
  %573 = vmatpush1.xpose.msra.mxu0 0.0
  %574 = vmatprep.subr.mxu0 0.0
  %575 = vmatpush1.xpose.msra.mxu0 0.0
  %576 = vmatprep.subr.mxu0 0.0
  %577 = vmatpush1.xpose.msra.mxu0 0.0
  %578 = vmatprep.subr.mxu0 0.0
  %579 = vmatpush1.xpose.msra.mxu0 0.0
  %580 = vmatprep.subr.mxu0 0.0
  %581 = vmatpush1.xpose.msra.mxu0 0.0
  %582 = vmatprep.subr.mxu0 0.0
  %583 = vmatpush1.xpose.msra.mxu0 0.0
  %584 = vmatprep.mubr.f32.mxu0 0.0
  %585 = vmatmul.mubr.f32.gmra.mrb[0].mxu0 %v512
  %v586 = vpop.f32.mrb[0].mxu0
  %v587 = vadd.f32 %v88, %v586
  %v588 = vpop.f32.mrb[0].mxu0
  %589 = vmatprep.mubr.f32.mxu0 0.0
  %590 = vmatmul.mubr.f32.gmra.mrb[0].mxu0 %v514
  %v591 = vpop.f32.mrb[0].mxu0
  %v592 = vadd.f32 %v89, %v591
  %v593 = vpop.f32.mrb[0].mxu0
  %594 = vdwg.mxu0
  %595 = vrot.lane.b32.xlu0 %v330, 96
  %v596 = vpop.permute.xlu0 %595
  %597 = vrot.lane.b32.xlu0 %v332, 96
  %v598 = vpop.permute.xlu0 %597
  %v599 = vsel %vm337, %v330, 0
  %v601 = vsel %vm337, %v332, 0
  %v603 = vsel %vm337, %v596, 0
  %v605 = vsel %vm337, %v598, 0
  %607 = vmatprep.subr.mxu0 0.0
  %608 = vmatpush1.xpose.msra.mxu0 %v603
  %609 = vmatprep.subr.mxu0 0.0
  %610 = vmatpush1.xpose.msra.mxu0 %v605
  %611 = vmatprep.subr.mxu0 0.0
  %612 = vmatpush1.xpose.msra.mxu0 0.0
  %613 = vmatprep.subr.mxu0 0.0
  %614 = vmatpush1.xpose.msra.mxu0 0.0
  %615 = vmatprep.subr.mxu0 0.0
  %616 = vmatpush1.xpose.msra.mxu0 0.0
  %617 = vmatprep.subr.mxu0 0.0
  %618 = vmatpush1.xpose.msra.mxu0 0.0
  %619 = vmatprep.subr.mxu0 0.0
  %620 = vmatpush1.xpose.msra.mxu0 0.0
  %621 = vmatprep.subr.mxu0 0.0
  %622 = vmatpush1.xpose.msra.mxu0 0.0
  %623 = vmatprep.subr.mxu0 0.0
  %624 = vmatpush1.xpose.msra.mxu0 0.0
  %625 = vmatprep.subr.mxu0 0.0
  %626 = vmatpush1.xpose.msra.mxu0 0.0
  %627 = vmatprep.subr.mxu0 0.0
  %628 = vmatpush1.xpose.msra.mxu0 0.0
  %629 = vmatprep.subr.mxu0 0.0
  %630 = vmatpush1.xpose.msra.mxu0 0.0
  %631 = vmatprep.subr.mxu0 0.0
  %632 = vmatpush1.xpose.msra.mxu0 0.0
  %633 = vmatprep.subr.mxu0 0.0
  %634 = vmatpush1.xpose.msra.mxu0 0.0
  %635 = vmatprep.subr.mxu0 0.0
  %636 = vmatpush1.xpose.msra.mxu0 0.0
  %637 = vmatprep.subr.mxu0 0.0
  %638 = vmatpush1.xpose.msra.mxu0 0.0
  %639 = vmatprep.subr.mxu0 0.0
  %640 = vmatpush1.xpose.msra.mxu0 0.0
  %641 = vmatprep.subr.mxu0 0.0
  %642 = vmatpush1.xpose.msra.mxu0 0.0
  %643 = vmatprep.subr.mxu0 0.0
  %644 = vmatpush1.xpose.msra.mxu0 0.0
  %645 = vmatprep.subr.mxu0 0.0
  %646 = vmatpush1.xpose.msra.mxu0 0.0
  %647 = vmatprep.subr.mxu0 0.0
  %648 = vmatpush1.xpose.msra.mxu0 0.0
  %649 = vmatprep.subr.mxu0 0.0
  %650 = vmatpush1.xpose.msra.mxu0 0.0
  %651 = vmatprep.subr.mxu0 0.0
  %652 = vmatpush1.xpose.msra.mxu0 0.0
  %653 = vmatprep.subr.mxu0 0.0
  %654 = vmatpush1.xpose.msra.mxu0 0.0
  %655 = vmatprep.subr.mxu0 0.0
  %656 = vmatpush1.xpose.msra.mxu0 0.0
  %657 = vmatprep.subr.mxu0 0.0
  %658 = vmatpush1.xpose.msra.mxu0 0.0
  %659 = vmatprep.subr.mxu0 0.0
  %660 = vmatpush1.xpose.msra.mxu0 0.0
  %661 = vmatprep.subr.mxu0 0.0
  %662 = vmatpush1.xpose.msra.mxu0 0.0
  %663 = vmatprep.subr.mxu0 0.0
  %664 = vmatpush1.xpose.msra.mxu0 0.0
  %665 = vmatprep.subr.mxu0 0.0
  %666 = vmatpush1.xpose.msra.mxu0 0.0
  %667 = vmatprep.subr.mxu0 0.0
  %668 = vmatpush1.xpose.msra.mxu0 0.0
  %669 = vmatprep.subr.mxu0 0.0
  %670 = vmatpush1.xpose.msra.mxu0 0.0
  %671 = vmatprep.mubr.f32.mxu0 0.0
  %672 = vmatmul.mubr.f32.gmra.mrb[0].mxu0 %v599
  %v673 = vpop.f32.mrb[0].mxu0
  %v674 = vadd.f32 %v88, %v673
  %v675 = vpop.f32.mrb[0].mxu0
  %676 = vmatprep.mubr.f32.mxu0 0.0
  %677 = vmatmul.mubr.f32.gmra.mrb[0].mxu0 %v601
  %v678 = vpop.f32.mrb[0].mxu0
  %v679 = vadd.f32 %v89, %v678
  %v680 = vpop.f32.mrb[0].mxu0
  %681 = vdwg.mxu0
  %vm682 = vcmask 130048
  %v683 = vsel %vm682, %v413, -inf
  %684 = vmax.xlane.f32.xlu0 %v683
  %v685 = vpop.xlane.xlu0 %684
  %v686 = vsel %vm682, %v418, -inf
  %687 = vmax.xlane.f32.xlu0 %v686
  %v688 = vpop.xlane.xlu0 %687
  %v689 = vsel %vm682, %v500, -inf
  %690 = vmax.xlane.f32.xlu0 %v689
  %v691 = vpop.xlane.xlu0 %690
  %v692 = vsel %vm682, %v505, -inf
  %693 = vmax.xlane.f32.xlu0 %v692
  %v694 = vpop.xlane.xlu0 %693
  %v695 = vsel %vm682, %v587, -inf
  %696 = vmax.xlane.f32.xlu0 %v695
  %v697 = vpop.xlane.xlu0 %696
  %v698 = vsel %vm682, %v592, -inf
  %699 = vmax.xlane.f32.xlu0 %v698
  %v700 = vpop.xlane.xlu0 %699
  %v701 = vsel %vm682, %v674, -inf
  %702 = vmax.xlane.f32.xlu0 %v701
  %v703 = vpop.xlane.xlu0 %702
  %v704 = vsel %vm682, %v679, -inf
  %705 = vmax.xlane.f32.xlu0 %v704
  %v706 = vpop.xlane.xlu0 %705
  %v707 = vsub.f32 %v413, %v685
  %v708 = vsub.f32 %v418, %v688
  %v709 = vsub.f32 %v500, %v691
  %v710 = vsub.f32 %v505, %v694
  %v711 = vsub.f32 %v587, %v697
  %v712 = vsub.f32 %v592, %v700
  %v713 = vsub.f32 %v674, %v703
  %v714 = vsub.f32 %v679, %v706
  %v715 = vmul.f32 %v707, 1.442695
  %v716 = vpow.pop %v715
  %v717 = vmul.f32 %v708, 1.442695
  %v718 = vpow.pop %v717
  %v719 = vmul.f32 %v709, 1.442695
  %v720 = vpow.pop %v719
  %v721 = vmul.f32 %v710, 1.442695
  %v722 = vpow.pop %v721
  %v723 = vmul.f32 %v711, 1.442695
  %v724 = vpow.pop %v723
  %v725 = vmul.f32 %v712, 1.442695
  %v726 = vpow.pop %v725
  %v727 = vmul.f32 %v713, 1.442695
  %v728 = vpow.pop %v727
  %v729 = vmul.f32 %v714, 1.442695
  %v730 = vpow.pop %v729
  %v731 = vsel %vm682, %v716, 0.0
  %732 = vadd.xlane.f32.xlu0 %v731
  %v733 = vpop.xlane.xlu0 %732
  %v734 = vsel %vm682, %v718, 0.0
  %735 = vadd.xlane.f32.xlu0 %v734
  %v736 = vpop.xlane.xlu0 %735
  %v737 = vsel %vm682, %v720, 0.0
  %738 = vadd.xlane.f32.xlu0 %v737
  %v739 = vpop.xlane.xlu0 %738
  %v740 = vsel %vm682, %v722, 0.0
  %741 = vadd.xlane.f32.xlu0 %v740
  %v742 = vpop.xlane.xlu0 %741
  %v743 = vsel %vm682, %v724, 0.0
  %744 = vadd.xlane.f32.xlu0 %v743
  %v745 = vpop.xlane.xlu0 %744
  %v746 = vsel %vm682, %v726, 0.0
  %747 = vadd.xlane.f32.xlu0 %v746
  %v748 = vpop.xlane.xlu0 %747
  %v749 = vsel %vm682, %v728, 0.0
  %750 = vadd.xlane.f32.xlu0 %v749
  %v751 = vpop.xlane.xlu0 %750
  %v752 = vsel %vm682, %v730, 0.0
  %753 = vadd.xlane.f32.xlu0 %v752
  %v754 = vpop.xlane.xlu0 %753
  %v755 = vrcp.pop %v733
  %v756 = vrcp.pop %v736
  %v757 = vrcp.pop %v739
  %v758 = vrcp.pop %v742
  %v759 = vrcp.pop %v745
  %v760 = vrcp.pop %v748
  %v761 = vrcp.pop %v751
  %v762 = vrcp.pop %v754
  %v763 = vmul.f32 %v716, %v755
  %v764 = vmul.f32 %v718, %v756
  %v765 = vmul.f32 %v720, %v757
  %v766 = vmul.f32 %v722, %v758
  %v767 = vmul.f32 %v724, %v759
  %v768 = vmul.f32 %v726, %v760
  %v769 = vmul.f32 %v728, %v761
  %v770 = vmul.f32 %v730, %v762
  %771 = vrot.lane.b32.xlu0 %v311, 64
  %v772 = vpop.permute.xlu0 %771
  %773 = vrot.lane.b32.xlu0 %v316, 64
  %v774 = vpop.permute.xlu0 %773
  %v778 = vsel %vm682, %v763, 0
  %v781 = vsel %vm682, %v764, 0
  %783 = vmatprep.subr.mxu0 0.0
  %784 = vmatpush1.msra.mxu0 %v772
  %785 = vmatprep.subr.mxu0 0.0
  %786 = vmatpush1.msra.mxu0 %v774
  %787 = vmatprep.subr.mxu0 0.0
  %788 = vmatpush1.msra.mxu0 0.0
  %789 = vmatprep.subr.mxu0 0.0
  %790 = vmatpush1.msra.mxu0 0.0
  %791 = vmatprep.subr.mxu0 0.0
  %792 = vmatpush1.msra.mxu0 0.0
  %793 = vmatprep.subr.mxu0 0.0
  %794 = vmatpush1.msra.mxu0 0.0
  %795 = vmatprep.subr.mxu0 0.0
  %796 = vmatpush1.msra.mxu0 0.0
  %797 = vmatprep.subr.mxu0 0.0
  %798 = vmatpush1.msra.mxu0 0.0
  %799 = vmatprep.subr.mxu0 0.0
  %800 = vmatpush1.msra.mxu0 0.0
  %801 = vmatprep.subr.mxu0 0.0
  %802 = vmatpush1.msra.mxu0 0.0
  %803 = vmatprep.subr.mxu0 0.0
  %804 = vmatpush1.msra.mxu0 0.0
  %805 = vmatprep.subr.mxu0 0.0
  %806 = vmatpush1.msra.mxu0 0.0
  %807 = vmatprep.subr.mxu0 0.0
  %808 = vmatpush1.msra.mxu0 0.0
  %809 = vmatprep.subr.mxu0 0.0
  %810 = vmatpush1.msra.mxu0 0.0
  %811 = vmatprep.subr.mxu0 0.0
  %812 = vmatpush1.msra.mxu0 0.0
  %813 = vmatprep.subr.mxu0 0.0
  %814 = vmatpush1.msra.mxu0 0.0
  %815 = vmatprep.subr.mxu0 0.0
  %816 = vmatpush1.msra.mxu0 0.0
  %817 = vmatprep.subr.mxu0 0.0
  %818 = vmatpush1.msra.mxu0 0.0
  %819 = vmatprep.subr.mxu0 0.0
  %820 = vmatpush1.msra.mxu0 0.0
  %821 = vmatprep.subr.mxu0 0.0
  %822 = vmatpush1.msra.mxu0 0.0
  %823 = vmatprep.subr.mxu0 0.0
  %824 = vmatpush1.msra.mxu0 0.0
  %825 = vmatprep.subr.mxu0 0.0
  %826 = vmatpush1.msra.mxu0 0.0
  %827 = vmatprep.subr.mxu0 0.0
  %828 = vmatpush1.msra.mxu0 0.0
  %829 = vmatprep.subr.mxu0 0.0
  %830 = vmatpush1.msra.mxu0 0.0
  %831 = vmatprep.subr.mxu0 0.0
  %832 = vmatpush1.msra.mxu0 0.0
  %833 = vmatprep.subr.mxu0 0.0
  %834 = vmatpush1.msra.mxu0 0.0
  %835 = vmatprep.subr.mxu0 0.0
  %836 = vmatpush1.msra.mxu0 0.0
  %837 = vmatprep.subr.mxu0 0.0
  %838 = vmatpush1.msra.mxu0 0.0
  %839 = vmatprep.subr.mxu0 0.0
  %840 = vmatpush1.msra.mxu0 0.0
  %841 = vmatprep.subr.mxu0 0.0
  %842 = vmatpush1.msra.mxu0 0.0
  %843 = vmatprep.subr.mxu0 0.0
  %844 = vmatpush1.msra.mxu0 0.0
  %845 = vmatprep.subr.mxu0 0.0
  %846 = vmatpush1.msra.mxu0 0.0
  %847 = vmatprep.mubr.f32.mxu0 0.0
  %848 = vmatmul.mubr.f32.gmra.mrb[0].mxu0 %v778
  %v849 = vpop.f32.mrb[0].mxu0
  %v850 = vadd.f32 0.0, %v849
  %v851 = vpop.f32.mrb[0].mxu0
  %852 = vmatprep.mubr.f32.mxu0 0.0
  %853 = vmatmul.mubr.f32.gmra.mrb[0].mxu0 %v781
  %v854 = vpop.f32.mrb[0].mxu0
  %v855 = vadd.f32 0.0, %v854
  %v856 = vpop.f32.mrb[0].mxu0
  %857 = vdwg.mxu0
  %858 = vrot.lane.b32.xlu0 %v322, 64
  %v859 = vpop.permute.xlu0 %858
  %860 = vrot.lane.b32.xlu0 %v324, 64
  %v861 = vpop.permute.xlu0 %860
  %v865 = vsel %vm682, %v765, 0
  %v868 = vsel %vm682, %v766, 0
  %870 = vmatprep.subr.mxu0 0.0
  %871 = vmatpush1.msra.mxu0 %v859
  %872 = vmatprep.subr.mxu0 0.0
  %873 = vmatpush1.msra.mxu0 %v861
  %874 = vmatprep.subr.mxu0 0.0
  %875 = vmatpush1.msra.mxu0 0.0
  %876 = vmatprep.subr.mxu0 0.0
  %877 = vmatpush1.msra.mxu0 0.0
  %878 = vmatprep.subr.mxu0 0.0
  %879 = vmatpush1.msra.mxu0 0.0
  %880 = vmatprep.subr.mxu0 0.0
  %881 = vmatpush1.msra.mxu0 0.0
  %882 = vmatprep.subr.mxu0 0.0
  %883 = vmatpush1.msra.mxu0 0.0
  %884 = vmatprep.subr.mxu0 0.0
  %885 = vmatpush1.msra.mxu0 0.0
  %886 = vmatprep.subr.mxu0 0.0
  %887 = vmatpush1.msra.mxu0 0.0
  %888 = vmatprep.subr.mxu0 0.0
  %889 = vmatpush1.msra.mxu0 0.0
  %890 = vmatprep.subr.mxu0 0.0
  %891 = vmatpush1.msra.mxu0 0.0
  %892 = vmatprep.subr.mxu0 0.0
  %893 = vmatpush1.msra.mxu0 0.0
  %894 = vmatprep.subr.mxu0 0.0
  %895 = vmatpush1.msra.mxu0 0.0
  %896 = vmatprep.subr.mxu0 0.0
  %897 = vmatpush1.msra.mxu0 0.0
  %898 = vmatprep.subr.mxu0 0.0
  %899 = vmatpush1.msra.mxu0 0.0
  %900 = vmatprep.subr.mxu0 0.0
  %901 = vmatpush1.msra.mxu0 0.0
  %902 = vmatprep.subr.mxu0 0.0
  %903 = vmatpush1.msra.mxu0 0.0
  %904 = vmatprep.subr.mxu0 0.0
  %905 = vmatpush1.msra.mxu0 0.0
  %906 = vmatprep.subr.mxu0 0.0
  %907 = vmatpush1.msra.mxu0 0.0
  %908 = vmatprep.subr.mxu0 0.0
  %909 = vmatpush1.msra.mxu0 0.0
  %910 = vmatprep.subr.mxu0 0.0
  %911 = vmatpush1.msra.mxu0 0.0
  %912 = vmatprep.subr.mxu0 0.0
  %913 = vmatpush1.msra.mxu0 0.0
  %914 = vmatprep.subr.mxu0 0.0
  %915 = vmatpush1.msra.mxu0 0.0
  %916 = vmatprep.subr.mxu0 0.0
  %917 = vmatpush1.msra.mxu0 0.0
  %918 = vmatprep.subr.mxu0 0.0
  %919 = vmatpush1.msra.mxu0 0.0
  %920 = vmatprep.subr.mxu0 0.0
  %921 = vmatpush1.msra.mxu0 0.0
  %922 = vmatprep.subr.mxu0 0.0
  %923 = vmatpush1.msra.mxu0 0.0
  %924 = vmatprep.subr.mxu0 0.0
  %925 = vmatpush1.msra.mxu0 0.0
  %926 = vmatprep.subr.mxu0 0.0
  %927 = vmatpush1.msra.mxu0 0.0
  %928 = vmatprep.subr.mxu0 0.0
  %929 = vmatpush1.msra.mxu0 0.0
  %930 = vmatprep.subr.mxu0 0.0
  %931 = vmatpush1.msra.mxu0 0.0
  %932 = vmatprep.subr.mxu0 0.0
  %933 = vmatpush1.msra.mxu0 0.0
  %934 = vmatprep.mubr.f32.mxu0 0.0
  %935 = vmatmul.mubr.f32.gmra.mrb[0].mxu0 %v865
  %v936 = vpop.f32.mrb[0].mxu0
  %v937 = vadd.f32 0.0, %v936
  %v938 = vpop.f32.mrb[0].mxu0
  %939 = vmatprep.mubr.f32.mxu0 0.0
  %940 = vmatmul.mubr.f32.gmra.mrb[0].mxu0 %v868
  %v941 = vpop.f32.mrb[0].mxu0
  %v942 = vadd.f32 0.0, %v941
  %v943 = vpop.f32.mrb[0].mxu0
  %944 = vdwg.mxu0
  %945 = vrot.lane.b32.xlu0 %v326, 64
  %v946 = vpop.permute.xlu0 %945
  %947 = vrot.lane.b32.xlu0 %v328, 64
  %v948 = vpop.permute.xlu0 %947
  %v952 = vsel %vm682, %v767, 0
  %v955 = vsel %vm682, %v768, 0
  %957 = vmatprep.subr.mxu0 0.0
  %958 = vmatpush1.msra.mxu0 %v946
  %959 = vmatprep.subr.mxu0 0.0
  %960 = vmatpush1.msra.mxu0 %v948
  %961 = vmatprep.subr.mxu0 0.0
  %962 = vmatpush1.msra.mxu0 0.0
  %963 = vmatprep.subr.mxu0 0.0
  %964 = vmatpush1.msra.mxu0 0.0
  %965 = vmatprep.subr.mxu0 0.0
  %966 = vmatpush1.msra.mxu0 0.0
  %967 = vmatprep.subr.mxu0 0.0
  %968 = vmatpush1.msra.mxu0 0.0
  %969 = vmatprep.subr.mxu0 0.0
  %970 = vmatpush1.msra.mxu0 0.0
  %971 = vmatprep.subr.mxu0 0.0
  %972 = vmatpush1.msra.mxu0 0.0
  %973 = vmatprep.subr.mxu0 0.0
  %974 = vmatpush1.msra.mxu0 0.0
  %975 = vmatprep.subr.mxu0 0.0
  %976 = vmatpush1.msra.mxu0 0.0
  %977 = vmatprep.subr.mxu0 0.0
  %978 = vmatpush1.msra.mxu0 0.0
  %979 = vmatprep.subr.mxu0 0.0
  %980 = vmatpush1.msra.mxu0 0.0
  %981 = vmatprep.subr.mxu0 0.0
  %982 = vmatpush1.msra.mxu0 0.0
  %983 = vmatprep.subr.mxu0 0.0
  %984 = vmatpush1.msra.mxu0 0.0
  %985 = vmatprep.subr.mxu0 0.0
  %986 = vmatpush1.msra.mxu0 0.0
  %987 = vmatprep.subr.mxu0 0.0
  %988 = vmatpush1.msra.mxu0 0.0
  %989 = vmatprep.subr.mxu0 0.0
  %990 = vmatpush1.msra.mxu0 0.0
  %991 = vmatprep.subr.mxu0 0.0
  %992 = vmatpush1.msra.mxu0 0.0
  %993 = vmatprep.subr.mxu0 0.0
  %994 = vmatpush1.msra.mxu0 0.0
  %995 = vmatprep.subr.mxu0 0.0
  %996 = vmatpush1.msra.mxu0 0.0
  %997 = vmatprep.subr.mxu0 0.0
  %998 = vmatpush1.msra.mxu0 0.0
  %999 = vmatprep.subr.mxu0 0.0
  %1000 = vmatpush1.msra.mxu0 0.0
  %1001 = vmatprep.subr.mxu0 0.0
  %1002 = vmatpush1.msra.mxu0 0.0
  %1003 = vmatprep.subr.mxu0 0.0
  %1004 = vmatpush1.msra.mxu0 0.0
  %1005 = vmatprep.subr.mxu0 0.0
  %1006 = vmatpush1.msra.mxu0 0.0
  %1007 = vmatprep.subr.mxu0 0.0
  %1008 = vmatpush1.msra.mxu0 0.0
  %1009 = vmatprep.subr.mxu0 0.0
  %1010 = vmatpush1.msra.mxu0 0.0
  %1011 = vmatprep.subr.mxu0 0.0
  %1012 = vmatpush1.msra.mxu0 0.0
  %1013 = vmatprep.subr.mxu0 0.0
  %1014 = vmatpush1.msra.mxu0 0.0
  %1015 = vmatprep.subr.mxu0 0.0
  %1016 = vmatpush1.msra.mxu0 0.0
  %1017 = vmatprep.subr.mxu0 0.0
  %1018 = vmatpush1.msra.mxu0 0.0
  %1019 = vmatprep.subr.mxu0 0.0
  %1020 = vmatpush1.msra.mxu0 0.0
  %1021 = vmatprep.mubr.f32.mxu0 0.0
  %1022 = vmatmul.mubr.f32.gmra.mrb[0].mxu0 %v952
  %v1023 = vpop.f32.mrb[0].mxu0
  %v1024 = vadd.f32 0.0, %v1023
  %v1025 = vpop.f32.mrb[0].mxu0
  %1026 = vmatprep.mubr.f32.mxu0 0.0
  %1027 = vmatmul.mubr.f32.gmra.mrb[0].mxu0 %v955
  %v1028 = vpop.f32.mrb[0].mxu0
  %v1029 = vadd.f32 0.0, %v1028
  %v1030 = vpop.f32.mrb[0].mxu0
  %1031 = vdwg.mxu0
  %1032 = vrot.lane.b32.xlu0 %v330, 64
  %v1033 = vpop.permute.xlu0 %1032
  %1034 = vrot.lane.b32.xlu0 %v332, 64
  %v1035 = vpop.permute.xlu0 %1034
  %v1039 = vsel %vm682, %v769, 0
  %v1042 = vsel %vm682, %v770, 0
  %1044 = vmatprep.subr.mxu0 0.0
  %1045 = vmatpush1.msra.mxu0 %v1033
  %1046 = vmatprep.subr.mxu0 0.0
  %1047 = vmatpush1.msra.mxu0 %v1035
  %1048 = vmatprep.subr.mxu0 0.0
  %1049 = vmatpush1.msra.mxu0 0.0
  %1050 = vmatprep.subr.mxu0 0.0
  %1051 = vmatpush1.msra.mxu0 0.0
  %1052 = vmatprep.subr.mxu0 0.0
  %1053 = vmatpush1.msra.mxu0 0.0
  %1054 = vmatprep.subr.mxu0 0.0
  %1055 = vmatpush1.msra.mxu0 0.0
  %1056 = vmatprep.subr.mxu0 0.0
  %1057 = vmatpush1.msra.mxu0 0.0
  %1058 = vmatprep.subr.mxu0 0.0
  %1059 = vmatpush1.msra.mxu0 0.0
  %1060 = vmatprep.subr.mxu0 0.0
  %1061 = vmatpush1.msra.mxu0 0.0
  %1062 = vmatprep.subr.mxu0 0.0
  %1063 = vmatpush1.msra.mxu0 0.0
  %1064 = vmatprep.subr.mxu0 0.0
  %1065 = vmatpush1.msra.mxu0 0.0
  %1066 = vmatprep.subr.mxu0 0.0
  %1067 = vmatpush1.msra.mxu0 0.0
  %1068 = vmatprep.subr.mxu0 0.0
  %1069 = vmatpush1.msra.mxu0 0.0
  %1070 = vmatprep.subr.mxu0 0.0
  %1071 = vmatpush1.msra.mxu0 0.0
  %1072 = vmatprep.subr.mxu0 0.0
  %1073 = vmatpush1.msra.mxu0 0.0
  %1074 = vmatprep.subr.mxu0 0.0
  %1075 = vmatpush1.msra.mxu0 0.0
  %1076 = vmatprep.subr.mxu0 0.0
  %1077 = vmatpush1.msra.mxu0 0.0
  %1078 = vmatprep.subr.mxu0 0.0
  %1079 = vmatpush1.msra.mxu0 0.0
  %1080 = vmatprep.subr.mxu0 0.0
  %1081 = vmatpush1.msra.mxu0 0.0
  %1082 = vmatprep.subr.mxu0 0.0
  %1083 = vmatpush1.msra.mxu0 0.0
  %1084 = vmatprep.subr.mxu0 0.0
  %1085 = vmatpush1.msra.mxu0 0.0
  %1086 = vmatprep.subr.mxu0 0.0
  %1087 = vmatpush1.msra.mxu0 0.0
  %1088 = vmatprep.subr.mxu0 0.0
  %1089 = vmatpush1.msra.mxu0 0.0
  %1090 = vmatprep.subr.mxu0 0.0
  %1091 = vmatpush1.msra.mxu0 0.0
  %1092 = vmatprep.subr.mxu0 0.0
  %1093 = vmatpush1.msra.mxu0 0.0
  %1094 = vmatprep.subr.mxu0 0.0
  %1095 = vmatpush1.msra.mxu0 0.0
  %1096 = vmatprep.subr.mxu0 0.0
  %1097 = vmatpush1.msra.mxu0 0.0
  %1098 = vmatprep.subr.mxu0 0.0
  %1099 = vmatpush1.msra.mxu0 0.0
  %1100 = vmatprep.subr.mxu0 0.0
  %1101 = vmatpush1.msra.mxu0 0.0
  %1102 = vmatprep.subr.mxu0 0.0
  %1103 = vmatpush1.msra.mxu0 0.0
  %1104 = vmatprep.subr.mxu0 0.0
  %1105 = vmatpush1.msra.mxu0 0.0
  %1106 = vmatprep.subr.mxu0 0.0
  %1107 = vmatpush1.msra.mxu0 0.0
  %1108 = vmatprep.mubr.f32.mxu0 0.0
  %1109 = vmatmul.mubr.f32.gmra.mrb[0].mxu0 %v1039
  %v1110 = vpop.f32.mrb[0].mxu0
  %v1111 = vadd.f32 0.0, %v1110
  %v1112 = vpop.f32.mrb[0].mxu0
  %1113 = vmatprep.mubr.f32.mxu0 0.0
  %1114 = vmatmul.mubr.f32.gmra.mrb[0].mxu0 %v1042
  %v1115 = vpop.f32.mrb[0].mxu0
  %v1116 = vadd.f32 0.0, %v1115
  %v1117 = vpop.f32.mrb[0].mxu0
  %1118 = vdwg.mxu0
  %1121 = vrot.lane.b32.xlu0 %v937, 8
  %v1122 = vpop.permute.xlu0 %1121
  %1123 = vrot.lane.b32.xlu0 %v942, 8
  %v1124 = vpop.permute.xlu0 %1123
  %1129 = vrot.lane.b32.xlu0 %v1024, 16
  %v1130 = vpop.permute.xlu0 %1129
  %1131 = vrot.lane.b32.xlu0 %v1029, 16
  %v1132 = vpop.permute.xlu0 %1131
  %1137 = vrot.lane.b32.xlu0 %v1111, 24
  %v1138 = vpop.permute.xlu0 %1137
  %1139 = vrot.lane.b32.xlu0 %v1116, 24
  %v1140 = vpop.permute.xlu0 %1139
  %v1143 = vsel %vm337, %v850, %v1122
  %v1144 = vsel %vm337, %v855, %v1124
  %v1145 = vsel %vm682, %v1143, %v1130
  %v1146 = vsel %vm682, %v1144, %v1132
  %vm1147 = vcmask 195584
  %v1148 = vsel %vm1147, %v1145, %v1138
  %v1149 = vsel %vm1147, %v1146, %v1140
  %v1150 = vld [vmem:[%s11] sm:$0xff]
  %v1151 = vld [vmem:[%s11 + $0x8] sm:$0xff]
  %v1152 = vld [vmem:[%s11 + $0x10] sm:$0xff]
  %v1153 = vld [vmem:[%s11 + $0x18] sm:$0xff]
  %v1155 = vsel %vm186, %v1148, 0
  %v1158 = vsel %vm186, %v1149, 0
  %1160 = vmatprep.subr.mxu0 0.0
  %1161 = vmatpush1.msra.mxu0 %v1150
  %1162 = vmatprep.subr.mxu0 0.0
  %1163 = vmatpush1.msra.mxu0 %v1151
  %1164 = vmatprep.subr.mxu0 0.0
  %1165 = vmatpush1.msra.mxu0 %v1152
  %1166 = vmatprep.subr.mxu0 0.0
  %1167 = vmatpush1.msra.mxu0 %v1153
  %1168 = vmatprep.subr.mxu0 0.0
  %1169 = vmatpush1.msra.mxu0 0.0
  %1170 = vmatprep.subr.mxu0 0.0
  %1171 = vmatpush1.msra.mxu0 0.0
  %1172 = vmatprep.subr.mxu0 0.0
  %1173 = vmatpush1.msra.mxu0 0.0
  %1174 = vmatprep.subr.mxu0 0.0
  %1175 = vmatpush1.msra.mxu0 0.0
  %1176 = vmatprep.subr.mxu0 0.0
  %1177 = vmatpush1.msra.mxu0 0.0
  %1178 = vmatprep.subr.mxu0 0.0
  %1179 = vmatpush1.msra.mxu0 0.0
  %1180 = vmatprep.subr.mxu0 0.0
  %1181 = vmatpush1.msra.mxu0 0.0
  %1182 = vmatprep.subr.mxu0 0.0
  %1183 = vmatpush1.msra.mxu0 0.0
  %1184 = vmatprep.subr.mxu0 0.0
  %1185 = vmatpush1.msra.mxu0 0.0
  %1186 = vmatprep.subr.mxu0 0.0
  %1187 = vmatpush1.msra.mxu0 0.0
  %1188 = vmatprep.subr.mxu0 0.0
  %1189 = vmatpush1.msra.mxu0 0.0
  %1190 = vmatprep.subr.mxu0 0.0
  %1191 = vmatpush1.msra.mxu0 0.0
  %1192 = vmatprep.subr.mxu0 0.0
  %1193 = vmatpush1.msra.mxu0 0.0
  %1194 = vmatprep.subr.mxu0 0.0
  %1195 = vmatpush1.msra.mxu0 0.0
  %1196 = vmatprep.subr.mxu0 0.0
  %1197 = vmatpush1.msra.mxu0 0.0
  %1198 = vmatprep.subr.mxu0 0.0
  %1199 = vmatpush1.msra.mxu0 0.0
  %1200 = vmatprep.subr.mxu0 0.0
  %1201 = vmatpush1.msra.mxu0 0.0
  %1202 = vmatprep.subr.mxu0 0.0
  %1203 = vmatpush1.msra.mxu0 0.0
  %1204 = vmatprep.subr.mxu0 0.0
  %1205 = vmatpush1.msra.mxu0 0.0
  %1206 = vmatprep.subr.mxu0 0.0
  %1207 = vmatpush1.msra.mxu0 0.0
  %1208 = vmatprep.subr.mxu0 0.0
  %1209 = vmatpush1.msra.mxu0 0.0
  %1210 = vmatprep.subr.mxu0 0.0
  %1211 = vmatpush1.msra.mxu0 0.0
  %1212 = vmatprep.subr.mxu0 0.0
  %1213 = vmatpush1.msra.mxu0 0.0
  %1214 = vmatprep.subr.mxu0 0.0
  %1215 = vmatpush1.msra.mxu0 0.0
  %1216 = vmatprep.subr.mxu0 0.0
  %1217 = vmatpush1.msra.mxu0 0.0
  %1218 = vmatprep.subr.mxu0 0.0
  %1219 = vmatpush1.msra.mxu0 0.0
  %1220 = vmatprep.subr.mxu0 0.0
  %1221 = vmatpush1.msra.mxu0 0.0
  %1222 = vmatprep.subr.mxu0 0.0
  %1223 = vmatpush1.msra.mxu0 0.0
  %1224 = vmatprep.mubr.f32.mxu0 0.0
  %1225 = vmatmul.mubr.f32.gmra.mrb[0].mxu0 %v1155
  %v1226 = vpop.f32.mrb[0].mxu0
  %v1227 = vadd.f32 0.0, %v1226
  %v1228 = vpop.f32.mrb[0].mxu0
  %1229 = vmatprep.mubr.f32.mxu0 0.0
  %1230 = vmatmul.mubr.f32.gmra.mrb[0].mxu0 %v1158
  %v1231 = vpop.f32.mrb[0].mxu0
  %v1232 = vadd.f32 0.0, %v1231
  %v1233 = vpop.f32.mrb[0].mxu0
  %1234 = vdwg.mxu0
  %v1235 = vadd.f32 %v182, %v1227
  %v1236 = vadd.f32 %v183, %v1232
  %v1237 = vld [vmem:[%s12] sm:$0x1]
  %v1238 = vlaneseq
  %v1239 = vshrl.u32 %v1238, 7
  %v1240 = vsub.s32 0, %v1239
  %v1241 = vrot.slane %v1237, %v1240
  %v1242 = vadd.f32 %v1235, %v1241
  %v1243 = vadd.f32 %v1236, %v1241
  %v1244 = vld [vmem:[%s13] sm:$0x1]
  %v1245 = vld [vmem:[%s14] sm:$0x1]
  %v1246 = vsel %vm186, %v1242, 0.0
  %1247 = vadd.xlane.f32.xlu0 %v1246
  %v1248 = vpop.xlane.xlu0 %1247
  %v1249 = vsel %vm186, %v1243, 0.0
  %1250 = vadd.xlane.f32.xlu0 %v1249
  %v1251 = vpop.xlane.xlu0 %1250
  %v1252 = vmul.f32 %v1242, %v1242
  %v1253 = vmul.f32 %v1243, %v1243
  %v1254 = vsel %vm186, %v1252, 0.0
  %1255 = vadd.xlane.f32.xlu0 %v1254
  %v1256 = vpop.xlane.xlu0 %1255
  %v1257 = vsel %vm186, %v1253, 0.0
  %1258 = vadd.xlane.f32.xlu0 %v1257
  %v1259 = vpop.xlane.xlu0 %1258
  %v1260 = vmul.f32 %v1248, 0.03125
  %v1261 = vmul.f32 %v1251, 0.03125
  %v1262 = vmul.f32 %v1256, 0.03125
  %v1263 = vmul.f32 %v1259, 0.03125
  %v1264 = vmul.f32 %v1260, %v1260
  %v1265 = vmul.f32 %v1261, %v1261
  %v1266 = vsub.f32 %v1262, %v1264
  %v1267 = vsub.f32 %v1263, %v1265
  %v1268 = vsub.f32 %v1242, %v1260
  %v1269 = vsub.f32 %v1243, %v1261
  %v1270 = vadd.f32 %v1266, 1e-05
  %v1271 = vadd.f32 %v1267, 1e-05
  %v1272 = vrsqrt.pop %v1270
  %v1273 = vrsqrt.pop %v1271
  %v1274 = vmul.f32 %v1268, %v1272
  %v1275 = vmul.f32 %v1269, %v1273
  %v1276 = vlaneseq
  %v1277 = vshrl.u32 %v1276, 7
  %v1278 = vsub.s32 0, %v1277
  %v1279 = vrot.slane %v1244, %v1278
  %v1280 = vmul.f32 %v1274, %v1279
  %v1281 = vmul.f32 %v1275, %v1279
  %v1282 = vlaneseq
  %v1283 = vshrl.u32 %v1282, 7
  %v1284 = vsub.s32 0, %v1283
  %v1285 = vrot.slane %v1245, %v1284
  %v1286 = vadd.f32 %v1280, %v1285
  %v1287 = vadd.f32 %v1281, %v1285
  %v1288 = vld [vmem:[%s15] sm:$0xff]
  %v1289 = vld [vmem:[%s15 + $0x8] sm:$0xff]
  %v1290 = vld [vmem:[%s15 + $0x10] sm:$0xff]
  %v1291 = vld [vmem:[%s15 + $0x18] sm:$0xff]
  %v1292 = vld [vmem:[%s16] sm:$0x1]
  %v1293 = vlaneseq
  %v1294 = vshrl.u32 %v1293, 7
  %v1295 = vsub.s32 0, %v1294
  %v1296 = vrot.slane %v1292, %v1295
  %v1298 = vsel %vm186, %v1286, 0
  %v1301 = vsel %vm186, %v1287, 0
  %1303 = vmatprep.subr.mxu0 0.0
  %1304 = vmatpush1.msra.mxu0 %v1288
  %1305 = vmatprep.subr.mxu0 0.0
  %1306 = vmatpush1.msra.mxu0 %v1289
  %1307 = vmatprep.subr.mxu0 0.0
  %1308 = vmatpush1.msra.mxu0 %v1290
  %1309 = vmatprep.subr.mxu0 0.0
  %1310 = vmatpush1.msra.mxu0 %v1291
  %1311 = vmatprep.subr.mxu0 0.0
  %1312 = vmatpush1.msra.mxu0 0.0
  %1313 = vmatprep.subr.mxu0 0.0
  %1314 = vmatpush1.msra.mxu0 0.0
  %1315 = vmatprep.subr.mxu0 0.0
  %1316 = vmatpush1.msra.mxu0 0.0
  %1317 = vmatprep.subr.mxu0 0.0
  %1318 = vmatpush1.msra.mxu0 0.0
  %1319 = vmatprep.subr.mxu0 0.0
  %1320 = vmatpush1.msra.mxu0 0.0
  %1321 = vmatprep.subr.mxu0 0.0
  %1322 = vmatpush1.msra.mxu0 0.0
  %1323 = vmatprep.subr.mxu0 0.0
  %1324 = vmatpush1.msra.mxu0 0.0
  %1325 = vmatprep.subr.mxu0 0.0
  %1326 = vmatpush1.msra.mxu0 0.0
  %1327 = vmatprep.subr.mxu0 0.0
  %1328 = vmatpush1.msra.mxu0 0.0
  %1329 = vmatprep.subr.mxu0 0.0
  %1330 = vmatpush1.msra.mxu0 0.0
  %1331 = vmatprep.subr.mxu0 0.0
  %1332 = vmatpush1.msra.mxu0 0.0
  %1333 = vmatprep.subr.mxu0 0.0
  %1334 = vmatpush1.msra.mxu0 0.0
  %1335 = vmatprep.subr.mxu0 0.0
  %1336 = vmatpush1.msra.mxu0 0.0
  %1337 = vmatprep.subr.mxu0 0.0
  %1338 = vmatpush1.msra.mxu0 0.0
  %1339 = vmatprep.subr.mxu0 0.0
  %1340 = vmatpush1.msra.mxu0 0.0
  %1341 = vmatprep.subr.mxu0 0.0
  %1342 = vmatpush1.msra.mxu0 0.0
  %1343 = vmatprep.subr.mxu0 0.0
  %1344 = vmatpush1.msra.mxu0 0.0
  %1345 = vmatprep.subr.mxu0 0.0
  %1346 = vmatpush1.msra.mxu0 0.0
  %1347 = vmatprep.subr.mxu0 0.0
  %1348 = vmatpush1.msra.mxu0 0.0
  %1349 = vmatprep.subr.mxu0 0.0
  %1350 = vmatpush1.msra.mxu0 0.0
  %1351 = vmatprep.subr.mxu0 0.0
  %1352 = vmatpush1.msra.mxu0 0.0
  %1353 = vmatprep.subr.mxu0 0.0
  %1354 = vmatpush1.msra.mxu0 0.0
  %1355 = vmatprep.subr.mxu0 0.0
  %1356 = vmatpush1.msra.mxu0 0.0
  %1357 = vmatprep.subr.mxu0 0.0
  %1358 = vmatpush1.msra.mxu0 0.0
  %1359 = vmatprep.subr.mxu0 0.0
  %1360 = vmatpush1.msra.mxu0 0.0
  %1361 = vmatprep.subr.mxu0 0.0
  %1362 = vmatpush1.msra.mxu0 0.0
  %1363 = vmatprep.subr.mxu0 0.0
  %1364 = vmatpush1.msra.mxu0 0.0
  %1365 = vmatprep.subr.mxu0 0.0
  %1366 = vmatpush1.msra.mxu0 0.0
  %1367 = vmatprep.mubr.f32.mxu0 0.0
  %1368 = vmatmul.mubr.f32.gmra.mrb[0].mxu0 %v1298
  %v1369 = vpop.f32.mrb[0].mxu0
  %v1370 = vadd.f32 %v1296, %v1369
  %v1371 = vpop.f32.mrb[0].mxu0
  %1372 = vmatprep.mubr.f32.mxu0 0.0
  %1373 = vmatmul.mubr.f32.gmra.mrb[0].mxu0 %v1301
  %v1374 = vpop.f32.mrb[0].mxu0
  %v1375 = vadd.f32 %v1296, %v1374
  %v1376 = vpop.f32.mrb[0].mxu0
  %1377 = vdwg.mxu0
  %v1378 = vmax.f32 %v1370, 0.0
  %v1379 = vmax.f32 %v1375, 0.0
  %v1380 = vld [vmem:[%s17] sm:$0xff]
  %v1381 = vld [vmem:[%s17 + $0x8] sm:$0xff]
  %v1382 = vld [vmem:[%s17 + $0x10] sm:$0xff]
  %v1383 = vld [vmem:[%s17 + $0x18] sm:$0xff]
  %v1384 = vld [vmem:[%s17 + $0x20] sm:$0xff]
  %v1385 = vld [vmem:[%s17 + $0x28] sm:$0xff]
  %v1386 = vld [vmem:[%s17 + $0x30] sm:$0xff]
  %v1387 = vld [vmem:[%s17 + $0x38] sm:$0xff]
  %v1388 = vld [vmem:[%s17 + $0x40] sm:$0xff]
  %v1389 = vld [vmem:[%s17 + $0x48] sm:$0xff]
  %v1390 = vld [vmem:[%s17 + $0x50] sm:$0xff]
  %v1391 = vld [vmem:[%s17 + $0x58] sm:$0xff]
  %v1392 = vld [vmem:[%s17 + $0x60] sm:$0xff]
  %v1393 = vld [vmem:[%s17 + $0x68] sm:$0xff]
  %v1394 = vld [vmem:[%s17 + $0x70] sm:$0xff]
  %v1395 = vld [vmem:[%s17 + $0x78] sm:$0xff]
  %v1396 = vld [vmem:[%s18] sm:$0x1]
  %v1397 = vlaneseq
  %v1398 = vshrl.u32 %v1397, 7
  %v1399 = vsub.s32 0, %v1398
  %v1400 = vrot.slane %v1396, %v1399
  %1401 = vmatprep.subr.mxu0 0.0
  %1402 = vmatpush1.msra.mxu0 %v1380
  %1403 = vmatprep.subr.mxu0 0.0
  %1404 = vmatpush1.msra.mxu0 %v1381
  %1405 = vmatprep.subr.mxu0 0.0
  %1406 = vmatpush1.msra.mxu0 %v1382
  %1407 = vmatprep.subr.mxu0 0.0
  %1408 = vmatpush1.msra.mxu0 %v1383
  %1409 = vmatprep.subr.mxu0 0.0
  %1410 = vmatpush1.msra.mxu0 %v1384
  %1411 = vmatprep.subr.mxu0 0.0
  %1412 = vmatpush1.msra.mxu0 %v1385
  %1413 = vmatprep.subr.mxu0 0.0
  %1414 = vmatpush1.msra.mxu0 %v1386
  %1415 = vmatprep.subr.mxu0 0.0
  %1416 = vmatpush1.msra.mxu0 %v1387
  %1417 = vmatprep.subr.mxu0 0.0
  %1418 = vmatpush1.msra.mxu0 %v1388
  %1419 = vmatprep.subr.mxu0 0.0
  %1420 = vmatpush1.msra.mxu0 %v1389
  %1421 = vmatprep.subr.mxu0 0.0
  %1422 = vmatpush1.msra.mxu0 %v1390
  %1423 = vmatprep.subr.mxu0 0.0
  %1424 = vmatpush1.msra.mxu0 %v1391
  %1425 = vmatprep.subr.mxu0 0.0
  %1426 = vmatpush1.msra.mxu0 %v1392
  %1427 = vmatprep.subr.mxu0 0.0
  %1428 = vmatpush1.msra.mxu0 %v1393
  %1429 = vmatprep.subr.mxu0 0.0
  %1430 = vmatpush1.msra.mxu0 %v1394
  %1431 = vmatprep.subr.mxu0 0.0
  %1432 = vmatpush1.msra.mxu0 %v1395
  %1433 = vmatprep.subr.mxu0 0.0
  %1434 = vmatpush1.msra.mxu0 0.0
  %1435 = vmatprep.subr.mxu0 0.0
  %1436 = vmatpush1.msra.mxu0 0.0
  %1437 = vmatprep.subr.mxu0 0.0
  %1438 = vmatpush1.msra.mxu0 0.0
  %1439 = vmatprep.subr.mxu0 0.0
  %1440 = vmatpush1.msra.mxu0 0.0
  %1441 = vmatprep.subr.mxu0 0.0
  %1442 = vmatpush1.msra.mxu0 0.0
  %1443 = vmatprep.subr.mxu0 0.0
  %1444 = vmatpush1.msra.mxu0 0.0
  %1445 = vmatprep.subr.mxu0 0.0
  %1446 = vmatpush1.msra.mxu0 0.0
  %1447 = vmatprep.subr.mxu0 0.0
  %1448 = vmatpush1.msra.mxu0 0.0
  %1449 = vmatprep.subr.mxu0 0.0
  %1450 = vmatpush1.msra.mxu0 0.0
  %1451 = vmatprep.subr.mxu0 0.0
  %1452 = vmatpush1.msra.mxu0 0.0
  %1453 = vmatprep.subr.mxu0 0.0
  %1454 = vmatpush1.msra.mxu0 0.0
  %1455 = vmatprep.subr.mxu0 0.0
  %1456 = vmatpush1.msra.mxu0 0.0
  %1457 = vmatprep.subr.mxu0 0.0
  %1458 = vmatpush1.msra.mxu0 0.0
  %1459 = vmatprep.subr.mxu0 0.0
  %1460 = vmatpush1.msra.mxu0 0.0
  %1461 = vmatprep.subr.mxu0 0.0
  %1462 = vmatpush1.msra.mxu0 0.0
  %1463 = vmatprep.subr.mxu0 0.0
  %1464 = vmatpush1.msra.mxu0 0.0
  %1465 = vmatprep.mubr.f32.mxu0 0.0
  %1466 = vmatmul.mubr.f32.gmra.mrb[0].mxu0 %v1378
  %v1467 = vpop.f32.mrb[0].mxu0
  %v1468 = vadd.f32 %v1400, %v1467
  %v1469 = vpop.f32.mrb[0].mxu0
  %1470 = vmatprep.mubr.f32.mxu0 0.0
  %1471 = vmatmul.mubr.f32.gmra.mrb[0].mxu0 %v1379
  %v1472 = vpop.f32.mrb[0].mxu0
  %v1473 = vadd.f32 %v1400, %v1472
  %v1474 = vpop.f32.mrb[0].mxu0
  %1475 = vdwg.mxu0
  %v1476 = vadd.f32 %v1242, %v1468
  %v1477 = vadd.f32 %v1243, %v1473
  %v1478 = vld [vmem:[%s7 + $0x1] sm:$0x1]
  %v1479 = vld [vmem:[%s8 + $0x1] sm:$0x1]
  %v1480 = vsel %vm186, %v1476, 0.0
  %1481 = vadd.xlane.f32.xlu0 %v1480
  %v1482 = vpop.xlane.xlu0 %1481
  %v1483 = vsel %vm186, %v1477, 0.0
  %1484 = vadd.xlane.f32.xlu0 %v1483
  %v1485 = vpop.xlane.xlu0 %1484
  %v1486 = vmul.f32 %v1476, %v1476
  %v1487 = vmul.f32 %v1477, %v1477
  %v1488 = vsel %vm186, %v1486, 0.0
  %1489 = vadd.xlane.f32.xlu0 %v1488
  %v1490 = vpop.xlane.xlu0 %1489
  %v1491 = vsel %vm186, %v1487, 0.0
  %1492 = vadd.xlane.f32.xlu0 %v1491
  %v1493 = vpop.xlane.xlu0 %1492
  %v1494 = vmul.f32 %v1482, 0.03125
  %v1495 = vmul.f32 %v1485, 0.03125
  %v1496 = vmul.f32 %v1490, 0.03125
  %v1497 = vmul.f32 %v1493, 0.03125
  %v1498 = vmul.f32 %v1494, %v1494
  %v1499 = vmul.f32 %v1495, %v1495
  %v1500 = vsub.f32 %v1496, %v1498
  %v1501 = vsub.f32 %v1497, %v1499
  %v1502 = vsub.f32 %v1476, %v1494
  %v1503 = vsub.f32 %v1477, %v1495
  %v1504 = vadd.f32 %v1500, 1e-05
  %v1505 = vadd.f32 %v1501, 1e-05
  %v1506 = vrsqrt.pop %v1504
  %v1507 = vrsqrt.pop %v1505
  %v1508 = vmul.f32 %v1502, %v1506
  %v1509 = vmul.f32 %v1503, %v1507
  %v1510 = vlaneseq
  %v1511 = vshrl.u32 %v1510, 7
  %v1512 = vsub.s32 0, %v1511
  %v1513 = vrot.slane %v1478, %v1512
  %v1514 = vmul.f32 %v1508, %v1513
  %v1515 = vmul.f32 %v1509, %v1513
  %v1516 = vlaneseq
  %v1517 = vshrl.u32 %v1516, 7
  %v1518 = vsub.s32 0, %v1517
  %v1519 = vrot.slane %v1479, %v1518
  %v1520 = vadd.f32 %v1514, %v1519
  %v1521 = vadd.f32 %v1515, %v1519
  %s1522 = scalar_lea.vmem %s9, 32
  %v1523 = vld [vmem:[%s1522] sm:$0xff]
  %v1524 = vld [vmem:[%s1522 + $0x8] sm:$0xff]
  %v1525 = vld [vmem:[%s1522 + $0x10] sm:$0xff]
  %v1526 = vld [vmem:[%s1522 + $0x18] sm:$0xff]
  %v1527 = vld [vmem:[%s10 + $0x1] sm:$0x1]
  %v1528 = vlaneseq
  %v1529 = vshrl.u32 %v1528, 7
  %v1530 = vsub.s32 0, %v1529
  %v1531 = vrot.slane %v1527, %v1530
  %v1533 = vsel %vm186, %v1520, 0
  %v1536 = vsel %vm186, %v1521, 0
  %1538 = vmatprep.subr.mxu0 0.0
  %1539 = vmatpush1.msra.mxu0 %v1523
  %1540 = vmatprep.subr.mxu0 0.0
  %1541 = vmatpush1.msra.mxu0 %v1524
  %1542 = vmatprep.subr.mxu0 0.0
  %1543 = vmatpush1.msra.mxu0 %v1525
  %1544 = vmatprep.subr.mxu0 0.0
  %1545 = vmatpush1.msra.mxu0 %v1526
  %1546 = vmatprep.subr.mxu0 0.0
  %1547 = vmatpush1.msra.mxu0 0.0
  %1548 = vmatprep.subr.mxu0 0.0
  %1549 = vmatpush1.msra.mxu0 0.0
  %1550 = vmatprep.subr.mxu0 0.0
  %1551 = vmatpush1.msra.mxu0 0.0
  %1552 = vmatprep.subr.mxu0 0.0
  %1553 = vmatpush1.msra.mxu0 0.0
  %1554 = vmatprep.subr.mxu0 0.0
  %1555 = vmatpush1.msra.mxu0 0.0
  %1556 = vmatprep.subr.mxu0 0.0
  %1557 = vmatpush1.msra.mxu0 0.0
  %1558 = vmatprep.subr.mxu0 0.0
  %1559 = vmatpush1.msra.mxu0 0.0
  %1560 = vmatprep.subr.mxu0 0.0
  %1561 = vmatpush1.msra.mxu0 0.0
  %1562 = vmatprep.subr.mxu0 0.0
  %1563 = vmatpush1.msra.mxu0 0.0
  %1564 = vmatprep.subr.mxu0 0.0
  %1565 = vmatpush1.msra.mxu0 0.0
  %1566 = vmatprep.subr.mxu0 0.0
  %1567 = vmatpush1.msra.mxu0 0.0
  %1568 = vmatprep.subr.mxu0 0.0
  %1569 = vmatpush1.msra.mxu0 0.0
  %1570 = vmatprep.subr.mxu0 0.0
  %1571 = vmatpush1.msra.mxu0 0.0
  %1572 = vmatprep.subr.mxu0 0.0
  %1573 = vmatpush1.msra.mxu0 0.0
  %1574 = vmatprep.subr.mxu0 0.0
  %1575 = vmatpush1.msra.mxu0 0.0
  %1576 = vmatprep.subr.mxu0 0.0
  %1577 = vmatpush1.msra.mxu0 0.0
  %1578 = vmatprep.subr.mxu0 0.0
  %1579 = vmatpush1.msra.mxu0 0.0
  %1580 = vmatprep.subr.mxu0 0.0
  %1581 = vmatpush1.msra.mxu0 0.0
  %1582 = vmatprep.subr.mxu0 0.0
  %1583 = vmatpush1.msra.mxu0 0.0
  %1584 = vmatprep.subr.mxu0 0.0
  %1585 = vmatpush1.msra.mxu0 0.0
  %1586 = vmatprep.subr.mxu0 0.0
  %1587 = vmatpush1.msra.mxu0 0.0
  %1588 = vmatprep.subr.mxu0 0.0
  %1589 = vmatpush1.msra.mxu0 0.0
  %1590 = vmatprep.subr.mxu0 0.0
  %1591 = vmatpush1.msra.mxu0 0.0
  %1592 = vmatprep.subr.mxu0 0.0
  %1593 = vmatpush1.msra.mxu0 0.0
  %1594 = vmatprep.subr.mxu0 0.0
  %1595 = vmatpush1.msra.mxu0 0.0
  %1596 = vmatprep.subr.mxu0 0.0
  %1597 = vmatpush1.msra.mxu0 0.0
  %1598 = vmatprep.subr.mxu0 0.0
  %1599 = vmatpush1.msra.mxu0 0.0
  %1600 = vmatprep.subr.mxu0 0.0
  %1601 = vmatpush1.msra.mxu0 0.0
  %1602 = vmatprep.mubr.f32.mxu0 0.0
  %1603 = vmatmul.mubr.f32.gmra.mrb[0].mxu0 %v1533
  %v1604 = vpop.f32.mrb[0].mxu0
  %v1605 = vadd.f32 %v1531, %v1604
  %v1606 = vpop.f32.mrb[0].mxu0
  %1607 = vmatprep.mubr.f32.mxu0 0.0
  %1608 = vmatmul.mubr.f32.gmra.mrb[0].mxu0 %v1536
  %v1609 = vpop.f32.mrb[0].mxu0
  %v1610 = vadd.f32 %v1531, %v1609
  %v1611 = vpop.f32.mrb[0].mxu0
  %1612 = vdwg.mxu0
  %1615 = vrot.lane.b32.xlu0 %v1605, 120
  %v1616 = vpop.permute.xlu0 %1615
  %1617 = vrot.lane.b32.xlu0 %v1610, 120
  %v1618 = vpop.permute.xlu0 %1617
  %1619 = vrot.lane.b32.xlu0 %v1605, 112
  %v1620 = vpop.permute.xlu0 %1619
  %1621 = vrot.lane.b32.xlu0 %v1610, 112
  %v1622 = vpop.permute.xlu0 %1621
  %1623 = vrot.lane.b32.xlu0 %v1605, 104
  %v1624 = vpop.permute.xlu0 %1623
  %1625 = vrot.lane.b32.xlu0 %v1610, 104
  %v1626 = vpop.permute.xlu0 %1625
  %1627 = vrot.lane.b32.xlu0 %v1605, 96
  %v1628 = vpop.permute.xlu0 %1627
  %1629 = vrot.lane.b32.xlu0 %v1610, 96
  %v1630 = vpop.permute.xlu0 %1629
  %v1631 = vsel %vm337, %v1605, 0
  %v1633 = vsel %vm337, %v1610, 0
  %v1635 = vsel %vm337, %v1628, 0
  %v1637 = vsel %vm337, %v1630, 0
  %1639 = vmatprep.subr.mxu0 0.0
  %1640 = vmatpush1.xpose.msra.mxu0 %v1635
  %1641 = vmatprep.subr.mxu0 0.0
  %1642 = vmatpush1.xpose.msra.mxu0 %v1637
  %1643 = vmatprep.subr.mxu0 0.0
  %1644 = vmatpush1.xpose.msra.mxu0 0.0
  %1645 = vmatprep.subr.mxu0 0.0
  %1646 = vmatpush1.xpose.msra.mxu0 0.0
  %1647 = vmatprep.subr.mxu0 0.0
  %1648 = vmatpush1.xpose.msra.mxu0 0.0
  %1649 = vmatprep.subr.mxu0 0.0
  %1650 = vmatpush1.xpose.msra.mxu0 0.0
  %1651 = vmatprep.subr.mxu0 0.0
  %1652 = vmatpush1.xpose.msra.mxu0 0.0
  %1653 = vmatprep.subr.mxu0 0.0
  %1654 = vmatpush1.xpose.msra.mxu0 0.0
  %1655 = vmatprep.subr.mxu0 0.0
  %1656 = vmatpush1.xpose.msra.mxu0 0.0
  %1657 = vmatprep.subr.mxu0 0.0
  %1658 = vmatpush1.xpose.msra.mxu0 0.0
  %1659 = vmatprep.subr.mxu0 0.0
  %1660 = vmatpush1.xpose.msra.mxu0 0.0
  %1661 = vmatprep.subr.mxu0 0.0
  %1662 = vmatpush1.xpose.msra.mxu0 0.0
  %1663 = vmatprep.subr.mxu0 0.0
  %1664 = vmatpush1.xpose.msra.mxu0 0.0
  %1665 = vmatprep.subr.mxu0 0.0
  %1666 = vmatpush1.xpose.msra.mxu0 0.0
  %1667 = vmatprep.subr.mxu0 0.0
  %1668 = vmatpush1.xpose.msra.mxu0 0.0
  %1669 = vmatprep.subr.mxu0 0.0
  %1670 = vmatpush1.xpose.msra.mxu0 0.0
  %1671 = vmatprep.subr.mxu0 0.0
  %1672 = vmatpush1.xpose.msra.mxu0 0.0
  %1673 = vmatprep.subr.mxu0 0.0
  %1674 = vmatpush1.xpose.msra.mxu0 0.0
  %1675 = vmatprep.subr.mxu0 0.0
  %1676 = vmatpush1.xpose.msra.mxu0 0.0
  %1677 = vmatprep.subr.mxu0 0.0
  %1678 = vmatpush1.xpose.msra.mxu0 0.0
  %1679 = vmatprep.subr.mxu0 0.0
  %1680 = vmatpush1.xpose.msra.mxu0 0.0
  %1681 = vmatprep.subr.mxu0 0.0
  %1682 = vmatpush1.xpose.msra.mxu0 0.0
  %1683 = vmatprep.subr.mxu0 0.0
  %1684 = vmatpush1.xpose.msra.mxu0 0.0
  %1685 = vmatprep.subr.mxu0 0.0
  %1686 = vmatpush1.xpose.msra.mxu0 0.0
  %1687 = vmatprep.subr.mxu0 0.0
  %1688 = vmatpush1.xpose.msra.mxu0 0.0
  %1689 = vmatprep.subr.mxu0 0.0
  %1690 = vmatpush1.xpose.msra.mxu0 0.0
  %1691 = vmatprep.subr.mxu0 0.0
  %1692 = vmatpush1.xpose.msra.mxu0 0.0
  %1693 = vmatprep.subr.mxu0 0.0
  %1694 = vmatpush1.xpose.msra.mxu0 0.0
  %1695 = vmatprep.subr.mxu0 0.0
  %1696 = vmatpush1.xpose.msra.mxu0 0.0
  %1697 = vmatprep.subr.mxu0 0.0
  %1698 = vmatpush1.xpose.msra.mxu0 0.0
  %1699 = vmatprep.subr.mxu0 0.0
  %1700 = vmatpush1.xpose.msra.mxu0 0.0
  %1701 = vmatprep.subr.mxu0 0.0
  %1702 = vmatpush1.xpose.msra.mxu0 0.0
  %1703 = vmatprep.mubr.f32.mxu0 0.0
  %1704 = vmatmul.mubr.f32.gmra.mrb[0].mxu0 %v1631
  %v1705 = vpop.f32.mrb[0].mxu0
  %v1706 = vadd.f32 %v88, %v1705
  %v1707 = vpop.f32.mrb[0].mxu0
  %1708 = vmatprep.mubr.f32.mxu0 0.0
  %1709 = vmatmul.mubr.f32.gmra.mrb[0].mxu0 %v1633
  %v1710 = vpop.f32.mrb[0].mxu0
  %v1711 = vadd.f32 %v89, %v1710
  %v1712 = vpop.f32.mrb[0].mxu0
  %1713 = vdwg.mxu0
  %1714 = vrot.lane.b32.xlu0 %v1616, 96
  %v1715 = vpop.permute.xlu0 %1714
  %1716 = vrot.lane.b32.xlu0 %v1618, 96
  %v1717 = vpop.permute.xlu0 %1716
  %v1718 = vsel %vm337, %v1616, 0
  %v1720 = vsel %vm337, %v1618, 0
  %v1722 = vsel %vm337, %v1715, 0
  %v1724 = vsel %vm337, %v1717, 0
  %1726 = vmatprep.subr.mxu0 0.0
  %1727 = vmatpush1.xpose.msra.mxu0 %v1722
  %1728 = vmatprep.subr.mxu0 0.0
  %1729 = vmatpush1.xpose.msra.mxu0 %v1724
  %1730 = vmatprep.subr.mxu0 0.0
  %1731 = vmatpush1.xpose.msra.mxu0 0.0
  %1732 = vmatprep.subr.mxu0 0.0
  %1733 = vmatpush1.xpose.msra.mxu0 0.0
  %1734 = vmatprep.subr.mxu0 0.0
  %1735 = vmatpush1.xpose.msra.mxu0 0.0
  %1736 = vmatprep.subr.mxu0 0.0
  %1737 = vmatpush1.xpose.msra.mxu0 0.0
  %1738 = vmatprep.subr.mxu0 0.0
  %1739 = vmatpush1.xpose.msra.mxu0 0.0
  %1740 = vmatprep.subr.mxu0 0.0
  %1741 = vmatpush1.xpose.msra.mxu0 0.0
  %1742 = vmatprep.subr.mxu0 0.0
  %1743 = vmatpush1.xpose.msra.mxu0 0.0
  %1744 = vmatprep.subr.mxu0 0.0
  %1745 = vmatpush1.xpose.msra.mxu0 0.0
  %1746 = vmatprep.subr.mxu0 0.0
  %1747 = vmatpush1.xpose.msra.mxu0 0.0
  %1748 = vmatprep.subr.mxu0 0.0
  %1749 = vmatpush1.xpose.msra.mxu0 0.0
  %1750 = vmatprep.subr.mxu0 0.0
  %1751 = vmatpush1.xpose.msra.mxu0 0.0
  %1752 = vmatprep.subr.mxu0 0.0
  %1753 = vmatpush1.xpose.msra.mxu0 0.0
  %1754 = vmatprep.subr.mxu0 0.0
  %1755 = vmatpush1.xpose.msra.mxu0 0.0
  %1756 = vmatprep.subr.mxu0 0.0
  %1757 = vmatpush1.xpose.msra.mxu0 0.0
  %1758 = vmatprep.subr.mxu0 0.0
  %1759 = vmatpush1.xpose.msra.mxu0 0.0
  %1760 = vmatprep.subr.mxu0 0.0
  %1761 = vmatpush1.xpose.msra.mxu0 0.0
  %1762 = vmatprep.subr.mxu0 0.0
  %1763 = vmatpush1.xpose.msra.mxu0 0.0
  %1764 = vmatprep.subr.mxu0 0.0
  %1765 = vmatpush1.xpose.msra.mxu0 0.0
  %1766 = vmatprep.subr.mxu0 0.0
  %1767 = vmatpush1.xpose.msra.mxu0 0.0
  %1768 = vmatprep.subr.mxu0 0.0
  %1769 = vmatpush1.xpose.msra.mxu0 0.0
  %1770 = vmatprep.subr.mxu0 0.0
  %1771 = vmatpush1.xpose.msra.mxu0 0.0
  %1772 = vmatprep.subr.mxu0 0.0
  %1773 = vmatpush1.xpose.msra.mxu0 0.0
  %1774 = vmatprep.subr.mxu0 0.0
  %1775 = vmatpush1.xpose.msra.mxu0 0.0
  %1776 = vmatprep.subr.mxu0 0.0
  %1777 = vmatpush1.xpose.msra.mxu0 0.0
  %1778 = vmatprep.subr.mxu0 0.0
  %1779 = vmatpush1.xpose.msra.mxu0 0.0
  %1780 = vmatprep.subr.mxu0 0.0
  %1781 = vmatpush1.xpose.msra.mxu0 0.0
  %1782 = vmatprep.subr.mxu0 0.0
  %1783 = vmatpush1.xpose.msra.mxu0 0.0
  %1784 = vmatprep.subr.mxu0 0.0
  %1785 = vmatpush1.xpose.msra.mxu0 0.0
  %1786 = vmatprep.subr.mxu0 0.0
  %1787 = vmatpush1.xpose.msra.mxu0 0.0
  %1788 = vmatprep.subr.mxu0 0.0
  %1789 = vmatpush1.xpose.msra.mxu0 0.0
  %1790 = vmatprep.mubr.f32.mxu0 0.0
  %1791 = vmatmul.mubr.f32.gmra.mrb[0].mxu0 %v1718
  %v1792 = vpop.f32.mrb[0].mxu0
  %v1793 = vadd.f32 %v88, %v1792
  %v1794 = vpop.f32.mrb[0].mxu0
  %1795 = vmatprep.mubr.f32.mxu0 0.0
  %1796 = vmatmul.mubr.f32.gmra.mrb[0].mxu0 %v1720
  %v1797 = vpop.f32.mrb[0].mxu0
  %v1798 = vadd.f32 %v89, %v1797
  %v1799 = vpop.f32.mrb[0].mxu0
  %1800 = vdwg.mxu0
  %1801 = vrot.lane.b32.xlu0 %v1620, 96
  %v1802 = vpop.permute.xlu0 %1801
  %1803 = vrot.lane.b32.xlu0 %v1622, 96
  %v1804 = vpop.permute.xlu0 %1803
  %v1805 = vsel %vm337, %v1620, 0
  %v1807 = vsel %vm337, %v1622, 0
  %v1809 = vsel %vm337, %v1802, 0
  %v1811 = vsel %vm337, %v1804, 0
  %1813 = vmatprep.subr.mxu0 0.0
  %1814 = vmatpush1.xpose.msra.mxu0 %v1809
  %1815 = vmatprep.subr.mxu0 0.0
  %1816 = vmatpush1.xpose.msra.mxu0 %v1811
  %1817 = vmatprep.subr.mxu0 0.0
  %1818 = vmatpush1.xpose.msra.mxu0 0.0
  %1819 = vmatprep.subr.mxu0 0.0
  %1820 = vmatpush1.xpose.msra.mxu0 0.0
  %1821 = vmatprep.subr.mxu0 0.0
  %1822 = vmatpush1.xpose.msra.mxu0 0.0
  %1823 = vmatprep.subr.mxu0 0.0
  %1824 = vmatpush1.xpose.msra.mxu0 0.0
  %1825 = vmatprep.subr.mxu0 0.0
  %1826 = vmatpush1.xpose.msra.mxu0 0.0
  %1827 = vmatprep.subr.mxu0 0.0
  %1828 = vmatpush1.xpose.msra.mxu0 0.0
  %1829 = vmatprep.subr.mxu0 0.0
  %1830 = vmatpush1.xpose.msra.mxu0 0.0
  %1831 = vmatprep.subr.mxu0 0.0
  %1832 = vmatpush1.xpose.msra.mxu0 0.0
  %1833 = vmatprep.subr.mxu0 0.0
  %1834 = vmatpush1.xpose.msra.mxu0 0.0
  %1835 = vmatprep.subr.mxu0 0.0
  %1836 = vmatpush1.xpose.msra.mxu0 0.0
  %1837 = vmatprep.subr.mxu0 0.0
  %1838 = vmatpush1.xpose.msra.mxu0 0.0
  %1839 = vmatprep.subr.mxu0 0.0
  %1840 = vmatpush1.xpose.msra.mxu0 0.0
  %1841 = vmatprep.subr.mxu0 0.0
  %1842 = vmatpush1.xpose.msra.mxu0 0.0
  %1843 = vmatprep.subr.mxu0 0.0
  %1844 = vmatpush1.xpose.msra.mxu0 0.0
  %1845 = vmatprep.subr.mxu0 0.0
  %1846 = vmatpush1.xpose.msra.mxu0 0.0
  %1847 = vmatprep.subr.mxu0 0.0
  %1848 = vmatpush1.xpose.msra.mxu0 0.0
  %1849 = vmatprep.subr.mxu0 0.0
  %1850 = vmatpush1.xpose.msra.mxu0 0.0
  %1851 = vmatprep.subr.mxu0 0.0
  %1852 = vmatpush1.xpose.msra.mxu0 0.0
  %1853 = vmatprep.subr.mxu0 0.0
  %1854 = vmatpush1.xpose.msra.mxu0 0.0
  %1855 = vmatprep.subr.mxu0 0.0
  %1856 = vmatpush1.xpose.msra.mxu0 0.0
  %1857 = vmatprep.subr.mxu0 0.0
  %1858 = vmatpush1.xpose.msra.mxu0 0.0
  %1859 = vmatprep.subr.mxu0 0.0
  %1860 = vmatpush1.xpose.msra.mxu0 0.0
  %1861 = vmatprep.subr.mxu0 0.0
  %1862 = vmatpush1.xpose.msra.mxu0 0.0
  %1863 = vmatprep.subr.mxu0 0.0
  %1864 = vmatpush1.xpose.msra.mxu0 0.0
  %1865 = vmatprep.subr.mxu0 0.0
  %1866 = vmatpush1.xpose.msra.mxu0 0.0
  %1867 = vmatprep.subr.mxu0 0.0
  %1868 = vmatpush1.xpose.msra.mxu0 0.0
  %1869 = vmatprep.subr.mxu0 0.0
  %1870 = vmatpush1.xpose.msra.mxu0 0.0
  %1871 = vmatprep.subr.mxu0 0.0
  %1872 = vmatpush1.xpose.msra.mxu0 0.0
  %1873 = vmatprep.subr.mxu0 0.0
  %1874 = vmatpush1.xpose.msra.mxu0 0.0
  %1875 = vmatprep.subr.mxu0 0.0
  %1876 = vmatpush1.xpose.msra.mxu0 0.0
  %1877 = vmatprep.mubr.f32.mxu0 0.0
  %1878 = vmatmul.mubr.f32.gmra.mrb[0].mxu0 %v1805
  %v1879 = vpop.f32.mrb[0].mxu0
  %v1880 = vadd.f32 %v88, %v1879
  %v1881 = vpop.f32.mrb[0].mxu0
  %1882 = vmatprep.mubr.f32.mxu0 0.0
  %1883 = vmatmul.mubr.f32.gmra.mrb[0].mxu0 %v1807
  %v1884 = vpop.f32.mrb[0].mxu0
  %v1885 = vadd.f32 %v89, %v1884
  %v1886 = vpop.f32.mrb[0].mxu0
  %1887 = vdwg.mxu0
  %1888 = vrot.lane.b32.xlu0 %v1624, 96
  %v1889 = vpop.permute.xlu0 %1888
  %1890 = vrot.lane.b32.xlu0 %v1626, 96
  %v1891 = vpop.permute.xlu0 %1890
  %v1892 = vsel %vm337, %v1624, 0
  %v1894 = vsel %vm337, %v1626, 0
  %v1896 = vsel %vm337, %v1889, 0
  %v1898 = vsel %vm337, %v1891, 0
  %1900 = vmatprep.subr.mxu0 0.0
  %1901 = vmatpush1.xpose.msra.mxu0 %v1896
  %1902 = vmatprep.subr.mxu0 0.0
  %1903 = vmatpush1.xpose.msra.mxu0 %v1898
  %1904 = vmatprep.subr.mxu0 0.0
  %1905 = vmatpush1.xpose.msra.mxu0 0.0
  %1906 = vmatprep.subr.mxu0 0.0
  %1907 = vmatpush1.xpose.msra.mxu0 0.0
  %1908 = vmatprep.subr.mxu0 0.0
  %1909 = vmatpush1.xpose.msra.mxu0 0.0
  %1910 = vmatprep.subr.mxu0 0.0
  %1911 = vmatpush1.xpose.msra.mxu0 0.0
  %1912 = vmatprep.subr.mxu0 0.0
  %1913 = vmatpush1.xpose.msra.mxu0 0.0
  %1914 = vmatprep.subr.mxu0 0.0
  %1915 = vmatpush1.xpose.msra.mxu0 0.0
  %1916 = vmatprep.subr.mxu0 0.0
  %1917 = vmatpush1.xpose.msra.mxu0 0.0
  %1918 = vmatprep.subr.mxu0 0.0
  %1919 = vmatpush1.xpose.msra.mxu0 0.0
  %1920 = vmatprep.subr.mxu0 0.0
  %1921 = vmatpush1.xpose.msra.mxu0 0.0
  %1922 = vmatprep.subr.mxu0 0.0
  %1923 = vmatpush1.xpose.msra.mxu0 0.0
  %1924 = vmatprep.subr.mxu0 0.0
  %1925 = vmatpush1.xpose.msra.mxu0 0.0
  %1926 = vmatprep.subr.mxu0 0.0
  %1927 = vmatpush1.xpose.msra.mxu0 0.0
  %1928 = vmatprep.subr.mxu0 0.0
  %1929 = vmatpush1.xpose.msra.mxu0 0.0
  %1930 = vmatprep.subr.mxu0 0.0
  %1931 = vmatpush1.xpose.msra.mxu0 0.0
  %1932 = vmatprep.subr.mxu0 0.0
  %1933 = vmatpush1.xpose.msra.mxu0 0.0
  %1934 = vmatprep.subr.mxu0 0.0
  %1935 = vmatpush1.xpose.msra.mxu0 0.0
  %1936 = vmatprep.subr.mxu0 0.0
  %1937 = vmatpush1.xpose.msra.mxu0 0.0
  %1938 = vmatprep.subr.mxu0 0.0
  %1939 = vmatpush1.xpose.msra.mxu0 0.0
  %1940 = vmatprep.subr.mxu0 0.0
  %1941 = vmatpush1.xpose.msra.mxu0 0.0
  %1942 = vmatprep.subr.mxu0 0.0
  %1943 = vmatpush1.xpose.msra.mxu0 0.0
  %1944 = vmatprep.subr.mxu0 0.0
  %1945 = vmatpush1.xpose.msra.mxu0 0.0
  %1946 = vmatprep.subr.mxu0 0.0
  %1947 = vmatpush1.xpose.msra.mxu0 0.0
  %1948 = vmatprep.subr.mxu0 0.0
  %1949 = vmatpush1.xpose.msra.mxu0 0.0
  %1950 = vmatprep.subr.mxu0 0.0
  %1951 = vmatpush1.xpose.msra.mxu0 0.0
  %1952 = vmatprep.subr.mxu0 0.0
  %1953 = vmatpush1.xpose.msra.mxu0 0.0
  %1954 = vmatprep.subr.mxu0 0.0
  %1955 = vmatpush1.xpose.msra.mxu0 0.0
  %1956 = vmatprep.subr.mxu0 0.0
  %1957 = vmatpush1.xpose.msra.mxu0 0.0
  %1958 = vmatprep.subr.mxu0 0.0
  %1959 = vmatpush1.xpose.msra.mxu0 0.0
  %1960 = vmatprep.subr.mxu0 0.0
  %1961 = vmatpush1.xpose.msra.mxu0 0.0
  %1962 = vmatprep.subr.mxu0 0.0
  %1963 = vmatpush1.xpose.msra.mxu0 0.0
  %1964 = vmatprep.mubr.f32.mxu0 0.0
  %1965 = vmatmul.mubr.f32.gmra.mrb[0].mxu0 %v1892
  %v1966 = vpop.f32.mrb[0].mxu0
  %v1967 = vadd.f32 %v88, %v1966
  %v1968 = vpop.f32.mrb[0].mxu0
  %1969 = vmatprep.mubr.f32.mxu0 0.0
  %1970 = vmatmul.mubr.f32.gmra.mrb[0].mxu0 %v1894
  %v1971 = vpop.f32.mrb[0].mxu0
  %v1972 = vadd.f32 %v89, %v1971
  %v1973 = vpop.f32.mrb[0].mxu0
  %1974 = vdwg.mxu0
  %v1975 = vsel %vm682, %v1706, -inf
  %1976 = vmax.xlane.f32.xlu0 %v1975
  %v1977 = vpop.xlane.xlu0 %1976
  %v1978 = vsel %vm682, %v1711, -inf
  %1979 = vmax.xlane.f32.xlu0 %v1978
  %v1980 = vpop.xlane.xlu0 %1979
  %v1981 = vsel %vm682, %v1793, -inf
  %1982 = vmax.xlane.f32.xlu0 %v1981
  %v1983 = vpop.xlane.xlu0 %1982
  %v1984 = vsel %vm682, %v1798, -inf
  %1985 = vmax.xlane.f32.xlu0 %v1984
  %v1986 = vpop.xlane.xlu0 %1985
  %v1987 = vsel %vm682, %v1880, -inf
  %1988 = vmax.xlane.f32.xlu0 %v1987
  %v1989 = vpop.xlane.xlu0 %1988
  %v1990 = vsel %vm682, %v1885, -inf
  %1991 = vmax.xlane.f32.xlu0 %v1990
  %v1992 = vpop.xlane.xlu0 %1991
  %v1993 = vsel %vm682, %v1967, -inf
  %1994 = vmax.xlane.f32.xlu0 %v1993
  %v1995 = vpop.xlane.xlu0 %1994
  %v1996 = vsel %vm682, %v1972, -inf
  %1997 = vmax.xlane.f32.xlu0 %v1996
  %v1998 = vpop.xlane.xlu0 %1997
  %v1999 = vsub.f32 %v1706, %v1977
  %v2000 = vsub.f32 %v1711, %v1980
  %v2001 = vsub.f32 %v1793, %v1983
  %v2002 = vsub.f32 %v1798, %v1986
  %v2003 = vsub.f32 %v1880, %v1989
  %v2004 = vsub.f32 %v1885, %v1992
  %v2005 = vsub.f32 %v1967, %v1995
  %v2006 = vsub.f32 %v1972, %v1998
  %v2007 = vmul.f32 %v1999, 1.442695
  %v2008 = vpow.pop %v2007
  %v2009 = vmul.f32 %v2000, 1.442695
  %v2010 = vpow.pop %v2009
  %v2011 = vmul.f32 %v2001, 1.442695
  %v2012 = vpow.pop %v2011
  %v2013 = vmul.f32 %v2002, 1.442695
  %v2014 = vpow.pop %v2013
  %v2015 = vmul.f32 %v2003, 1.442695
  %v2016 = vpow.pop %v2015
  %v2017 = vmul.f32 %v2004, 1.442695
  %v2018 = vpow.pop %v2017
  %v2019 = vmul.f32 %v2005, 1.442695
  %v2020 = vpow.pop %v2019
  %v2021 = vmul.f32 %v2006, 1.442695
  %v2022 = vpow.pop %v2021
  %v2023 = vsel %vm682, %v2008, 0.0
  %2024 = vadd.xlane.f32.xlu0 %v2023
  %v2025 = vpop.xlane.xlu0 %2024
  %v2026 = vsel %vm682, %v2010, 0.0
  %2027 = vadd.xlane.f32.xlu0 %v2026
  %v2028 = vpop.xlane.xlu0 %2027
  %v2029 = vsel %vm682, %v2012, 0.0
  %2030 = vadd.xlane.f32.xlu0 %v2029
  %v2031 = vpop.xlane.xlu0 %2030
  %v2032 = vsel %vm682, %v2014, 0.0
  %2033 = vadd.xlane.f32.xlu0 %v2032
  %v2034 = vpop.xlane.xlu0 %2033
  %v2035 = vsel %vm682, %v2016, 0.0
  %2036 = vadd.xlane.f32.xlu0 %v2035
  %v2037 = vpop.xlane.xlu0 %2036
  %v2038 = vsel %vm682, %v2018, 0.0
  %2039 = vadd.xlane.f32.xlu0 %v2038
  %v2040 = vpop.xlane.xlu0 %2039
  %v2041 = vsel %vm682, %v2020, 0.0
  %2042 = vadd.xlane.f32.xlu0 %v2041
  %v2043 = vpop.xlane.xlu0 %2042
  %v2044 = vsel %vm682, %v2022, 0.0
  %2045 = vadd.xlane.f32.xlu0 %v2044
  %v2046 = vpop.xlane.xlu0 %2045
  %v2047 = vrcp.pop %v2025
  %v2048 = vrcp.pop %v2028
  %v2049 = vrcp.pop %v2031
  %v2050 = vrcp.pop %v2034
  %v2051 = vrcp.pop %v2037
  %v2052 = vrcp.pop %v2040
  %v2053 = vrcp.pop %v2043
  %v2054 = vrcp.pop %v2046
  %v2055 = vmul.f32 %v2008, %v2047
  %v2056 = vmul.f32 %v2010, %v2048
  %v2057 = vmul.f32 %v2012, %v2049
  %v2058 = vmul.f32 %v2014, %v2050
  %v2059 = vmul.f32 %v2016, %v2051
  %v2060 = vmul.f32 %v2018, %v2052
  %v2061 = vmul.f32 %v2020, %v2053
  %v2062 = vmul.f32 %v2022, %v2054
  %2063 = vrot.lane.b32.xlu0 %v1605, 64
  %v2064 = vpop.permute.xlu0 %2063
  %2065 = vrot.lane.b32.xlu0 %v1610, 64
  %v2066 = vpop.permute.xlu0 %2065
  %v2070 = vsel %vm682, %v2055, 0
  %v2073 = vsel %vm682, %v2056, 0
  %2075 = vmatprep.subr.mxu0 0.0
  %2076 = vmatpush1.msra.mxu0 %v2064
  %2077 = vmatprep.subr.mxu0 0.0
  %2078 = vmatpush1.msra.mxu0 %v2066
  %2079 = vmatprep.subr.mxu0 0.0
  %2080 = vmatpush1.msra.mxu0 0.0
  %2081 = vmatprep.subr.mxu0 0.0
  %2082 = vmatpush1.msra.mxu0 0.0
  %2083 = vmatprep.subr.mxu0 0.0
  %2084 = vmatpush1.msra.mxu0 0.0
  %2085 = vmatprep.subr.mxu0 0.0
  %2086 = vmatpush1.msra.mxu0 0.0
  %2087 = vmatprep.subr.mxu0 0.0
  %2088 = vmatpush1.msra.mxu0 0.0
  %2089 = vmatprep.subr.mxu0 0.0
  %2090 = vmatpush1.msra.mxu0 0.0
  %2091 = vmatprep.subr.mxu0 0.0
  %2092 = vmatpush1.msra.mxu0 0.0
  %2093 = vmatprep.subr.mxu0 0.0
  %2094 = vmatpush1.msra.mxu0 0.0
  %2095 = vmatprep.subr.mxu0 0.0
  %2096 = vmatpush1.msra.mxu0 0.0
  %2097 = vmatprep.subr.mxu0 0.0
  %2098 = vmatpush1.msra.mxu0 0.0
  %2099 = vmatprep.subr.mxu0 0.0
  %2100 = vmatpush1.msra.mxu0 0.0
  %2101 = vmatprep.subr.mxu0 0.0
  %2102 = vmatpush1.msra.mxu0 0.0
  %2103 = vmatprep.subr.mxu0 0.0
  %2104 = vmatpush1.msra.mxu0 0.0
  %2105 = vmatprep.subr.mxu0 0.0
  %2106 = vmatpush1.msra.mxu0 0.0
  %2107 = vmatprep.subr.mxu0 0.0
  %2108 = vmatpush1.msra.mxu0 0.0
  %2109 = vmatprep.subr.mxu0 0.0
  %2110 = vmatpush1.msra.mxu0 0.0
  %2111 = vmatprep.subr.mxu0 0.0
  %2112 = vmatpush1.msra.mxu0 0.0
  %2113 = vmatprep.subr.mxu0 0.0
  %2114 = vmatpush1.msra.mxu0 0.0
  %2115 = vmatprep.subr.mxu0 0.0
  %2116 = vmatpush1.msra.mxu0 0.0
  %2117 = vmatprep.subr.mxu0 0.0
  %2118 = vmatpush1.msra.mxu0 0.0
  %2119 = vmatprep.subr.mxu0 0.0
  %2120 = vmatpush1.msra.mxu0 0.0
  %2121 = vmatprep.subr.mxu0 0.0
  %2122 = vmatpush1.msra.mxu0 0.0
  %2123 = vmatprep.subr.mxu0 0.0
  %2124 = vmatpush1.msra.mxu0 0.0
  %2125 = vmatprep.subr.mxu0 0.0
  %2126 = vmatpush1.msra.mxu0 0.0
  %2127 = vmatprep.subr.mxu0 0.0
  %2128 = vmatpush1.msra.mxu0 0.0
  %2129 = vmatprep.subr.mxu0 0.0
  %2130 = vmatpush1.msra.mxu0 0.0
  %2131 = vmatprep.subr.mxu0 0.0
  %2132 = vmatpush1.msra.mxu0 0.0
  %2133 = vmatprep.subr.mxu0 0.0
  %2134 = vmatpush1.msra.mxu0 0.0
  %2135 = vmatprep.subr.mxu0 0.0
  %2136 = vmatpush1.msra.mxu0 0.0
  %2137 = vmatprep.subr.mxu0 0.0
  %2138 = vmatpush1.msra.mxu0 0.0
  %2139 = vmatprep.mubr.f32.mxu0 0.0
  %2140 = vmatmul.mubr.f32.gmra.mrb[0].mxu0 %v2070
  %v2141 = vpop.f32.mrb[0].mxu0
  %v2142 = vadd.f32 0.0, %v2141
  %v2143 = vpop.f32.mrb[0].mxu0
  %2144 = vmatprep.mubr.f32.mxu0 0.0
  %2145 = vmatmul.mubr.f32.gmra.mrb[0].mxu0 %v2073
  %v2146 = vpop.f32.mrb[0].mxu0
  %v2147 = vadd.f32 0.0, %v2146
  %v2148 = vpop.f32.mrb[0].mxu0
  %2149 = vdwg.mxu0
  %2150 = vrot.lane.b32.xlu0 %v1616, 64
  %v2151 = vpop.permute.xlu0 %2150
  %2152 = vrot.lane.b32.xlu0 %v1618, 64
  %v2153 = vpop.permute.xlu0 %2152
  %v2157 = vsel %vm682, %v2057, 0
  %v2160 = vsel %vm682, %v2058, 0
  %2162 = vmatprep.subr.mxu0 0.0
  %2163 = vmatpush1.msra.mxu0 %v2151
  %2164 = vmatprep.subr.mxu0 0.0
  %2165 = vmatpush1.msra.mxu0 %v2153
  %2166 = vmatprep.subr.mxu0 0.0
  %2167 = vmatpush1.msra.mxu0 0.0
  %2168 = vmatprep.subr.mxu0 0.0
  %2169 = vmatpush1.msra.mxu0 0.0
  %2170 = vmatprep.subr.mxu0 0.0
  %2171 = vmatpush1.msra.mxu0 0.0
  %2172 = vmatprep.subr.mxu0 0.0
  %2173 = vmatpush1.msra.mxu0 0.0
  %2174 = vmatprep.subr.mxu0 0.0
  %2175 = vmatpush1.msra.mxu0 0.0
  %2176 = vmatprep.subr.mxu0 0.0
  %2177 = vmatpush1.msra.mxu0 0.0
  %2178 = vmatprep.subr.mxu0 0.0
  %2179 = vmatpush1.msra.mxu0 0.0
  %2180 = vmatprep.subr.mxu0 0.0
  %2181 = vmatpush1.msra.mxu0 0.0
  %2182 = vmatprep.subr.mxu0 0.0
  %2183 = vmatpush1.msra.mxu0 0.0
  %2184 = vmatprep.subr.mxu0 0.0
  %2185 = vmatpush1.msra.mxu0 0.0
  %2186 = vmatprep.subr.mxu0 0.0
  %2187 = vmatpush1.msra.mxu0 0.0
  %2188 = vmatprep.subr.mxu0 0.0
  %2189 = vmatpush1.msra.mxu0 0.0
  %2190 = vmatprep.subr.mxu0 0.0
  %2191 = vmatpush1.msra.mxu0 0.0
  %2192 = vmatprep.subr.mxu0 0.0
  %2193 = vmatpush1.msra.mxu0 0.0
  %2194 = vmatprep.subr.mxu0 0.0
  %2195 = vmatpush1.msra.mxu0 0.0
  %2196 = vmatprep.subr.mxu0 0.0
  %2197 = vmatpush1.msra.mxu0 0.0
  %2198 = vmatprep.subr.mxu0 0.0
  %2199 = vmatpush1.msra.mxu0 0.0
  %2200 = vmatprep.subr.mxu0 0.0
  %2201 = vmatpush1.msra.mxu0 0.0
  %2202 = vmatprep.subr.mxu0 0.0
  %2203 = vmatpush1.msra.mxu0 0.0
  %2204 = vmatprep.subr.mxu0 0.0
  %2205 = vmatpush1.msra.mxu0 0.0
  %2206 = vmatprep.subr.mxu0 0.0
  %2207 = vmatpush1.msra.mxu0 0.0
  %2208 = vmatprep.subr.mxu0 0.0
  %2209 = vmatpush1.msra.mxu0 0.0
  %2210 = vmatprep.subr.mxu0 0.0
  %2211 = vmatpush1.msra.mxu0 0.0
  %2212 = vmatprep.subr.mxu0 0.0
  %2213 = vmatpush1.msra.mxu0 0.0
  %2214 = vmatprep.subr.mxu0 0.0
  %2215 = vmatpush1.msra.mxu0 0.0
  %2216 = vmatprep.subr.mxu0 0.0
  %2217 = vmatpush1.msra.mxu0 0.0
  %2218 = vmatprep.subr.mxu0 0.0
  %2219 = vmatpush1.msra.mxu0 0.0
  %2220 = vmatprep.subr.mxu0 0.0
  %2221 = vmatpush1.msra.mxu0 0.0
  %2222 = vmatprep.subr.mxu0 0.0
  %2223 = vmatpush1.msra.mxu0 0.0
  %2224 = vmatprep.subr.mxu0 0.0
  %2225 = vmatpush1.msra.mxu0 0.0
  %2226 = vmatprep.mubr.f32.mxu0 0.0
  %2227 = vmatmul.mubr.f32.gmra.mrb[0].mxu0 %v2157
  %v2228 = vpop.f32.mrb[0].mxu0
  %v2229 = vadd.f32 0.0, %v2228
  %v2230 = vpop.f32.mrb[0].mxu0
  %2231 = vmatprep.mubr.f32.mxu0 0.0
  %2232 = vmatmul.mubr.f32.gmra.mrb[0].mxu0 %v2160
  %v2233 = vpop.f32.mrb[0].mxu0
  %v2234 = vadd.f32 0.0, %v2233
  %v2235 = vpop.f32.mrb[0].mxu0
  %2236 = vdwg.mxu0
  %2237 = vrot.lane.b32.xlu0 %v1620, 64
  %v2238 = vpop.permute.xlu0 %2237
  %2239 = vrot.lane.b32.xlu0 %v1622, 64
  %v2240 = vpop.permute.xlu0 %2239
  %v2244 = vsel %vm682, %v2059, 0
  %v2247 = vsel %vm682, %v2060, 0
  %2249 = vmatprep.subr.mxu0 0.0
  %2250 = vmatpush1.msra.mxu0 %v2238
  %2251 = vmatprep.subr.mxu0 0.0
  %2252 = vmatpush1.msra.mxu0 %v2240
  %2253 = vmatprep.subr.mxu0 0.0
  %2254 = vmatpush1.msra.mxu0 0.0
  %2255 = vmatprep.subr.mxu0 0.0
  %2256 = vmatpush1.msra.mxu0 0.0
  %2257 = vmatprep.subr.mxu0 0.0
  %2258 = vmatpush1.msra.mxu0 0.0
  %2259 = vmatprep.subr.mxu0 0.0
  %2260 = vmatpush1.msra.mxu0 0.0
  %2261 = vmatprep.subr.mxu0 0.0
  %2262 = vmatpush1.msra.mxu0 0.0
  %2263 = vmatprep.subr.mxu0 0.0
  %2264 = vmatpush1.msra.mxu0 0.0
  %2265 = vmatprep.subr.mxu0 0.0
  %2266 = vmatpush1.msra.mxu0 0.0
  %2267 = vmatprep.subr.mxu0 0.0
  %2268 = vmatpush1.msra.mxu0 0.0
  %2269 = vmatprep.subr.mxu0 0.0
  %2270 = vmatpush1.msra.mxu0 0.0
  %2271 = vmatprep.subr.mxu0 0.0
  %2272 = vmatpush1.msra.mxu0 0.0
  %2273 = vmatprep.subr.mxu0 0.0
  %2274 = vmatpush1.msra.mxu0 0.0
  %2275 = vmatprep.subr.mxu0 0.0
  %2276 = vmatpush1.msra.mxu0 0.0
  %2277 = vmatprep.subr.mxu0 0.0
  %2278 = vmatpush1.msra.mxu0 0.0
  %2279 = vmatprep.subr.mxu0 0.0
  %2280 = vmatpush1.msra.mxu0 0.0
  %2281 = vmatprep.subr.mxu0 0.0
  %2282 = vmatpush1.msra.mxu0 0.0
  %2283 = vmatprep.subr.mxu0 0.0
  %2284 = vmatpush1.msra.mxu0 0.0
  %2285 = vmatprep.subr.mxu0 0.0
  %2286 = vmatpush1.msra.mxu0 0.0
  %2287 = vmatprep.subr.mxu0 0.0
  %2288 = vmatpush1.msra.mxu0 0.0
  %2289 = vmatprep.subr.mxu0 0.0
  %2290 = vmatpush1.msra.mxu0 0.0
  %2291 = vmatprep.subr.mxu0 0.0
  %2292 = vmatpush1.msra.mxu0 0.0
  %2293 = vmatprep.subr.mxu0 0.0
  %2294 = vmatpush1.msra.mxu0 0.0
  %2295 = vmatprep.subr.mxu0 0.0
  %2296 = vmatpush1.msra.mxu0 0.0
  %2297 = vmatprep.subr.mxu0 0.0
  %2298 = vmatpush1.msra.mxu0 0.0
  %2299 = vmatprep.subr.mxu0 0.0
  %2300 = vmatpush1.msra.mxu0 0.0
  %2301 = vmatprep.subr.mxu0 0.0
  %2302 = vmatpush1.msra.mxu0 0.0
  %2303 = vmatprep.subr.mxu0 0.0
  %2304 = vmatpush1.msra.mxu0 0.0
  %2305 = vmatprep.subr.mxu0 0.0
  %2306 = vmatpush1.msra.mxu0 0.0
  %2307 = vmatprep.subr.mxu0 0.0
  %2308 = vmatpush1.msra.mxu0 0.0
  %2309 = vmatprep.subr.mxu0 0.0
  %2310 = vmatpush1.msra.mxu0 0.0
  %2311 = vmatprep.subr.mxu0 0.0
  %2312 = vmatpush1.msra.mxu0 0.0
  %2313 = vmatprep.mubr.f32.mxu0 0.0
  %2314 = vmatmul.mubr.f32.gmra.mrb[0].mxu0 %v2244
  %v2315 = vpop.f32.mrb[0].mxu0
  %v2316 = vadd.f32 0.0, %v2315
  %v2317 = vpop.f32.mrb[0].mxu0
  %2318 = vmatprep.mubr.f32.mxu0 0.0
  %2319 = vmatmul.mubr.f32.gmra.mrb[0].mxu0 %v2247
  %v2320 = vpop.f32.mrb[0].mxu0
  %v2321 = vadd.f32 0.0, %v2320
  %v2322 = vpop.f32.mrb[0].mxu0
  %2323 = vdwg.mxu0
  %2324 = vrot.lane.b32.xlu0 %v1624, 64
  %v2325 = vpop.permute.xlu0 %2324
  %2326 = vrot.lane.b32.xlu0 %v1626, 64
  %v2327 = vpop.permute.xlu0 %2326
  %v2331 = vsel %vm682, %v2061, 0
  %v2334 = vsel %vm682, %v2062, 0
  %2336 = vmatprep.subr.mxu0 0.0
  %2337 = vmatpush1.msra.mxu0 %v2325
  %2338 = vmatprep.subr.mxu0 0.0
  %2339 = vmatpush1.msra.mxu0 %v2327
  %2340 = vmatprep.subr.mxu0 0.0
  %2341 = vmatpush1.msra.mxu0 0.0
  %2342 = vmatprep.subr.mxu0 0.0
  %2343 = vmatpush1.msra.mxu0 0.0
  %2344 = vmatprep.subr.mxu0 0.0
  %2345 = vmatpush1.msra.mxu0 0.0
  %2346 = vmatprep.subr.mxu0 0.0
  %2347 = vmatpush1.msra.mxu0 0.0
  %2348 = vmatprep.subr.mxu0 0.0
  %2349 = vmatpush1.msra.mxu0 0.0
  %2350 = vmatprep.subr.mxu0 0.0
  %2351 = vmatpush1.msra.mxu0 0.0
  %2352 = vmatprep.subr.mxu0 0.0
  %2353 = vmatpush1.msra.mxu0 0.0
  %2354 = vmatprep.subr.mxu0 0.0
  %2355 = vmatpush1.msra.mxu0 0.0
  %2356 = vmatprep.subr.mxu0 0.0
  %2357 = vmatpush1.msra.mxu0 0.0
  %2358 = vmatprep.subr.mxu0 0.0
  %2359 = vmatpush1.msra.mxu0 0.0
  %2360 = vmatprep.subr.mxu0 0.0
  %2361 = vmatpush1.msra.mxu0 0.0
  %2362 = vmatprep.subr.mxu0 0.0
  %2363 = vmatpush1.msra.mxu0 0.0
  %2364 = vmatprep.subr.mxu0 0.0
  %2365 = vmatpush1.msra.mxu0 0.0
  %2366 = vmatprep.subr.mxu0 0.0
  %2367 = vmatpush1.msra.mxu0 0.0
  %2368 = vmatprep.subr.mxu0 0.0
  %2369 = vmatpush1.msra.mxu0 0.0
  %2370 = vmatprep.subr.mxu0 0.0
  %2371 = vmatpush1.msra.mxu0 0.0
  %2372 = vmatprep.subr.mxu0 0.0
  %2373 = vmatpush1.msra.mxu0 0.0
  %2374 = vmatprep.subr.mxu0 0.0
  %2375 = vmatpush1.msra.mxu0 0.0
  %2376 = vmatprep.subr.mxu0 0.0
  %2377 = vmatpush1.msra.mxu0 0.0
  %2378 = vmatprep.subr.mxu0 0.0
  %2379 = vmatpush1.msra.mxu0 0.0
  %2380 = vmatprep.subr.mxu0 0.0
  %2381 = vmatpush1.msra.mxu0 0.0
  %2382 = vmatprep.subr.mxu0 0.0
  %2383 = vmatpush1.msra.mxu0 0.0
  %2384 = vmatprep.subr.mxu0 0.0
  %2385 = vmatpush1.msra.mxu0 0.0
  %2386 = vmatprep.subr.mxu0 0.0
  %2387 = vmatpush1.msra.mxu0 0.0
  %2388 = vmatprep.subr.mxu0 0.0
  %2389 = vmatpush1.msra.mxu0 0.0
  %2390 = vmatprep.subr.mxu0 0.0
  %2391 = vmatpush1.msra.mxu0 0.0
  %2392 = vmatprep.subr.mxu0 0.0
  %2393 = vmatpush1.msra.mxu0 0.0
  %2394 = vmatprep.subr.mxu0 0.0
  %2395 = vmatpush1.msra.mxu0 0.0
  %2396 = vmatprep.subr.mxu0 0.0
  %2397 = vmatpush1.msra.mxu0 0.0
  %2398 = vmatprep.subr.mxu0 0.0
  %2399 = vmatpush1.msra.mxu0 0.0
  %2400 = vmatprep.mubr.f32.mxu0 0.0
  %2401 = vmatmul.mubr.f32.gmra.mrb[0].mxu0 %v2331
  %v2402 = vpop.f32.mrb[0].mxu0
  %v2403 = vadd.f32 0.0, %v2402
  %v2404 = vpop.f32.mrb[0].mxu0
  %2405 = vmatprep.mubr.f32.mxu0 0.0
  %2406 = vmatmul.mubr.f32.gmra.mrb[0].mxu0 %v2334
  %v2407 = vpop.f32.mrb[0].mxu0
  %v2408 = vadd.f32 0.0, %v2407
  %v2409 = vpop.f32.mrb[0].mxu0
  %2410 = vdwg.mxu0
  %2413 = vrot.lane.b32.xlu0 %v2229, 8
  %v2414 = vpop.permute.xlu0 %2413
  %2415 = vrot.lane.b32.xlu0 %v2234, 8
  %v2416 = vpop.permute.xlu0 %2415
  %2421 = vrot.lane.b32.xlu0 %v2316, 16
  %v2422 = vpop.permute.xlu0 %2421
  %2423 = vrot.lane.b32.xlu0 %v2321, 16
  %v2424 = vpop.permute.xlu0 %2423
  %2429 = vrot.lane.b32.xlu0 %v2403, 24
  %v2430 = vpop.permute.xlu0 %2429
  %2431 = vrot.lane.b32.xlu0 %v2408, 24
  %v2432 = vpop.permute.xlu0 %2431
  %v2435 = vsel %vm337, %v2142, %v2414
  %v2436 = vsel %vm337, %v2147, %v2416
  %v2437 = vsel %vm682, %v2435, %v2422
  %v2438 = vsel %vm682, %v2436, %v2424
  %v2439 = vsel %vm1147, %v2437, %v2430
  %v2440 = vsel %vm1147, %v2438, %v2432
  %s2441 = scalar_lea.vmem %s11, 32
  %v2442 = vld [vmem:[%s2441] sm:$0xff]
  %v2443 = vld [vmem:[%s2441 + $0x8] sm:$0xff]
  %v2444 = vld [vmem:[%s2441 + $0x10] sm:$0xff]
  %v2445 = vld [vmem:[%s2441 + $0x18] sm:$0xff]
  %v2447 = vsel %vm186, %v2439, 0
  %v2450 = vsel %vm186, %v2440, 0
  %2452 = vmatprep.subr.mxu0 0.0
  %2453 = vmatpush1.msra.mxu0 %v2442
  %2454 = vmatprep.subr.mxu0 0.0
  %2455 = vmatpush1.msra.mxu0 %v2443
  %2456 = vmatprep.subr.mxu0 0.0
  %2457 = vmatpush1.msra.mxu0 %v2444
  %2458 = vmatprep.subr.mxu0 0.0
  %2459 = vmatpush1.msra.mxu0 %v2445
  %2460 = vmatprep.subr.mxu0 0.0
  %2461 = vmatpush1.msra.mxu0 0.0
  %2462 = vmatprep.subr.mxu0 0.0
  %2463 = vmatpush1.msra.mxu0 0.0
  %2464 = vmatprep.subr.mxu0 0.0
  %2465 = vmatpush1.msra.mxu0 0.0
  %2466 = vmatprep.subr.mxu0 0.0
  %2467 = vmatpush1.msra.mxu0 0.0
  %2468 = vmatprep.subr.mxu0 0.0
  %2469 = vmatpush1.msra.mxu0 0.0
  %2470 = vmatprep.subr.mxu0 0.0
  %2471 = vmatpush1.msra.mxu0 0.0
  %2472 = vmatprep.subr.mxu0 0.0
  %2473 = vmatpush1.msra.mxu0 0.0
  %2474 = vmatprep.subr.mxu0 0.0
  %2475 = vmatpush1.msra.mxu0 0.0
  %2476 = vmatprep.subr.mxu0 0.0
  %2477 = vmatpush1.msra.mxu0 0.0
  %2478 = vmatprep.subr.mxu0 0.0
  %2479 = vmatpush1.msra.mxu0 0.0
  %2480 = vmatprep.subr.mxu0 0.0
  %2481 = vmatpush1.msra.mxu0 0.0
  %2482 = vmatprep.subr.mxu0 0.0
  %2483 = vmatpush1.msra.mxu0 0.0
  %2484 = vmatprep.subr.mxu0 0.0
  %2485 = vmatpush1.msra.mxu0 0.0
  %2486 = vmatprep.subr.mxu0 0.0
  %2487 = vmatpush1.msra.mxu0 0.0
  %2488 = vmatprep.subr.mxu0 0.0
  %2489 = vmatpush1.msra.mxu0 0.0
  %2490 = vmatprep.subr.mxu0 0.0
  %2491 = vmatpush1.msra.mxu0 0.0
  %2492 = vmatprep.subr.mxu0 0.0
  %2493 = vmatpush1.msra.mxu0 0.0
  %2494 = vmatprep.subr.mxu0 0.0
  %2495 = vmatpush1.msra.mxu0 0.0
  %2496 = vmatprep.subr.mxu0 0.0
  %2497 = vmatpush1.msra.mxu0 0.0
  %2498 = vmatprep.subr.mxu0 0.0
  %2499 = vmatpush1.msra.mxu0 0.0
  %2500 = vmatprep.subr.mxu0 0.0
  %2501 = vmatpush1.msra.mxu0 0.0
  %2502 = vmatprep.subr.mxu0 0.0
  %2503 = vmatpush1.msra.mxu0 0.0
  %2504 = vmatprep.subr.mxu0 0.0
  %2505 = vmatpush1.msra.mxu0 0.0
  %2506 = vmatprep.subr.mxu0 0.0
  %2507 = vmatpush1.msra.mxu0 0.0
  %2508 = vmatprep.subr.mxu0 0.0
  %2509 = vmatpush1.msra.mxu0 0.0
  %2510 = vmatprep.subr.mxu0 0.0
  %2511 = vmatpush1.msra.mxu0 0.0
  %2512 = vmatprep.subr.mxu0 0.0
  %2513 = vmatpush1.msra.mxu0 0.0
  %2514 = vmatprep.subr.mxu0 0.0
  %2515 = vmatpush1.msra.mxu0 0.0
  %2516 = vmatprep.mubr.f32.mxu0 0.0
  %2517 = vmatmul.mubr.f32.gmra.mrb[0].mxu0 %v2447
  %v2518 = vpop.f32.mrb[0].mxu0
  %v2519 = vadd.f32 0.0, %v2518
  %v2520 = vpop.f32.mrb[0].mxu0
  %2521 = vmatprep.mubr.f32.mxu0 0.0
  %2522 = vmatmul.mubr.f32.gmra.mrb[0].mxu0 %v2450
  %v2523 = vpop.f32.mrb[0].mxu0
  %v2524 = vadd.f32 0.0, %v2523
  %v2525 = vpop.f32.mrb[0].mxu0
  %2526 = vdwg.mxu0
  %v2527 = vadd.f32 %v1476, %v2519
  %v2528 = vadd.f32 %v1477, %v2524
  %v2529 = vld [vmem:[%s12 + $0x1] sm:$0x1]
  %v2530 = vlaneseq
  %v2531 = vshrl.u32 %v2530, 7
  %v2532 = vsub.s32 0, %v2531
  %v2533 = vrot.slane %v2529, %v2532
  %v2534 = vadd.f32 %v2527, %v2533
  %v2535 = vadd.f32 %v2528, %v2533
  %v2536 = vld [vmem:[%s13 + $0x1] sm:$0x1]
  %v2537 = vld [vmem:[%s14 + $0x1] sm:$0x1]
  %v2538 = vsel %vm186, %v2534, 0.0
  %2539 = vadd.xlane.f32.xlu0 %v2538
  %v2540 = vpop.xlane.xlu0 %2539
  %v2541 = vsel %vm186, %v2535, 0.0
  %2542 = vadd.xlane.f32.xlu0 %v2541
  %v2543 = vpop.xlane.xlu0 %2542
  %v2544 = vmul.f32 %v2534, %v2534
  %v2545 = vmul.f32 %v2535, %v2535
  %v2546 = vsel %vm186, %v2544, 0.0
  %2547 = vadd.xlane.f32.xlu0 %v2546
  %v2548 = vpop.xlane.xlu0 %2547
  %v2549 = vsel %vm186, %v2545, 0.0
  %2550 = vadd.xlane.f32.xlu0 %v2549
  %v2551 = vpop.xlane.xlu0 %2550
  %v2552 = vmul.f32 %v2540, 0.03125
  %v2553 = vmul.f32 %v2543, 0.03125
  %v2554 = vmul.f32 %v2548, 0.03125
  %v2555 = vmul.f32 %v2551, 0.03125
  %v2556 = vmul.f32 %v2552, %v2552
  %v2557 = vmul.f32 %v2553, %v2553
  %v2558 = vsub.f32 %v2554, %v2556
  %v2559 = vsub.f32 %v2555, %v2557
  %v2560 = vsub.f32 %v2534, %v2552
  %v2561 = vsub.f32 %v2535, %v2553
  %v2562 = vadd.f32 %v2558, 1e-05
  %v2563 = vadd.f32 %v2559, 1e-05
  %v2564 = vrsqrt.pop %v2562
  %v2565 = vrsqrt.pop %v2563
  %v2566 = vmul.f32 %v2560, %v2564
  %v2567 = vmul.f32 %v2561, %v2565
  %v2568 = vlaneseq
  %v2569 = vshrl.u32 %v2568, 7
  %v2570 = vsub.s32 0, %v2569
  %v2571 = vrot.slane %v2536, %v2570
  %v2572 = vmul.f32 %v2566, %v2571
  %v2573 = vmul.f32 %v2567, %v2571
  %v2574 = vlaneseq
  %v2575 = vshrl.u32 %v2574, 7
  %v2576 = vsub.s32 0, %v2575
  %v2577 = vrot.slane %v2537, %v2576
  %v2578 = vadd.f32 %v2572, %v2577
  %v2579 = vadd.f32 %v2573, %v2577
  %s2580 = scalar_lea.vmem %s15, 32
  %v2581 = vld [vmem:[%s2580] sm:$0xff]
  %v2582 = vld [vmem:[%s2580 + $0x8] sm:$0xff]
  %v2583 = vld [vmem:[%s2580 + $0x10] sm:$0xff]
  %v2584 = vld [vmem:[%s2580 + $0x18] sm:$0xff]
  %v2585 = vld [vmem:[%s16 + $0x1] sm:$0x1]
  %v2586 = vlaneseq
  %v2587 = vshrl.u32 %v2586, 7
  %v2588 = vsub.s32 0, %v2587
  %v2589 = vrot.slane %v2585, %v2588
  %v2591 = vsel %vm186, %v2578, 0
  %v2594 = vsel %vm186, %v2579, 0
  %2596 = vmatprep.subr.mxu0 0.0
  %2597 = vmatpush1.msra.mxu0 %v2581
  %2598 = vmatprep.subr.mxu0 0.0
  %2599 = vmatpush1.msra.mxu0 %v2582
  %2600 = vmatprep.subr.mxu0 0.0
  %2601 = vmatpush1.msra.mxu0 %v2583
  %2602 = vmatprep.subr.mxu0 0.0
  %2603 = vmatpush1.msra.mxu0 %v2584
  %2604 = vmatprep.subr.mxu0 0.0
  %2605 = vmatpush1.msra.mxu0 0.0
  %2606 = vmatprep.subr.mxu0 0.0
  %2607 = vmatpush1.msra.mxu0 0.0
  %2608 = vmatprep.subr.mxu0 0.0
  %2609 = vmatpush1.msra.mxu0 0.0
  %2610 = vmatprep.subr.mxu0 0.0
  %2611 = vmatpush1.msra.mxu0 0.0
  %2612 = vmatprep.subr.mxu0 0.0
  %2613 = vmatpush1.msra.mxu0 0.0
  %2614 = vmatprep.subr.mxu0 0.0
  %2615 = vmatpush1.msra.mxu0 0.0
  %2616 = vmatprep.subr.mxu0 0.0
  %2617 = vmatpush1.msra.mxu0 0.0
  %2618 = vmatprep.subr.mxu0 0.0
  %2619 = vmatpush1.msra.mxu0 0.0
  %2620 = vmatprep.subr.mxu0 0.0
  %2621 = vmatpush1.msra.mxu0 0.0
  %2622 = vmatprep.subr.mxu0 0.0
  %2623 = vmatpush1.msra.mxu0 0.0
  %2624 = vmatprep.subr.mxu0 0.0
  %2625 = vmatpush1.msra.mxu0 0.0
  %2626 = vmatprep.subr.mxu0 0.0
  %2627 = vmatpush1.msra.mxu0 0.0
  %2628 = vmatprep.subr.mxu0 0.0
  %2629 = vmatpush1.msra.mxu0 0.0
  %2630 = vmatprep.subr.mxu0 0.0
  %2631 = vmatpush1.msra.mxu0 0.0
  %2632 = vmatprep.subr.mxu0 0.0
  %2633 = vmatpush1.msra.mxu0 0.0
  %2634 = vmatprep.subr.mxu0 0.0
  %2635 = vmatpush1.msra.mxu0 0.0
  %2636 = vmatprep.subr.mxu0 0.0
  %2637 = vmatpush1.msra.mxu0 0.0
  %2638 = vmatprep.subr.mxu0 0.0
  %2639 = vmatpush1.msra.mxu0 0.0
  %2640 = vmatprep.subr.mxu0 0.0
  %2641 = vmatpush1.msra.mxu0 0.0
  %2642 = vmatprep.subr.mxu0 0.0
  %2643 = vmatpush1.msra.mxu0 0.0
  %2644 = vmatprep.subr.mxu0 0.0
  %2645 = vmatpush1.msra.mxu0 0.0
  %2646 = vmatprep.subr.mxu0 0.0
  %2647 = vmatpush1.msra.mxu0 0.0
  %2648 = vmatprep.subr.mxu0 0.0
  %2649 = vmatpush1.msra.mxu0 0.0
  %2650 = vmatprep.subr.mxu0 0.0
  %2651 = vmatpush1.msra.mxu0 0.0
  %2652 = vmatprep.subr.mxu0 0.0
  %2653 = vmatpush1.msra.mxu0 0.0
  %2654 = vmatprep.subr.mxu0 0.0
  %2655 = vmatpush1.msra.mxu0 0.0
  %2656 = vmatprep.subr.mxu0 0.0
  %2657 = vmatpush1.msra.mxu0 0.0
  %2658 = vmatprep.subr.mxu0 0.0
  %2659 = vmatpush1.msra.mxu0 0.0
  %2660 = vmatprep.mubr.f32.mxu0 0.0
  %2661 = vmatmul.mubr.f32.gmra.mrb[0].mxu0 %v2591
  %v2662 = vpop.f32.mrb[0].mxu0
  %v2663 = vadd.f32 %v2589, %v2662
  %v2664 = vpop.f32.mrb[0].mxu0
  %2665 = vmatprep.mubr.f32.mxu0 0.0
  %2666 = vmatmul.mubr.f32.gmra.mrb[0].mxu0 %v2594
  %v2667 = vpop.f32.mrb[0].mxu0
  %v2668 = vadd.f32 %v2589, %v2667
  %v2669 = vpop.f32.mrb[0].mxu0
  %2670 = vdwg.mxu0
  %v2671 = vmax.f32 %v2663, 0.0
  %v2672 = vmax.f32 %v2668, 0.0
  %s2673 = scalar_lea.vmem %s17, 128
  %v2674 = vld [vmem:[%s2673] sm:$0xff]
  %v2675 = vld [vmem:[%s2673 + $0x8] sm:$0xff]
  %v2676 = vld [vmem:[%s2673 + $0x10] sm:$0xff]
  %v2677 = vld [vmem:[%s2673 + $0x18] sm:$0xff]
  %v2678 = vld [vmem:[%s2673 + $0x20] sm:$0xff]
  %v2679 = vld [vmem:[%s2673 + $0x28] sm:$0xff]
  %v2680 = vld [vmem:[%s2673 + $0x30] sm:$0xff]
  %v2681 = vld [vmem:[%s2673 + $0x38] sm:$0xff]
  %v2682 = vld [vmem:[%s2673 + $0x40] sm:$0xff]
  %v2683 = vld [vmem:[%s2673 + $0x48] sm:$0xff]
  %v2684 = vld [vmem:[%s2673 + $0x50] sm:$0xff]
  %v2685 = vld [vmem:[%s2673 + $0x58] sm:$0xff]
  %v2686 = vld [vmem:[%s2673 + $0x60] sm:$0xff]
  %v2687 = vld [vmem:[%s2673 + $0x68] sm:$0xff]
  %v2688 = vld [vmem:[%s2673 + $0x70] sm:$0xff]
  %v2689 = vld [vmem:[%s2673 + $0x78] sm:$0xff]
  %v2690 = vld [vmem:[%s18 + $0x1] sm:$0x1]
  %v2691 = vlaneseq
  %v2692 = vshrl.u32 %v2691, 7
  %v2693 = vsub.s32 0, %v2692
  %v2694 = vrot.slane %v2690, %v2693
  %2695 = vmatprep.subr.mxu0 0.0
  %2696 = vmatpush1.msra.mxu0 %v2674
  %2697 = vmatprep.subr.mxu0 0.0
  %2698 = vmatpush1.msra.mxu0 %v2675
  %2699 = vmatprep.subr.mxu0 0.0
  %2700 = vmatpush1.msra.mxu0 %v2676
  %2701 = vmatprep.subr.mxu0 0.0
  %2702 = vmatpush1.msra.mxu0 %v2677
  %2703 = vmatprep.subr.mxu0 0.0
  %2704 = vmatpush1.msra.mxu0 %v2678
  %2705 = vmatprep.subr.mxu0 0.0
  %2706 = vmatpush1.msra.mxu0 %v2679
  %2707 = vmatprep.subr.mxu0 0.0
  %2708 = vmatpush1.msra.mxu0 %v2680
  %2709 = vmatprep.subr.mxu0 0.0
  %2710 = vmatpush1.msra.mxu0 %v2681
  %2711 = vmatprep.subr.mxu0 0.0
  %2712 = vmatpush1.msra.mxu0 %v2682
  %2713 = vmatprep.subr.mxu0 0.0
  %2714 = vmatpush1.msra.mxu0 %v2683
  %2715 = vmatprep.subr.mxu0 0.0
  %2716 = vmatpush1.msra.mxu0 %v2684
  %2717 = vmatprep.subr.mxu0 0.0
  %2718 = vmatpush1.msra.mxu0 %v2685
  %2719 = vmatprep.subr.mxu0 0.0
  %2720 = vmatpush1.msra.mxu0 %v2686
  %2721 = vmatprep.subr.mxu0 0.0
  %2722 = vmatpush1.msra.mxu0 %v2687
  %2723 = vmatprep.subr.mxu0 0.0
  %2724 = vmatpush1.msra.mxu0 %v2688
  %2725 = vmatprep.subr.mxu0 0.0
  %2726 = vmatpush1.msra.mxu0 %v2689
  %2727 = vmatprep.subr.mxu0 0.0
  %2728 = vmatpush1.msra.mxu0 0.0
  %2729 = vmatprep.subr.mxu0 0.0
  %2730 = vmatpush1.msra.mxu0 0.0
  %2731 = vmatprep.subr.mxu0 0.0
  %2732 = vmatpush1.msra.mxu0 0.0
  %2733 = vmatprep.subr.mxu0 0.0
  %2734 = vmatpush1.msra.mxu0 0.0
  %2735 = vmatprep.subr.mxu0 0.0
  %2736 = vmatpush1.msra.mxu0 0.0
  %2737 = vmatprep.subr.mxu0 0.0
  %2738 = vmatpush1.msra.mxu0 0.0
  %2739 = vmatprep.subr.mxu0 0.0
  %2740 = vmatpush1.msra.mxu0 0.0
  %2741 = vmatprep.subr.mxu0 0.0
  %2742 = vmatpush1.msra.mxu0 0.0
  %2743 = vmatprep.subr.mxu0 0.0
  %2744 = vmatpush1.msra.mxu0 0.0
  %2745 = vmatprep.subr.mxu0 0.0
  %2746 = vmatpush1.msra.mxu0 0.0
  %2747 = vmatprep.subr.mxu0 0.0
  %2748 = vmatpush1.msra.mxu0 0.0
  %2749 = vmatprep.subr.mxu0 0.0
  %2750 = vmatpush1.msra.mxu0 0.0
  %2751 = vmatprep.subr.mxu0 0.0
  %2752 = vmatpush1.msra.mxu0 0.0
  %2753 = vmatprep.subr.mxu0 0.0
  %2754 = vmatpush1.msra.mxu0 0.0
  %2755 = vmatprep.subr.mxu0 0.0
  %2756 = vmatpush1.msra.mxu0 0.0
  %2757 = vmatprep.subr.mxu0 0.0
  %2758 = vmatpush1.msra.mxu0 0.0
  %2759 = vmatprep.mubr.f32.mxu0 0.0
  %2760 = vmatmul.mubr.f32.gmra.mrb[0].mxu0 %v2671
  %v2761 = vpop.f32.mrb[0].mxu0
  %v2762 = vadd.f32 %v2694, %v2761
  %v2763 = vpop.f32.mrb[0].mxu0
  %2764 = vmatprep.mubr.f32.mxu0 0.0
  %2765 = vmatmul.mubr.f32.gmra.mrb[0].mxu0 %v2672
  %v2766 = vpop.f32.mrb[0].mxu0
  %v2767 = vadd.f32 %v2694, %v2766
  %v2768 = vpop.f32.mrb[0].mxu0
  %2769 = vdwg.mxu0
  %v2770 = vadd.f32 %v2534, %v2762
  %v2771 = vadd.f32 %v2535, %v2767
  %v2772 = vld [vmem:[%s19] sm:$0x3]
  %v2773 = vlaneseq
  %v2774 = vshrl.u32 %v2773, 7
  %v2775 = vsub.s32 0, %v2774
  %v2776 = vrot.slane %v2772, %v2775
  %v2777 = vmul.f32 %v2770, %v2776
  %v2778 = vmul.f32 %v2771, %v2776
  %v2779 = vsel %vm186, %v2777, 0.0
  %2780 = vadd.xlane.f32.xlu0 %v2779
  %v2781 = vpop.xlane.xlu0 %2780
  %v2782 = vsel %vm186, %v2778, 0.0
  %2783 = vadd.xlane.f32.xlu0 %v2782
  %v2784 = vpop.xlane.xlu0 %2783
  %v2785 = vld [vmem:[%s20] sm:$0x1]
  %v2786 = vlaneseq
  %v2787 = vshrl.u32 %v2786, 7
  %v2788 = vsub.s32 0, %v2787
  %v2789 = vrot.slane %v2785, %v2788
  %v2790 = vadd.f32 %v2781, %v2789
  %v2791 = vadd.f32 %v2784, %v2789
  %v2792 = vlaneseq
  %v2793 = vshrl.u32 %v2792, 7
  %v2794 = vsub.s32 1, %v2793
  %v2795 = vrot.slane %v2772, %v2794
  %v2796 = vmul.f32 %v2770, %v2795
  %v2797 = vmul.f32 %v2771, %v2795
  %v2798 = vsel %vm186, %v2796, 0.0
  %2799 = vadd.xlane.f32.xlu0 %v2798
  %v2800 = vpop.xlane.xlu0 %2799
  %v2801 = vsel %vm186, %v2797, 0.0
  %2802 = vadd.xlane.f32.xlu0 %v2801
  %v2803 = vpop.xlane.xlu0 %2802
  %v2804 = vld [vmem:[%s20 + $0x1] sm:$0x1]
  %v2805 = vlaneseq
  %v2806 = vshrl.u32 %v2805, 7
  %v2807 = vsub.s32 0, %v2806
  %v2808 = vrot.slane %v2804, %v2807
  %v2809 = vadd.f32 %v2800, %v2808
  %v2810 = vadd.f32 %v2803, %v2808
  %v2811 = vmax.f32 %v2809, 0.0
  %v2812 = vmax.f32 %v2810, 0.0
  %v2813 = vand.u32 2147483647, %v2809
  %v2814 = vand.u32 2147483647, %v2810
  %v2815 = vsub.f32 0.0, %v2813
  %v2816 = vsub.f32 0.0, %v2814
  %v2817 = vmul.f32 %v2815, 1.442695
  %v2818 = vpow.pop %v2817
  %v2819 = vmul.f32 %v2816, 1.442695
  %v2820 = vpow.pop %v2819
  %v2821 = vadd.f32 %v2818, 1.0
  %v2822 = vlog2.pop %v2821
  %v2823 = vmul.f32 %v2822, 0.6931472
  %v2824 = vmul.f32 -0.5, %v2818
  %v2825 = vadd.f32 %v2824, 1.0
  %v2826 = vmul.f32 %v2825, %v2818
  %v2827 = vand.u32 2147483647, %v2818
  %vm2828 = vcmp.lt.f32.partialorder %v2827, 0.0004427343
  %v2829 = vsel %vm2828, %v2826, %v2823
  %v2830 = vadd.f32 %v2820, 1.0
  %v2831 = vlog2.pop %v2830
  %v2832 = vmul.f32 %v2831, 0.6931472
  %v2833 = vmul.f32 -0.5, %v2820
  %v2834 = vadd.f32 %v2833, 1.0
  %v2835 = vmul.f32 %v2834, %v2820
  %v2836 = vand.u32 2147483647, %v2820
  %vm2837 = vcmp.lt.f32.partialorder %v2836, 0.0004427343
  %v2838 = vsel %vm2837, %v2835, %v2832
  %v2839 = vadd.f32 %v2811, %v2829
  %v2840 = vadd.f32 %v2812, %v2838
  %v2841 = vmul.f32 %v2839, %v68
  %v2842 = vmul.f32 %v2840, %v69
  %v2843 = vmul.f32 %v139, %v2790
  %v2844 = vmul.f32 %v140, %v2791
  %v2845 = vadd.f32 %v2841, %v2843
  %v2846 = vadd.f32 %v2842, %v2844
  %v2847 = vadd.f32 %v2839, %v139
  %v2848 = vadd.f32 %v2840, %v140
  %v2849 = vrcp.pop %v2847
  %v2850 = vrcp.pop %v2848
  %v2851 = vmul.f32 %v2845, %v2849
  %v2852 = vmul.f32 %v2846, %v2850
  %vm2853 = vcmask 7168
  %2854 = vst.msk [vmem:[%s21] sm:$0xff] %vm2853, %v2851
  %2855 = vst.msk [vmem:[%s21 + $0x8] sm:$0xff] %vm2853, %v2852
  // Predicated region
  $region86: #{tpu_custom_call.1} parent=0 // pred_check
    _
  $region87: #{tpu_custom_call.1} parent=0 // pred_check_branch
    %2857 = sbr.rel (0) target = $region89
  $region88: #{tpu_custom_call.1} parent=0 // pred_region
    _
  $region89: #{tpu_custom_call.1} parent=0 // pred_fallthru
    _
  // Predicated region
  $region90: #{tpu_custom_call.1} parent=0 // pred_check
    _
  $region91: #{tpu_custom_call.1} parent=0 // pred_check_branch
    %2859 = sbr.rel (0) target = $region93
  $region92: #{tpu_custom_call.1} parent=0 // pred_region
    _
  $region93: #{tpu_custom_call.1} parent=0 // pred_fallthru
    _

</llo_original>
